<compile_context>
chip_gen: v7x
topology: tpu7x:2x2x1
jax: 0.10.0
libtpu: 0.0.40
codegen_flags: <defaults>
</compile_context>

<pallas_src>
import jax
import jax.numpy as jnp
from jax import lax
from jax.experimental import pallas as pl
from jax.experimental.pallas import tpu as pltpu


# ----------------------------- fused Pallas kernel ---------------------------

def fused_gat_gnn_kernel(x_ref, adj_ref,
                         w12_ref, b12_ref,
                         gwt_ref, gws_ref, gwd_ref, gb_ref,
                         w3t_ref, b3_ref,
                         o_ref):
    f32 = jnp.float32
    neg_big = f32(-1e30)

    # fused linear1 . linear2 (pre-folded in the wrapper): one matmul + bias
    x = jnp.dot(x_ref[...], w12_ref[...], preferred_element_type=f32) + b12_ref[...]

    adj = adj_ref[...]                                   # [N, N], loaded once

    # 6 GAT layers (heads=1, concat=True, negative_slope=0.2, add_self_loops=False)
    for l in range(gwt_ref.shape[0]):                    # static unroll (6 iters)
        # h, a_src, a_dst all depend only on x -> three independent MXU pushes
        # (no serial round-trip through h for the attention logits).
        h = jnp.dot(x, gwt_ref[l], preferred_element_type=f32)             # [N, C]
        a_src = lax.dot_general(gws_ref[l], x, (((1,), (1,)), ((), ())),
                                preferred_element_type=f32)                # [1, N]
        a_dst = jnp.dot(x, gwd_ref[l], preferred_element_type=f32)         # [N, 1]
        e = a_dst + a_src                                                  # [N, N]
        e = jnp.where(e > 0, e, f32(0.2) * e)                              # LeakyReLU(0.2)
        # robust masked softmax: masked max as stabilizer (no overflow even if
        # non-edge logits dominate; rows with no in-edges collapse to bias).
        e = jnp.where(adj > 0, e, neg_big)
        m = jnp.max(e, axis=-1, keepdims=True)                             # [N, 1]
        p = jnp.exp(e - m) * adj                                           # zero non-edges
        denom = jnp.sum(p, axis=-1, keepdims=True)                         # [N, 1]
        # exact reciprocal: approx=True (~2^-12 rel err) compounds over 6 layers
        # and threatens the 1e-4 output tolerance.
        inv = pl.reciprocal(denom + f32(1e-16), approx=False)
        # fold the divide into the [N, C] output scale instead of an [N, N] divide
        x = jnp.dot(p, h, preferred_element_type=f32) * inv + gb_ref[l]

    # relu(cat(x, x)) @ W3t + b3  ==  relu(x) @ (W3t[:h] + W3t[h:]) + b3
    # (w3t_ref is already the pre-summed, lane-padded matrix)
    x = jnp.maximum(x, f32(0.0))
    o_ref[...] = jnp.dot(x, w3t_ref[...], preferred_element_type=f32) + b3_ref[...]


# ------------------------------- wrappers --------------------------------------

def _prepare_kernel_params(params):
    hidden = params["w1t"].shape[0]
    out_ch = params["b3"].shape[1]
    out_pad = ((out_ch + 127) // 128) * 128              # lane-dense output slab

    # (1) linear1 . linear2 folded into a single affine map
    w12 = params["w1t"] @ params["w2t"]                                  # [C, C]
    b12 = params["b1"] @ params["w2t"] + params["b2"]                    # [1, C]

    # (2) attention vectors pre-folded into the layer weights:
    #     a_src[j] = x[j] . (Wt @ att_src^T),  a_dst[i] = x[i] . (Wt @ att_dst^T)
    gwt = jnp.stack([p["wt"] for p in params["gat"]])                    # [L, C, C]
    gws = jnp.stack([p["att_src"] @ p["wt"].T for p in params["gat"]])   # [L, 1, C]
    gwd = jnp.stack([p["wt"] @ p["att_dst"].T for p in params["gat"]])   # [L, C, 1]
    gb = jnp.stack([p["b"] for p in params["gat"]])                      # [L, 1, C]

    # (3) concat elimination + lane padding of the final projection
    w3_sum = params["w3t"][:hidden] + params["w3t"][hidden:]             # [C, out]
    w3_pad = jnp.zeros((hidden, out_pad), jnp.float32).at[:, :out_ch].set(w3_sum)
    b3_pad = jnp.zeros((1, out_pad), jnp.float32).at[:, :out_ch].set(params["b3"])

    return (w12, b12, gwt, gws, gwd, gb, w3_pad, b3_pad), out_ch, out_pad


def gat_gnn_forward_batched(x, adj, params):
    """x: [G, N, C] node features, adj: [G, N, N] with adj[g, tgt, src] = 1."""
    G, N, C = x.shape
    (w12, b12, gwt, gws, gwd, gb, w3_pad, b3_pad), out_ch, out_pad = \
        _prepare_kernel_params(params)

    def full(a):
        nd = a.ndim
        return pl.BlockSpec(a.shape, lambda g, _nd=nd: (0,) * _nd)

    out = pl.pallas_call(
        fused_gat_gnn_kernel,
        grid=(G,),
        out_shape=jax.ShapeDtypeStruct((G, N, out_pad), jnp.float32),
        in_specs=[
            pl.BlockSpec((None, N, C), lambda g: (g, 0, 0)),   # x  (per graph)
            pl.BlockSpec((None, N, N), lambda g: (g, 0, 0)),   # adj (per graph)
            full(w12), full(b12),
            full(gwt), full(gws), full(gwd), full(gb),
            full(w3_pad), full(b3_pad),
        ],
        out_specs=pl.BlockSpec((None, N, out_pad), lambda g: (g, 0, 0)),
        compiler_params=pltpu.CompilerParams(
            dimension_semantics=("parallel",),           # graphs are independent
            vmem_limit_bytes=32 * 1024 * 1024),
    )(x, adj, w12, b12, gwt, gws, gwd, gb, w3_pad, b3_pad)
    return out[:, :, :out_ch]


def gat_gnn_forward(x, edge_index, params, num_nodes):
    """Single-graph entry point matching the torch module's forward signature."""
    # TODO(synk): carry the mask as int8/bool (widen at the multiply) and cache it
    # per graph when this is called repeatedly; the scatter below can dominate at N=16.
    src, dst = edge_index[0], edge_index[1]
    adj = jnp.zeros((num_nodes, num_nodes), jnp.float32).at[dst, src].set(1.0)
    return gat_gnn_forward_batched(x[None], adj[None], params)[0]


# ------------------------- deterministic parameters ---------------------------

def init_params(key, hidden, out_ch):
    keys = iter(jax.random.split(key, 32))

    def nrm(shape, scale=0.1):
        return scale * jax.random.normal(next(keys), shape, jnp.float32)

    params = {
        "w1t": nrm((hidden, hidden)), "b1": nrm((1, hidden)),
        "w2t": nrm((hidden, hidden)), "b2": nrm((1, hidden)),
        "gat": [],
        "w3t": nrm((2 * hidden, out_ch)), "b3": nrm((1, out_ch)),
    }
    for _ in range(6):
        params["gat"].append({
            "wt": nrm((hidden, hidden)),
            "att_src": nrm((1, hidden)),
            "att_dst": nrm((1, hidden)),
            "b": nrm((1, hidden)),
        })
    return params


# ------------------------------ pure-JAX reference ----------------------------
# PyG-faithful formulation (explicit concat, explicit per-layer linears, -inf
# masked softmax) — validates every algebraic simplification in the kernel.

def reference_forward(x, adj, params):
    def lin(x, wt, b):
        return x @ wt + b

    x = lin(x, params["w1t"], params["b1"])
    x = lin(x, params["w2t"], params["b2"])
    for p in params["gat"]:
        h = x @ p["wt"]
        a_src = jnp.sum(h * p["att_src"], -1, keepdims=True)
        a_dst = jnp.sum(h * p["att_dst"], -1, keepdims=True)
        e = a_dst + a_src.T
        e = jnp.where(e > 0, e, 0.2 * e)
        e = jnp.where(adj > 0, e, -1e30)
        e = e - jnp.max(e, -1, keepdims=True)
        pm = jnp.exp(e) * adj
        alpha = pm / (jnp.sum(pm, -1, keepdims=True) + 1e-16)
        x = alpha @ h + p["b"]
    xc = jnp.concatenate([x, x], axis=1)
    xc = jnp.maximum(xc, 0.0)
    return xc @ params["w3t"] + params["b3"]


# ---------------------------------- main ---------------------------------------

if __name__ == "__main__":
    N, HIDDEN, OUT, G = 16, 32, 8, 2

    key = jax.random.PRNGKey(0)
    kx, kp = jax.random.split(key)
    x = jax.random.normal(kx, (G, N, HIDDEN), jnp.float32)

    # deterministic, duplicate-free edge lists: j -> (j + k) % N
    def ring_edges(offsets):
        src, dst = [], []
        for k in offsets:
            for j in range(N):
                src.append(j)
                dst.append((j + k) % N)
        return jnp.array([src, dst], dtype=jnp.int32)

    edge_indices = [ring_edges((1, 2, 3, 5)), ring_edges((1, 4, 7))]
    adjs = [jnp.zeros((N, N), jnp.float32).at[e[1], e[0]].set(1.0)
            for e in edge_indices]
    adj = jnp.stack(adjs)                                 # [G, N, N]

    params = init_params(kp, HIDDEN, OUT)

    # batched (grid over graphs) fused kernel
    out = gat_gnn_forward_batched(x, adj, params)
    out = jax.block_until_ready(out)
    assert out.shape == (G, N, OUT), out.shape

    for g in range(G):
        ref = reference_forward(x[g], adj[g], params)
        err = float(jnp.abs(out[g] - ref).max())
        assert jnp.allclose(out[g], ref, atol=1e-4, rtol=1e-4), (g, err)

    # single-graph entry point (module-equivalent signature)
    out1 = gat_gnn_forward(x[0], edge_indices[0], params, N)
    out1 = jax.block_until_ready(out1)
    ref1 = reference_forward(x[0], adjs[0], params)
    assert jnp.allclose(out1, ref1, atol=1e-4, rtol=1e-4), \
        float(jnp.abs(out1 - ref1).max())

    print("KERNEL_OK")
</pallas_src>

<mosaic_0001>
module attributes {stable_mosaic.version = 11 : i64} {
  func.func @fused_gat_gnn_kernel(%arg0: i32, %arg1: memref<1x16x32xf32, #tpu.memory_space<vmem>>, %arg2: memref<1x16x16xf32, #tpu.memory_space<vmem>>, %arg3: memref<32x32xf32, #tpu.memory_space<vmem>>, %arg4: memref<1x32xf32, #tpu.memory_space<vmem>>, %arg5: memref<6x32x32xf32, #tpu.memory_space<vmem>>, %arg6: memref<6x1x32xf32, #tpu.memory_space<vmem>>, %arg7: memref<6x32x1xf32, #tpu.memory_space<vmem>>, %arg8: memref<6x1x32xf32, #tpu.memory_space<vmem>>, %arg9: memref<32x128xf32, #tpu.memory_space<vmem>>, %arg10: memref<1x128xf32, #tpu.memory_space<vmem>>, %arg11: memref<1x16x128xf32, #tpu.memory_space<vmem>>) attributes {dimension_semantics = [#tpu.dimension_semantics<parallel>], iteration_bounds = array<i64: 2>, scalar_prefetch = 0 : i64, scratch_operands = 0 : i64, tpu.core_type = #tpu.core_type<tc>, window_params = [{transform_indices = @transform_0, window_bounds = array<i64: 1, 16, 32>}, {transform_indices = @transform_1, window_bounds = array<i64: 1, 16, 16>}, {pipeline_mode = #tpu.pipeline_mode<synchronous>, transform_indices = @transform_2, window_bounds = array<i64: 32, 32>}, {pipeline_mode = #tpu.pipeline_mode<synchronous>, transform_indices = @transform_3, window_bounds = array<i64: 1, 32>}, {pipeline_mode = #tpu.pipeline_mode<synchronous>, transform_indices = @transform_4, window_bounds = array<i64: 6, 32, 32>}, {pipeline_mode = #tpu.pipeline_mode<synchronous>, transform_indices = @transform_5, window_bounds = array<i64: 6, 1, 32>}, {pipeline_mode = #tpu.pipeline_mode<synchronous>, transform_indices = @transform_6, window_bounds = array<i64: 6, 32, 1>}, {pipeline_mode = #tpu.pipeline_mode<synchronous>, transform_indices = @transform_7, window_bounds = array<i64: 6, 1, 32>}, {pipeline_mode = #tpu.pipeline_mode<synchronous>, transform_indices = @transform_8, window_bounds = array<i64: 32, 128>}, {pipeline_mode = #tpu.pipeline_mode<synchronous>, transform_indices = @transform_9, window_bounds = array<i64: 1, 128>}, {transform_indices = @transform_10, window_bounds = array<i64: 1, 16, 128>}]} {
    %c0 = arith.constant 0 : index
    %c0_0 = arith.constant 0 : index
    %c0_1 = arith.constant 0 : index
    %0 = vector.load %arg1[%c0, %c0_0, %c0_1] : memref<1x16x32xf32, #tpu.memory_space<vmem>>, vector<1x16x32xf32>
    %1 = vector.shape_cast %0 : vector<1x16x32xf32> to vector<16x32xf32>
    %c0_2 = arith.constant 0 : index
    %c0_3 = arith.constant 0 : index
    %2 = vector.load %arg3[%c0_2, %c0_3] : memref<32x32xf32, #tpu.memory_space<vmem>>, vector<32x32xf32>
    %cst = arith.constant dense<0.000000e+00> : vector<16x32xf32>
    %3 = tpu.matmul %1, %2, %cst {dimension_numbers = #tpu.dot_dimension_numbers<[1], [0], [0], [1], [0, 0, 1, 1], [], []>} : vector<16x32xf32>, vector<32x32xf32>, vector<16x32xf32> -> vector<16x32xf32>
    %c0_4 = arith.constant 0 : index
    %c0_5 = arith.constant 0 : index
    %4 = vector.load %arg4[%c0_4, %c0_5] : memref<1x32xf32, #tpu.memory_space<vmem>>, vector<1x32xf32>
    %5 = vector.broadcast %4 : vector<1x32xf32> to vector<16x32xf32>
    %6 = arith.addf %3, %5 : vector<16x32xf32>
    %c0_6 = arith.constant 0 : index
    %c0_7 = arith.constant 0 : index
    %c0_8 = arith.constant 0 : index
    %7 = vector.load %arg2[%c0_6, %c0_7, %c0_8] : memref<1x16x16xf32, #tpu.memory_space<vmem>>, vector<1x16x16xf32>
    %8 = vector.shape_cast %7 : vector<1x16x16xf32> to vector<16x16xf32>
    %c0_9 = arith.constant 0 : index
    %c0_10 = arith.constant 0 : index
    %c0_11 = arith.constant 0 : index
    %9 = vector.load %arg5[%c0_9, %c0_10, %c0_11] : memref<6x32x32xf32, #tpu.memory_space<vmem>>, vector<1x32x32xf32>
    %10 = vector.shape_cast %9 : vector<1x32x32xf32> to vector<32x32xf32>
    %cst_12 = arith.constant dense<0.000000e+00> : vector<16x32xf32>
    %11 = tpu.matmul %6, %10, %cst_12 {dimension_numbers = #tpu.dot_dimension_numbers<[1], [0], [0], [1], [0, 0, 1, 1], [], []>} : vector<16x32xf32>, vector<32x32xf32>, vector<16x32xf32> -> vector<16x32xf32>
    %c0_13 = arith.constant 0 : index
    %c0_14 = arith.constant 0 : index
    %c0_15 = arith.constant 0 : index
    %12 = vector.load %arg6[%c0_13, %c0_14, %c0_15] : memref<6x1x32xf32, #tpu.memory_space<vmem>>, vector<1x1x32xf32>
    %13 = vector.shape_cast %12 : vector<1x1x32xf32> to vector<1x32xf32>
    %cst_16 = arith.constant dense<0.000000e+00> : vector<1x16xf32>
    %14 = tpu.matmul %13, %6, %cst_16 {dimension_numbers = #tpu.dot_dimension_numbers<[1], [1], [0], [0], [0, 0, 1, 0], [], []>} : vector<1x32xf32>, vector<16x32xf32>, vector<1x16xf32> -> vector<1x16xf32>
    %c0_17 = arith.constant 0 : index
    %c0_18 = arith.constant 0 : index
    %c0_19 = arith.constant 0 : index
    %15 = vector.load %arg7[%c0_17, %c0_18, %c0_19] : memref<6x32x1xf32, #tpu.memory_space<vmem>>, vector<1x32x1xf32>
    %16 = vector.shape_cast %15 : vector<1x32x1xf32> to vector<32x1xf32>
    %cst_20 = arith.constant dense<0.000000e+00> : vector<16x1xf32>
    %17 = tpu.matmul %6, %16, %cst_20 {dimension_numbers = #tpu.dot_dimension_numbers<[1], [0], [0], [1], [0, 0, 1, 1], [], []>} : vector<16x32xf32>, vector<32x1xf32>, vector<16x1xf32> -> vector<16x1xf32>
    %18 = vector.broadcast %17 : vector<16x1xf32> to vector<16x16xf32>
    %19 = vector.broadcast %14 : vector<1x16xf32> to vector<16x16xf32>
    %20 = arith.addf %18, %19 : vector<16x16xf32>
    %cst_21 = arith.constant 0.000000e+00 : f32
    %21 = vector.broadcast %cst_21 : f32 to vector<16x16xf32>
    %22 = arith.cmpf ogt, %20, %21 : vector<16x16xf32>
    %cst_22 = arith.constant 2.000000e-01 : f32
    %23 = vector.broadcast %cst_22 : f32 to vector<16x16xf32>
    %24 = arith.mulf %23, %20 : vector<16x16xf32>
    %25 = arith.select %22, %20, %24 : vector<16x16xi1>, vector<16x16xf32>
    %cst_23 = arith.constant 0.000000e+00 : f32
    %26 = vector.broadcast %cst_23 : f32 to vector<16x16xf32>
    %27 = arith.cmpf ogt, %8, %26 : vector<16x16xf32>
    %cst_24 = arith.constant -1.000000e+30 : f32
    %28 = vector.broadcast %cst_24 : f32 to vector<16x16xf32>
    %29 = arith.select %27, %25, %28 : vector<16x16xi1>, vector<16x16xf32>
    %cst_25 = arith.constant dense<0xFF800000> : vector<16xf32>
    %30 = vector.multi_reduction <maximumf>, %29, %cst_25 [1] : vector<16x16xf32> to vector<16xf32>
    %31 = vector.shape_cast %30 : vector<16xf32> to vector<16x1xf32>
    %32 = vector.broadcast %31 : vector<16x1xf32> to vector<16x16xf32>
    %33 = arith.subf %29, %32 : vector<16x16xf32>
    %34 = math.exp %33 : vector<16x16xf32>
    %35 = arith.mulf %34, %8 : vector<16x16xf32>
    %cst_26 = arith.constant dense<0.000000e+00> : vector<16xf32>
    %36 = vector.multi_reduction <add>, %35, %cst_26 [1] : vector<16x16xf32> to vector<16xf32>
    %37 = vector.shape_cast %36 : vector<16xf32> to vector<16x1xf32>
    %cst_27 = arith.constant 1.000000e-16 : f32
    %38 = vector.broadcast %cst_27 : f32 to vector<16x1xf32>
    %39 = arith.addf %37, %38 : vector<16x1xf32>
    %40 = tpu.reciprocal %39 : vector<16x1xf32> -> vector<16x1xf32>
    %cst_28 = arith.constant dense<0.000000e+00> : vector<16x32xf32>
    %41 = tpu.matmul %35, %11, %cst_28 {dimension_numbers = #tpu.dot_dimension_numbers<[1], [0], [0], [1], [0, 0, 1, 1], [], []>} : vector<16x16xf32>, vector<16x32xf32>, vector<16x32xf32> -> vector<16x32xf32>
    %42 = vector.broadcast %40 : vector<16x1xf32> to vector<16x32xf32>
    %43 = arith.mulf %41, %42 : vector<16x32xf32>
    %c0_29 = arith.constant 0 : index
    %c0_30 = arith.constant 0 : index
    %c0_31 = arith.constant 0 : index
    %44 = vector.load %arg8[%c0_29, %c0_30, %c0_31] : memref<6x1x32xf32, #tpu.memory_space<vmem>>, vector<1x1x32xf32>
    %45 = vector.shape_cast %44 : vector<1x1x32xf32> to vector<1x32xf32>
    %46 = vector.broadcast %45 : vector<1x32xf32> to vector<16x32xf32>
    %47 = arith.addf %43, %46 : vector<16x32xf32>
    %c1 = arith.constant 1 : index
    %c0_32 = arith.constant 0 : index
    %c0_33 = arith.constant 0 : index
    %48 = vector.load %arg5[%c1, %c0_32, %c0_33] : memref<6x32x32xf32, #tpu.memory_space<vmem>>, vector<1x32x32xf32>
    %49 = vector.shape_cast %48 : vector<1x32x32xf32> to vector<32x32xf32>
    %cst_34 = arith.constant dense<0.000000e+00> : vector<16x32xf32>
    %50 = tpu.matmul %47, %49, %cst_34 {dimension_numbers = #tpu.dot_dimension_numbers<[1], [0], [0], [1], [0, 0, 1, 1], [], []>} : vector<16x32xf32>, vector<32x32xf32>, vector<16x32xf32> -> vector<16x32xf32>
    %c1_35 = arith.constant 1 : index
    %c0_36 = arith.constant 0 : index
    %c0_37 = arith.constant 0 : index
    %51 = vector.load %arg6[%c1_35, %c0_36, %c0_37] : memref<6x1x32xf32, #tpu.memory_space<vmem>>, vector<1x1x32xf32>
    %52 = vector.shape_cast %51 : vector<1x1x32xf32> to vector<1x32xf32>
    %cst_38 = arith.constant dense<0.000000e+00> : vector<1x16xf32>
    %53 = tpu.matmul %52, %47, %cst_38 {dimension_numbers = #tpu.dot_dimension_numbers<[1], [1], [0], [0], [0, 0, 1, 0], [], []>} : vector<1x32xf32>, vector<16x32xf32>, vector<1x16xf32> -> vector<1x16xf32>
    %c1_39 = arith.constant 1 : index
    %c0_40 = arith.constant 0 : index
    %c0_41 = arith.constant 0 : index
    %54 = vector.load %arg7[%c1_39, %c0_40, %c0_41] : memref<6x32x1xf32, #tpu.memory_space<vmem>>, vector<1x32x1xf32>
    %55 = vector.shape_cast %54 : vector<1x32x1xf32> to vector<32x1xf32>
    %cst_42 = arith.constant dense<0.000000e+00> : vector<16x1xf32>
    %56 = tpu.matmul %47, %55, %cst_42 {dimension_numbers = #tpu.dot_dimension_numbers<[1], [0], [0], [1], [0, 0, 1, 1], [], []>} : vector<16x32xf32>, vector<32x1xf32>, vector<16x1xf32> -> vector<16x1xf32>
    %57 = vector.broadcast %56 : vector<16x1xf32> to vector<16x16xf32>
    %58 = vector.broadcast %53 : vector<1x16xf32> to vector<16x16xf32>
    %59 = arith.addf %57, %58 : vector<16x16xf32>
    %cst_43 = arith.constant 0.000000e+00 : f32
    %60 = vector.broadcast %cst_43 : f32 to vector<16x16xf32>
    %61 = arith.cmpf ogt, %59, %60 : vector<16x16xf32>
    %cst_44 = arith.constant 2.000000e-01 : f32
    %62 = vector.broadcast %cst_44 : f32 to vector<16x16xf32>
    %63 = arith.mulf %62, %59 : vector<16x16xf32>
    %64 = arith.select %61, %59, %63 : vector<16x16xi1>, vector<16x16xf32>
    %cst_45 = arith.constant 0.000000e+00 : f32
    %65 = vector.broadcast %cst_45 : f32 to vector<16x16xf32>
    %66 = arith.cmpf ogt, %8, %65 : vector<16x16xf32>
    %cst_46 = arith.constant -1.000000e+30 : f32
    %67 = vector.broadcast %cst_46 : f32 to vector<16x16xf32>
    %68 = arith.select %66, %64, %67 : vector<16x16xi1>, vector<16x16xf32>
    %cst_47 = arith.constant dense<0xFF800000> : vector<16xf32>
    %69 = vector.multi_reduction <maximumf>, %68, %cst_47 [1] : vector<16x16xf32> to vector<16xf32>
    %70 = vector.shape_cast %69 : vector<16xf32> to vector<16x1xf32>
    %71 = vector.broadcast %70 : vector<16x1xf32> to vector<16x16xf32>
    %72 = arith.subf %68, %71 : vector<16x16xf32>
    %73 = math.exp %72 : vector<16x16xf32>
    %74 = arith.mulf %73, %8 : vector<16x16xf32>
    %cst_48 = arith.constant dense<0.000000e+00> : vector<16xf32>
    %75 = vector.multi_reduction <add>, %74, %cst_48 [1] : vector<16x16xf32> to vector<16xf32>
    %76 = vector.shape_cast %75 : vector<16xf32> to vector<16x1xf32>
    %cst_49 = arith.constant 1.000000e-16 : f32
    %77 = vector.broadcast %cst_49 : f32 to vector<16x1xf32>
    %78 = arith.addf %76, %77 : vector<16x1xf32>
    %79 = tpu.reciprocal %78 : vector<16x1xf32> -> vector<16x1xf32>
    %cst_50 = arith.constant dense<0.000000e+00> : vector<16x32xf32>
    %80 = tpu.matmul %74, %50, %cst_50 {dimension_numbers = #tpu.dot_dimension_numbers<[1], [0], [0], [1], [0, 0, 1, 1], [], []>} : vector<16x16xf32>, vector<16x32xf32>, vector<16x32xf32> -> vector<16x32xf32>
    %81 = vector.broadcast %79 : vector<16x1xf32> to vector<16x32xf32>
    %82 = arith.mulf %80, %81 : vector<16x32xf32>
    %c1_51 = arith.constant 1 : index
    %c0_52 = arith.constant 0 : index
    %c0_53 = arith.constant 0 : index
    %83 = vector.load %arg8[%c1_51, %c0_52, %c0_53] : memref<6x1x32xf32, #tpu.memory_space<vmem>>, vector<1x1x32xf32>
    %84 = vector.shape_cast %83 : vector<1x1x32xf32> to vector<1x32xf32>
    %85 = vector.broadcast %84 : vector<1x32xf32> to vector<16x32xf32>
    %86 = arith.addf %82, %85 : vector<16x32xf32>
    %c2 = arith.constant 2 : index
    %c0_54 = arith.constant 0 : index
    %c0_55 = arith.constant 0 : index
    %87 = vector.load %arg5[%c2, %c0_54, %c0_55] : memref<6x32x32xf32, #tpu.memory_space<vmem>>, vector<1x32x32xf32>
    %88 = vector.shape_cast %87 : vector<1x32x32xf32> to vector<32x32xf32>
    %cst_56 = arith.constant dense<0.000000e+00> : vector<16x32xf32>
    %89 = tpu.matmul %86, %88, %cst_56 {dimension_numbers = #tpu.dot_dimension_numbers<[1], [0], [0], [1], [0, 0, 1, 1], [], []>} : vector<16x32xf32>, vector<32x32xf32>, vector<16x32xf32> -> vector<16x32xf32>
    %c2_57 = arith.constant 2 : index
    %c0_58 = arith.constant 0 : index
    %c0_59 = arith.constant 0 : index
    %90 = vector.load %arg6[%c2_57, %c0_58, %c0_59] : memref<6x1x32xf32, #tpu.memory_space<vmem>>, vector<1x1x32xf32>
    %91 = vector.shape_cast %90 : vector<1x1x32xf32> to vector<1x32xf32>
    %cst_60 = arith.constant dense<0.000000e+00> : vector<1x16xf32>
    %92 = tpu.matmul %91, %86, %cst_60 {dimension_numbers = #tpu.dot_dimension_numbers<[1], [1], [0], [0], [0, 0, 1, 0], [], []>} : vector<1x32xf32>, vector<16x32xf32>, vector<1x16xf32> -> vector<1x16xf32>
    %c2_61 = arith.constant 2 : index
    %c0_62 = arith.constant 0 : index
    %c0_63 = arith.constant 0 : index
    %93 = vector.load %arg7[%c2_61, %c0_62, %c0_63] : memref<6x32x1xf32, #tpu.memory_space<vmem>>, vector<1x32x1xf32>
    %94 = vector.shape_cast %93 : vector<1x32x1xf32> to vector<32x1xf32>
    %cst_64 = arith.constant dense<0.000000e+00> : vector<16x1xf32>
    %95 = tpu.matmul %86, %94, %cst_64 {dimension_numbers = #tpu.dot_dimension_numbers<[1], [0], [0], [1], [0, 0, 1, 1], [], []>} : vector<16x32xf32>, vector<32x1xf32>, vector<16x1xf32> -> vector<16x1xf32>
    %96 = vector.broadcast %95 : vector<16x1xf32> to vector<16x16xf32>
    %97 = vector.broadcast %92 : vector<1x16xf32> to vector<16x16xf32>
    %98 = arith.addf %96, %97 : vector<16x16xf32>
    %cst_65 = arith.constant 0.000000e+00 : f32
    %99 = vector.broadcast %cst_65 : f32 to vector<16x16xf32>
    %100 = arith.cmpf ogt, %98, %99 : vector<16x16xf32>
    %cst_66 = arith.constant 2.000000e-01 : f32
    %101 = vector.broadcast %cst_66 : f32 to vector<16x16xf32>
    %102 = arith.mulf %101, %98 : vector<16x16xf32>
    %103 = arith.select %100, %98, %102 : vector<16x16xi1>, vector<16x16xf32>
    %cst_67 = arith.constant 0.000000e+00 : f32
    %104 = vector.broadcast %cst_67 : f32 to vector<16x16xf32>
    %105 = arith.cmpf ogt, %8, %104 : vector<16x16xf32>
    %cst_68 = arith.constant -1.000000e+30 : f32
    %106 = vector.broadcast %cst_68 : f32 to vector<16x16xf32>
    %107 = arith.select %105, %103, %106 : vector<16x16xi1>, vector<16x16xf32>
    %cst_69 = arith.constant dense<0xFF800000> : vector<16xf32>
    %108 = vector.multi_reduction <maximumf>, %107, %cst_69 [1] : vector<16x16xf32> to vector<16xf32>
    %109 = vector.shape_cast %108 : vector<16xf32> to vector<16x1xf32>
    %110 = vector.broadcast %109 : vector<16x1xf32> to vector<16x16xf32>
    %111 = arith.subf %107, %110 : vector<16x16xf32>
    %112 = math.exp %111 : vector<16x16xf32>
    %113 = arith.mulf %112, %8 : vector<16x16xf32>
    %cst_70 = arith.constant dense<0.000000e+00> : vector<16xf32>
    %114 = vector.multi_reduction <add>, %113, %cst_70 [1] : vector<16x16xf32> to vector<16xf32>
    %115 = vector.shape_cast %114 : vector<16xf32> to vector<16x1xf32>
    %cst_71 = arith.constant 1.000000e-16 : f32
    %116 = vector.broadcast %cst_71 : f32 to vector<16x1xf32>
    %117 = arith.addf %115, %116 : vector<16x1xf32>
    %118 = tpu.reciprocal %117 : vector<16x1xf32> -> vector<16x1xf32>
    %cst_72 = arith.constant dense<0.000000e+00> : vector<16x32xf32>
    %119 = tpu.matmul %113, %89, %cst_72 {dimension_numbers = #tpu.dot_dimension_numbers<[1], [0], [0], [1], [0, 0, 1, 1], [], []>} : vector<16x16xf32>, vector<16x32xf32>, vector<16x32xf32> -> vector<16x32xf32>
    %120 = vector.broadcast %118 : vector<16x1xf32> to vector<16x32xf32>
    %121 = arith.mulf %119, %120 : vector<16x32xf32>
    %c2_73 = arith.constant 2 : index
    %c0_74 = arith.constant 0 : index
    %c0_75 = arith.constant 0 : index
    %122 = vector.load %arg8[%c2_73, %c0_74, %c0_75] : memref<6x1x32xf32, #tpu.memory_space<vmem>>, vector<1x1x32xf32>
    %123 = vector.shape_cast %122 : vector<1x1x32xf32> to vector<1x32xf32>
    %124 = vector.broadcast %123 : vector<1x32xf32> to vector<16x32xf32>
    %125 = arith.addf %121, %124 : vector<16x32xf32>
    %c3 = arith.constant 3 : index
    %c0_76 = arith.constant 0 : index
    %c0_77 = arith.constant 0 : index
    %126 = vector.load %arg5[%c3, %c0_76, %c0_77] : memref<6x32x32xf32, #tpu.memory_space<vmem>>, vector<1x32x32xf32>
    %127 = vector.shape_cast %126 : vector<1x32x32xf32> to vector<32x32xf32>
    %cst_78 = arith.constant dense<0.000000e+00> : vector<16x32xf32>
    %128 = tpu.matmul %125, %127, %cst_78 {dimension_numbers = #tpu.dot_dimension_numbers<[1], [0], [0], [1], [0, 0, 1, 1], [], []>} : vector<16x32xf32>, vector<32x32xf32>, vector<16x32xf32> -> vector<16x32xf32>
    %c3_79 = arith.constant 3 : index
    %c0_80 = arith.constant 0 : index
    %c0_81 = arith.constant 0 : index
    %129 = vector.load %arg6[%c3_79, %c0_80, %c0_81] : memref<6x1x32xf32, #tpu.memory_space<vmem>>, vector<1x1x32xf32>
    %130 = vector.shape_cast %129 : vector<1x1x32xf32> to vector<1x32xf32>
    %cst_82 = arith.constant dense<0.000000e+00> : vector<1x16xf32>
    %131 = tpu.matmul %130, %125, %cst_82 {dimension_numbers = #tpu.dot_dimension_numbers<[1], [1], [0], [0], [0, 0, 1, 0], [], []>} : vector<1x32xf32>, vector<16x32xf32>, vector<1x16xf32> -> vector<1x16xf32>
    %c3_83 = arith.constant 3 : index
    %c0_84 = arith.constant 0 : index
    %c0_85 = arith.constant 0 : index
    %132 = vector.load %arg7[%c3_83, %c0_84, %c0_85] : memref<6x32x1xf32, #tpu.memory_space<vmem>>, vector<1x32x1xf32>
    %133 = vector.shape_cast %132 : vector<1x32x1xf32> to vector<32x1xf32>
    %cst_86 = arith.constant dense<0.000000e+00> : vector<16x1xf32>
    %134 = tpu.matmul %125, %133, %cst_86 {dimension_numbers = #tpu.dot_dimension_numbers<[1], [0], [0], [1], [0, 0, 1, 1], [], []>} : vector<16x32xf32>, vector<32x1xf32>, vector<16x1xf32> -> vector<16x1xf32>
    %135 = vector.broadcast %134 : vector<16x1xf32> to vector<16x16xf32>
    %136 = vector.broadcast %131 : vector<1x16xf32> to vector<16x16xf32>
    %137 = arith.addf %135, %136 : vector<16x16xf32>
    %cst_87 = arith.constant 0.000000e+00 : f32
    %138 = vector.broadcast %cst_87 : f32 to vector<16x16xf32>
    %139 = arith.cmpf ogt, %137, %138 : vector<16x16xf32>
    %cst_88 = arith.constant 2.000000e-01 : f32
    %140 = vector.broadcast %cst_88 : f32 to vector<16x16xf32>
    %141 = arith.mulf %140, %137 : vector<16x16xf32>
    %142 = arith.select %139, %137, %141 : vector<16x16xi1>, vector<16x16xf32>
    %cst_89 = arith.constant 0.000000e+00 : f32
    %143 = vector.broadcast %cst_89 : f32 to vector<16x16xf32>
    %144 = arith.cmpf ogt, %8, %143 : vector<16x16xf32>
    %cst_90 = arith.constant -1.000000e+30 : f32
    %145 = vector.broadcast %cst_90 : f32 to vector<16x16xf32>
    %146 = arith.select %144, %142, %145 : vector<16x16xi1>, vector<16x16xf32>
    %cst_91 = arith.constant dense<0xFF800000> : vector<16xf32>
    %147 = vector.multi_reduction <maximumf>, %146, %cst_91 [1] : vector<16x16xf32> to vector<16xf32>
    %148 = vector.shape_cast %147 : vector<16xf32> to vector<16x1xf32>
    %149 = vector.broadcast %148 : vector<16x1xf32> to vector<16x16xf32>
    %150 = arith.subf %146, %149 : vector<16x16xf32>
    %151 = math.exp %150 : vector<16x16xf32>
    %152 = arith.mulf %151, %8 : vector<16x16xf32>
    %cst_92 = arith.constant dense<0.000000e+00> : vector<16xf32>
    %153 = vector.multi_reduction <add>, %152, %cst_92 [1] : vector<16x16xf32> to vector<16xf32>
    %154 = vector.shape_cast %153 : vector<16xf32> to vector<16x1xf32>
    %cst_93 = arith.constant 1.000000e-16 : f32
    %155 = vector.broadcast %cst_93 : f32 to vector<16x1xf32>
    %156 = arith.addf %154, %155 : vector<16x1xf32>
    %157 = tpu.reciprocal %156 : vector<16x1xf32> -> vector<16x1xf32>
    %cst_94 = arith.constant dense<0.000000e+00> : vector<16x32xf32>
    %158 = tpu.matmul %152, %128, %cst_94 {dimension_numbers = #tpu.dot_dimension_numbers<[1], [0], [0], [1], [0, 0, 1, 1], [], []>} : vector<16x16xf32>, vector<16x32xf32>, vector<16x32xf32> -> vector<16x32xf32>
    %159 = vector.broadcast %157 : vector<16x1xf32> to vector<16x32xf32>
    %160 = arith.mulf %158, %159 : vector<16x32xf32>
    %c3_95 = arith.constant 3 : index
    %c0_96 = arith.constant 0 : index
    %c0_97 = arith.constant 0 : index
    %161 = vector.load %arg8[%c3_95, %c0_96, %c0_97] : memref<6x1x32xf32, #tpu.memory_space<vmem>>, vector<1x1x32xf32>
    %162 = vector.shape_cast %161 : vector<1x1x32xf32> to vector<1x32xf32>
    %163 = vector.broadcast %162 : vector<1x32xf32> to vector<16x32xf32>
    %164 = arith.addf %160, %163 : vector<16x32xf32>
    %c4 = arith.constant 4 : index
    %c0_98 = arith.constant 0 : index
    %c0_99 = arith.constant 0 : index
    %165 = vector.load %arg5[%c4, %c0_98, %c0_99] : memref<6x32x32xf32, #tpu.memory_space<vmem>>, vector<1x32x32xf32>
    %166 = vector.shape_cast %165 : vector<1x32x32xf32> to vector<32x32xf32>
    %cst_100 = arith.constant dense<0.000000e+00> : vector<16x32xf32>
    %167 = tpu.matmul %164, %166, %cst_100 {dimension_numbers = #tpu.dot_dimension_numbers<[1], [0], [0], [1], [0, 0, 1, 1], [], []>} : vector<16x32xf32>, vector<32x32xf32>, vector<16x32xf32> -> vector<16x32xf32>
    %c4_101 = arith.constant 4 : index
    %c0_102 = arith.constant 0 : index
    %c0_103 = arith.constant 0 : index
    %168 = vector.load %arg6[%c4_101, %c0_102, %c0_103] : memref<6x1x32xf32, #tpu.memory_space<vmem>>, vector<1x1x32xf32>
    %169 = vector.shape_cast %168 : vector<1x1x32xf32> to vector<1x32xf32>
    %cst_104 = arith.constant dense<0.000000e+00> : vector<1x16xf32>
    %170 = tpu.matmul %169, %164, %cst_104 {dimension_numbers = #tpu.dot_dimension_numbers<[1], [1], [0], [0], [0, 0, 1, 0], [], []>} : vector<1x32xf32>, vector<16x32xf32>, vector<1x16xf32> -> vector<1x16xf32>
    %c4_105 = arith.constant 4 : index
    %c0_106 = arith.constant 0 : index
    %c0_107 = arith.constant 0 : index
    %171 = vector.load %arg7[%c4_105, %c0_106, %c0_107] : memref<6x32x1xf32, #tpu.memory_space<vmem>>, vector<1x32x1xf32>
    %172 = vector.shape_cast %171 : vector<1x32x1xf32> to vector<32x1xf32>
    %cst_108 = arith.constant dense<0.000000e+00> : vector<16x1xf32>
    %173 = tpu.matmul %164, %172, %cst_108 {dimension_numbers = #tpu.dot_dimension_numbers<[1], [0], [0], [1], [0, 0, 1, 1], [], []>} : vector<16x32xf32>, vector<32x1xf32>, vector<16x1xf32> -> vector<16x1xf32>
    %174 = vector.broadcast %173 : vector<16x1xf32> to vector<16x16xf32>
    %175 = vector.broadcast %170 : vector<1x16xf32> to vector<16x16xf32>
    %176 = arith.addf %174, %175 : vector<16x16xf32>
    %cst_109 = arith.constant 0.000000e+00 : f32
    %177 = vector.broadcast %cst_109 : f32 to vector<16x16xf32>
    %178 = arith.cmpf ogt, %176, %177 : vector<16x16xf32>
    %cst_110 = arith.constant 2.000000e-01 : f32
    %179 = vector.broadcast %cst_110 : f32 to vector<16x16xf32>
    %180 = arith.mulf %179, %176 : vector<16x16xf32>
    %181 = arith.select %178, %176, %180 : vector<16x16xi1>, vector<16x16xf32>
    %cst_111 = arith.constant 0.000000e+00 : f32
    %182 = vector.broadcast %cst_111 : f32 to vector<16x16xf32>
    %183 = arith.cmpf ogt, %8, %182 : vector<16x16xf32>
    %cst_112 = arith.constant -1.000000e+30 : f32
    %184 = vector.broadcast %cst_112 : f32 to vector<16x16xf32>
    %185 = arith.select %183, %181, %184 : vector<16x16xi1>, vector<16x16xf32>
    %cst_113 = arith.constant dense<0xFF800000> : vector<16xf32>
    %186 = vector.multi_reduction <maximumf>, %185, %cst_113 [1] : vector<16x16xf32> to vector<16xf32>
    %187 = vector.shape_cast %186 : vector<16xf32> to vector<16x1xf32>
    %188 = vector.broadcast %187 : vector<16x1xf32> to vector<16x16xf32>
    %189 = arith.subf %185, %188 : vector<16x16xf32>
    %190 = math.exp %189 : vector<16x16xf32>
    %191 = arith.mulf %190, %8 : vector<16x16xf32>
    %cst_114 = arith.constant dense<0.000000e+00> : vector<16xf32>
    %192 = vector.multi_reduction <add>, %191, %cst_114 [1] : vector<16x16xf32> to vector<16xf32>
    %193 = vector.shape_cast %192 : vector<16xf32> to vector<16x1xf32>
    %cst_115 = arith.constant 1.000000e-16 : f32
    %194 = vector.broadcast %cst_115 : f32 to vector<16x1xf32>
    %195 = arith.addf %193, %194 : vector<16x1xf32>
    %196 = tpu.reciprocal %195 : vector<16x1xf32> -> vector<16x1xf32>
    %cst_116 = arith.constant dense<0.000000e+00> : vector<16x32xf32>
    %197 = tpu.matmul %191, %167, %cst_116 {dimension_numbers = #tpu.dot_dimension_numbers<[1], [0], [0], [1], [0, 0, 1, 1], [], []>} : vector<16x16xf32>, vector<16x32xf32>, vector<16x32xf32> -> vector<16x32xf32>
    %198 = vector.broadcast %196 : vector<16x1xf32> to vector<16x32xf32>
    %199 = arith.mulf %197, %198 : vector<16x32xf32>
    %c4_117 = arith.constant 4 : index
    %c0_118 = arith.constant 0 : index
    %c0_119 = arith.constant 0 : index
    %200 = vector.load %arg8[%c4_117, %c0_118, %c0_119] : memref<6x1x32xf32, #tpu.memory_space<vmem>>, vector<1x1x32xf32>
    %201 = vector.shape_cast %200 : vector<1x1x32xf32> to vector<1x32xf32>
    %202 = vector.broadcast %201 : vector<1x32xf32> to vector<16x32xf32>
    %203 = arith.addf %199, %202 : vector<16x32xf32>
    %c5 = arith.constant 5 : index
    %c0_120 = arith.constant 0 : index
    %c0_121 = arith.constant 0 : index
    %204 = vector.load %arg5[%c5, %c0_120, %c0_121] : memref<6x32x32xf32, #tpu.memory_space<vmem>>, vector<1x32x32xf32>
    %205 = vector.shape_cast %204 : vector<1x32x32xf32> to vector<32x32xf32>
    %cst_122 = arith.constant dense<0.000000e+00> : vector<16x32xf32>
    %206 = tpu.matmul %203, %205, %cst_122 {dimension_numbers = #tpu.dot_dimension_numbers<[1], [0], [0], [1], [0, 0, 1, 1], [], []>} : vector<16x32xf32>, vector<32x32xf32>, vector<16x32xf32> -> vector<16x32xf32>
    %c5_123 = arith.constant 5 : index
    %c0_124 = arith.constant 0 : index
    %c0_125 = arith.constant 0 : index
    %207 = vector.load %arg6[%c5_123, %c0_124, %c0_125] : memref<6x1x32xf32, #tpu.memory_space<vmem>>, vector<1x1x32xf32>
    %208 = vector.shape_cast %207 : vector<1x1x32xf32> to vector<1x32xf32>
    %cst_126 = arith.constant dense<0.000000e+00> : vector<1x16xf32>
    %209 = tpu.matmul %208, %203, %cst_126 {dimension_numbers = #tpu.dot_dimension_numbers<[1], [1], [0], [0], [0, 0, 1, 0], [], []>} : vector<1x32xf32>, vector<16x32xf32>, vector<1x16xf32> -> vector<1x16xf32>
    %c5_127 = arith.constant 5 : index
    %c0_128 = arith.constant 0 : index
    %c0_129 = arith.constant 0 : index
    %210 = vector.load %arg7[%c5_127, %c0_128, %c0_129] : memref<6x32x1xf32, #tpu.memory_space<vmem>>, vector<1x32x1xf32>
    %211 = vector.shape_cast %210 : vector<1x32x1xf32> to vector<32x1xf32>
    %cst_130 = arith.constant dense<0.000000e+00> : vector<16x1xf32>
    %212 = tpu.matmul %203, %211, %cst_130 {dimension_numbers = #tpu.dot_dimension_numbers<[1], [0], [0], [1], [0, 0, 1, 1], [], []>} : vector<16x32xf32>, vector<32x1xf32>, vector<16x1xf32> -> vector<16x1xf32>
    %213 = vector.broadcast %212 : vector<16x1xf32> to vector<16x16xf32>
    %214 = vector.broadcast %209 : vector<1x16xf32> to vector<16x16xf32>
    %215 = arith.addf %213, %214 : vector<16x16xf32>
    %cst_131 = arith.constant 0.000000e+00 : f32
    %216 = vector.broadcast %cst_131 : f32 to vector<16x16xf32>
    %217 = arith.cmpf ogt, %215, %216 : vector<16x16xf32>
    %cst_132 = arith.constant 2.000000e-01 : f32
    %218 = vector.broadcast %cst_132 : f32 to vector<16x16xf32>
    %219 = arith.mulf %218, %215 : vector<16x16xf32>
    %220 = arith.select %217, %215, %219 : vector<16x16xi1>, vector<16x16xf32>
    %cst_133 = arith.constant 0.000000e+00 : f32
    %221 = vector.broadcast %cst_133 : f32 to vector<16x16xf32>
    %222 = arith.cmpf ogt, %8, %221 : vector<16x16xf32>
    %cst_134 = arith.constant -1.000000e+30 : f32
    %223 = vector.broadcast %cst_134 : f32 to vector<16x16xf32>
    %224 = arith.select %222, %220, %223 : vector<16x16xi1>, vector<16x16xf32>
    %cst_135 = arith.constant dense<0xFF800000> : vector<16xf32>
    %225 = vector.multi_reduction <maximumf>, %224, %cst_135 [1] : vector<16x16xf32> to vector<16xf32>
    %226 = vector.shape_cast %225 : vector<16xf32> to vector<16x1xf32>
    %227 = vector.broadcast %226 : vector<16x1xf32> to vector<16x16xf32>
    %228 = arith.subf %224, %227 : vector<16x16xf32>
    %229 = math.exp %228 : vector<16x16xf32>
    %230 = arith.mulf %229, %8 : vector<16x16xf32>
    %cst_136 = arith.constant dense<0.000000e+00> : vector<16xf32>
    %231 = vector.multi_reduction <add>, %230, %cst_136 [1] : vector<16x16xf32> to vector<16xf32>
    %232 = vector.shape_cast %231 : vector<16xf32> to vector<16x1xf32>
    %cst_137 = arith.constant 1.000000e-16 : f32
    %233 = vector.broadcast %cst_137 : f32 to vector<16x1xf32>
    %234 = arith.addf %232, %233 : vector<16x1xf32>
    %235 = tpu.reciprocal %234 : vector<16x1xf32> -> vector<16x1xf32>
    %cst_138 = arith.constant dense<0.000000e+00> : vector<16x32xf32>
    %236 = tpu.matmul %230, %206, %cst_138 {dimension_numbers = #tpu.dot_dimension_numbers<[1], [0], [0], [1], [0, 0, 1, 1], [], []>} : vector<16x16xf32>, vector<16x32xf32>, vector<16x32xf32> -> vector<16x32xf32>
    %237 = vector.broadcast %235 : vector<16x1xf32> to vector<16x32xf32>
    %238 = arith.mulf %236, %237 : vector<16x32xf32>
    %c5_139 = arith.constant 5 : index
    %c0_140 = arith.constant 0 : index
    %c0_141 = arith.constant 0 : index
    %239 = vector.load %arg8[%c5_139, %c0_140, %c0_141] : memref<6x1x32xf32, #tpu.memory_space<vmem>>, vector<1x1x32xf32>
    %240 = vector.shape_cast %239 : vector<1x1x32xf32> to vector<1x32xf32>
    %241 = vector.broadcast %240 : vector<1x32xf32> to vector<16x32xf32>
    %242 = arith.addf %238, %241 : vector<16x32xf32>
    %cst_142 = arith.constant 0.000000e+00 : f32
    %243 = vector.broadcast %cst_142 : f32 to vector<16x32xf32>
    %244 = arith.maximumf %242, %243 : vector<16x32xf32>
    %c0_143 = arith.constant 0 : index
    %c0_144 = arith.constant 0 : index
    %245 = vector.load %arg9[%c0_143, %c0_144] : memref<32x128xf32, #tpu.memory_space<vmem>>, vector<32x128xf32>
    %cst_145 = arith.constant dense<0.000000e+00> : vector<16x128xf32>
    %246 = tpu.matmul %244, %245, %cst_145 {dimension_numbers = #tpu.dot_dimension_numbers<[1], [0], [0], [1], [0, 0, 1, 1], [], []>} : vector<16x32xf32>, vector<32x128xf32>, vector<16x128xf32> -> vector<16x128xf32>
    %c0_146 = arith.constant 0 : index
    %c0_147 = arith.constant 0 : index
    %247 = vector.load %arg10[%c0_146, %c0_147] : memref<1x128xf32, #tpu.memory_space<vmem>>, vector<1x128xf32>
    %248 = vector.broadcast %247 : vector<1x128xf32> to vector<16x128xf32>
    %249 = arith.addf %246, %248 : vector<16x128xf32>
    %c0_148 = arith.constant 0 : index
    %c0_149 = arith.constant 0 : index
    %c0_150 = arith.constant 0 : index
    %250 = vector.load %arg11[%c0_148, %c0_149, %c0_150] : memref<1x16x128xf32, #tpu.memory_space<vmem>>, vector<1x16x128xf32>
    %251 = vector.shape_cast %250 : vector<1x16x128xf32> to vector<16x128xf32>
    %252 = vector.shape_cast %249 : vector<16x128xf32> to vector<1x16x128xf32>
    tpu.vector_store %arg11[%c0_148, %c0_149, %c0_150], %252 {strides = array<i32>} : memref<1x16x128xf32, #tpu.memory_space<vmem>>, vector<1x16x128xf32>,
    return
  }
  func.func @transform_0(%arg0: i32) -> (i32, i32, i32) {
    %c0_i32 = arith.constant 0 : i32
    %c0_i32_0 = arith.constant 0 : i32
    %c0_i32_1 = arith.constant 0 : i32
    return %arg0, %c0_i32, %c0_i32_0 : i32, i32, i32
  }
  func.func @transform_1(%arg0: i32) -> (i32, i32, i32) {
    %c0_i32 = arith.constant 0 : i32
    %c0_i32_0 = arith.constant 0 : i32
    %c0_i32_1 = arith.constant 0 : i32
    return %arg0, %c0_i32, %c0_i32_0 : i32, i32, i32
  }
  func.func @transform_2(%arg0: i32) -> (i32, i32) {
    %c0_i32 = arith.constant 0 : i32
    %c0_i32_0 = arith.constant 0 : i32
    %c0_i32_1 = arith.constant 0 : i32
    return %c0_i32, %c0_i32_0 : i32, i32
  }
  func.func @transform_3(%arg0: i32) -> (i32, i32) {
    %c0_i32 = arith.constant 0 : i32
    %c0_i32_0 = arith.constant 0 : i32
    %c0_i32_1 = arith.constant 0 : i32
    return %c0_i32, %c0_i32_0 : i32, i32
  }
  func.func @transform_4(%arg0: i32) -> (i32, i32, i32) {
    %c0_i32 = arith.constant 0 : i32
    %c0_i32_0 = arith.constant 0 : i32
    %c0_i32_1 = arith.constant 0 : i32
    %c0_i32_2 = arith.constant 0 : i32
    return %c0_i32, %c0_i32_0, %c0_i32_1 : i32, i32, i32
  }
  func.func @transform_5(%arg0: i32) -> (i32, i32, i32) {
    %c0_i32 = arith.constant 0 : i32
    %c0_i32_0 = arith.constant 0 : i32
    %c0_i32_1 = arith.constant 0 : i32
    %c0_i32_2 = arith.constant 0 : i32
    return %c0_i32, %c0_i32_0, %c0_i32_1 : i32, i32, i32
  }
  func.func @transform_6(%arg0: i32) -> (i32, i32, i32) {
    %c0_i32 = arith.constant 0 : i32
    %c0_i32_0 = arith.constant 0 : i32
    %c0_i32_1 = arith.constant 0 : i32
    %c0_i32_2 = arith.constant 0 : i32
    return %c0_i32, %c0_i32_0, %c0_i32_1 : i32, i32, i32
  }
  func.func @transform_7(%arg0: i32) -> (i32, i32, i32) {
    %c0_i32 = arith.constant 0 : i32
    %c0_i32_0 = arith.constant 0 : i32
    %c0_i32_1 = arith.constant 0 : i32
    %c0_i32_2 = arith.constant 0 : i32
    return %c0_i32, %c0_i32_0, %c0_i32_1 : i32, i32, i32
  }
  func.func @transform_8(%arg0: i32) -> (i32, i32) {
    %c0_i32 = arith.constant 0 : i32
    %c0_i32_0 = arith.constant 0 : i32
    %c0_i32_1 = arith.constant 0 : i32
    return %c0_i32, %c0_i32_0 : i32, i32
  }
  func.func @transform_9(%arg0: i32) -> (i32, i32) {
    %c0_i32 = arith.constant 0 : i32
    %c0_i32_0 = arith.constant 0 : i32
    %c0_i32_1 = arith.constant 0 : i32
    return %c0_i32, %c0_i32_0 : i32, i32
  }
  func.func @transform_10(%arg0: i32) -> (i32, i32, i32) {
    %c0_i32 = arith.constant 0 : i32
    %c0_i32_0 = arith.constant 0 : i32
    %c0_i32_1 = arith.constant 0 : i32
    return %arg0, %c0_i32, %c0_i32_0 : i32, i32, i32
  }
}

</mosaic_0001>

<llo_original>
// kernel: tpu_custom_call.1
$region0: #{tpu_custom_call.1}
  #allocation0 [shape = 'u32[]', space=smem, size = 0x4, offset = 0x4, fixed_abs, tag = 'smem constant byte address 0x4 - core index']
  #allocation1 [shape = 'u32[144,128]{1,0:T(1,128)}', space=vmem, size = 0x12000, scoped, tag = 'internal scratch']
  %s0 = inlined_call_operand.hbm [shape: f32[2,16,32], index: 0, kind: input, shape index: {}]
  %s1 = inlined_call_operand.hbm [shape: f32[2,16,16], index: 1, kind: input, shape index: {}]
  %s2 = inlined_call_operand.hbm [shape: f32[32,32], index: 2, kind: input, shape index: {}]
  %s3 = inlined_call_operand.hbm [shape: f32[1,32], index: 3, kind: input, shape index: {}]
  %s4 = inlined_call_operand.vmem [shape: f32[6,32,32], index: 4, kind: input, shape index: {}]
  %s5 = inlined_call_operand.hbm [shape: f32[6,1,32], index: 5, kind: input, shape index: {}]
  %s6 = inlined_call_operand.vmem [shape: f32[6,32,1], index: 6, kind: input, shape index: {}]
  %s7 = inlined_call_operand.hbm [shape: f32[6,1,32], index: 7, kind: input, shape index: {}]
  %s8 = inlined_call_operand.vmem [shape: f32[32,128], index: 8, kind: input, shape index: {}]
  %s9 = inlined_call_operand.vmem [shape: f32[1,128], index: 9, kind: input, shape index: {}]
  %s10 = inlined_call_operand.hbm [shape: f32[2,16,128], index: 10, kind: output, shape index: {}]
  %s11 = sld [smem:[#allocation0]]
  $region97: #{tpu_custom_call.1} parent=0
    _
  %s13 = ssub.s32 1, %s11
  %s14 = scalar_select 0, %s13, %s11
  $region1: #{tpu_custom_call.1} parent=0
    #allocation2 [shape = 'u8[16384]{0}', space=vmem, size = 0x4000, scoped, tag = 'input window, operand 0']
    #allocation3 [shape = 's32[2]{0}', space=sflag, size = 0x8, scoped, tag = 'scoped memory for tpu_custom_call.1']
    #allocation4 [shape = 's32[2]{0}', space=sflag, size = 0x8, scoped, tag = 'scoped memory for tpu_custom_call.1']
    #allocation5 [shape = 'u8[16384]{0}', space=vmem, size = 0x4000, scoped, tag = 'input window, operand 1']
    #allocation6 [shape = 's32[2]{0}', space=sflag, size = 0x8, scoped, tag = 'scoped memory for tpu_custom_call.1']
    #allocation7 [shape = 'u8[16384]{0}', space=vmem, size = 0x4000, scoped, tag = 'input window, operand 2, single buffered']
    #allocation8 [shape = 'u8[512]{0}', space=vmem, size = 0x400, scoped, tag = 'input window, operand 3, single buffered']
    #allocation9 [shape = 's32[1]{0}', space=sflag, size = 0x4, scoped, tag = 'scoped memory for tpu_custom_call.1']
    #allocation10 [shape = 'u8[3072]{0}', space=vmem, size = 0xc00, scoped, tag = 'input window, operand 5, single buffered']
    #allocation11 [shape = 'u8[3072]{0}', space=vmem, size = 0xc00, scoped, tag = 'input window, operand 7, single buffered']
    #allocation12 [shape = 's32[1]{0}', space=sflag, size = 0x4, scoped, tag = 'scoped memory for tpu_custom_call.1']
    #allocation13 [shape = 'u8[16384]{0}', space=vmem, size = 0x4000, scoped, tag = 'output window, operand 0']
    %15 = vsyncpa [#allocation3], 0
    %s16 = scalar_lea.sflag [#allocation3], 1
    %17 = vsyncpa %s16, 0
    %18 = vsyncpa [#allocation6], 0
    %s19 = scalar_lea.sflag [#allocation6], 1
    %20 = vsyncpa %s19, 0
    %21 = vsyncpa [#allocation9], 0
    %22 = vsyncpa [#allocation12], 0
    %23 = vsyncpa [#allocation4], 0
    %s24 = scalar_lea.sflag [#allocation4], 1
    %25 = vsyncpa %s24, 0
    loop: start=0, step=1, limit=4
    $region2: #{tpu_custom_call.1} parent=1 // loop_pre_header
      _
    $region3: #{tpu_custom_call.1} parent=1 // loop_header
      %s27 = sphi 0, %s31
      %p28 = scmp.ge.s32.totalorder %s27, 4
      %s37 = sphi 0, %s39
      %s40 = sphi 0, %s37
      %s41 = sphi 0, %s40
      %s57 = sphi 0, %s41
      %s63 = sphi 0, %s65
      %s66 = sphi 0, %s63
      %s67 = sphi 0, %s66
      %s83 = sphi 0, %s67
      %s87 = sphi 0, %s87
      %s89 = sphi 0, %s87
      %s90 = sphi 0, %s89
      %s104 = sphi 0, %s90
      %s108 = sphi 0, %s108
      %s110 = sphi 0, %s108
      %s111 = sphi 0, %s110
      %s125 = sphi 0, %s111
      %s129 = sphi 0, %s129
      %s131 = sphi 0, %s129
      %s132 = sphi 0, %s131
      %s146 = sphi 0, %s132
      %s150 = sphi 0, %s150
      %s152 = sphi 0, %s150
      %s153 = sphi 0, %s152
      %s167 = sphi 0, %s153
      %s171 = sphi 0, %s171
      %s173 = sphi 0, %s171
      %s174 = sphi 0, %s173
      %s188 = sphi 0, %s174
      %s192 = sphi 0, %s192
      %s194 = sphi 0, %s192
      %s195 = sphi 0, %s194
      %s209 = sphi 0, %s195
      %s213 = sphi 0, %s213
      %s215 = sphi 0, %s213
      %s216 = sphi 0, %s215
      %s230 = sphi 0, %s216
      %s234 = sphi 0, %s234
      %s236 = sphi 0, %s234
      %s237 = sphi 0, %s236
      %s251 = sphi 0, %s237
      %s257 = sphi 0, %s259
      %s260 = sphi 0, %s257
      %s261 = sphi 0, %s260
      %s277 = sphi 0, %s261
    $region4: #{tpu_custom_call.1} parent=1 // loop_header_branch
      %30 = sbr.rel (%p28) target = $region8
    $region5: #{tpu_custom_call.1} parent=1 // loop_body
      %s32 = ssub.s32 %s27, 1
      %s33 = ssub.s32 %s27, 2
      %s34 = sadd.s32 %s27, 1
      %s35 = ssub.s32 %s27, %s34
      %p36 = scmp.eq.s32.totalorder %s35, 0
      %s38 = sadd.s32 %s37, 1
      %s39 = scalar_select %p36, %s37, %s38
      %p42 = pneg %p36
      %p43 = scmp.eq.s32.totalorder %s27, 1
      %p44 = por %p42, %p43
      %p45 = scmp.ne.s32.totalorder %s37, %s40
      %p46 = scmp.eq.s32.totalorder %s27, 0
      %p47 = por %p45, %p46
      %p48 = scmp.ne.s32.totalorder %s37, %s40
      %p49 = scmp.eq.s32.totalorder %s32, 1
      %p50 = por %p48, %p49
      %p51 = scmp.ne.s32.totalorder %s40, %s41
      %p52 = scmp.eq.s32.totalorder %s32, 0
      %p53 = por %p51, %p52
      %p54 = scmp.ne.s32.totalorder %s40, %s41
      %p55 = scmp.eq.s32.totalorder %s33, 1
      %p56 = por %p54, %p55
      %p58 = scmp.ne.s32.totalorder %s41, %s57
      %p59 = scmp.eq.s32.totalorder %s33, 0
      %p60 = por %p58, %p59
      %s61 = ssub.s32 %s27, %s34
      %p62 = scmp.eq.s32.totalorder %s61, 0
      %s64 = sadd.s32 %s63, 1
      %s65 = scalar_select %p62, %s63, %s64
      %p68 = pneg %p62
      %p69 = scmp.eq.s32.totalorder %s27, 1
      %p70 = por %p68, %p69
      %p71 = scmp.ne.s32.totalorder %s63, %s66
      %p72 = scmp.eq.s32.totalorder %s27, 0
      %p73 = por %p71, %p72
      %p74 = scmp.ne.s32.totalorder %s63, %s66
      %p75 = scmp.eq.s32.totalorder %s32, 1
      %p76 = por %p74, %p75
      %p77 = scmp.ne.s32.totalorder %s66, %s67
      %p78 = scmp.eq.s32.totalorder %s32, 0
      %p79 = por %p77, %p78
      %p80 = scmp.ne.s32.totalorder %s66, %s67
      %p81 = scmp.eq.s32.totalorder %s33, 1
      %p82 = por %p80, %p81
      %p84 = scmp.ne.s32.totalorder %s67, %s83
      %p85 = scmp.eq.s32.totalorder %s33, 0
      %p86 = por %p84, %p85
      %s88 = sadd.s32 %s87, 1
      %p91 = scmp.eq.s32.totalorder %s27, 1
      %p92 = scmp.ne.s32.totalorder %s87, %s89
      %p93 = scmp.eq.s32.totalorder %s27, 0
      %p94 = por %p92, %p93
      %p95 = scmp.ne.s32.totalorder %s87, %s89
      %p96 = scmp.eq.s32.totalorder %s32, 1
      %p97 = por %p95, %p96
      %p98 = scmp.ne.s32.totalorder %s89, %s90
      %p99 = scmp.eq.s32.totalorder %s32, 0
      %p100 = por %p98, %p99
      %p101 = scmp.ne.s32.totalorder %s89, %s90
      %p102 = scmp.eq.s32.totalorder %s33, 1
      %p103 = por %p101, %p102
      %p105 = scmp.ne.s32.totalorder %s90, %s104
      %p106 = scmp.eq.s32.totalorder %s33, 0
      %p107 = por %p105, %p106
      %s109 = sadd.s32 %s108, 1
      %p112 = scmp.eq.s32.totalorder %s27, 1
      %p113 = scmp.ne.s32.totalorder %s108, %s110
      %p114 = scmp.eq.s32.totalorder %s27, 0
      %p115 = por %p113, %p114
      %p116 = scmp.ne.s32.totalorder %s108, %s110
      %p117 = scmp.eq.s32.totalorder %s32, 1
      %p118 = por %p116, %p117
      %p119 = scmp.ne.s32.totalorder %s110, %s111
      %p120 = scmp.eq.s32.totalorder %s32, 0
      %p121 = por %p119, %p120
      %p122 = scmp.ne.s32.totalorder %s110, %s111
      %p123 = scmp.eq.s32.totalorder %s33, 1
      %p124 = por %p122, %p123
      %p126 = scmp.ne.s32.totalorder %s111, %s125
      %p127 = scmp.eq.s32.totalorder %s33, 0
      %p128 = por %p126, %p127
      %s130 = sadd.s32 %s129, 1
      %p133 = scmp.eq.s32.totalorder %s27, 1
      %p134 = scmp.ne.s32.totalorder %s129, %s131
      %p135 = scmp.eq.s32.totalorder %s27, 0
      %p136 = por %p134, %p135
      %p137 = scmp.ne.s32.totalorder %s129, %s131
      %p138 = scmp.eq.s32.totalorder %s32, 1
      %p139 = por %p137, %p138
      %p140 = scmp.ne.s32.totalorder %s131, %s132
      %p141 = scmp.eq.s32.totalorder %s32, 0
      %p142 = por %p140, %p141
      %p143 = scmp.ne.s32.totalorder %s131, %s132
      %p144 = scmp.eq.s32.totalorder %s33, 1
      %p145 = por %p143, %p144
      %p147 = scmp.ne.s32.totalorder %s132, %s146
      %p148 = scmp.eq.s32.totalorder %s33, 0
      %p149 = por %p147, %p148
      %s151 = sadd.s32 %s150, 1
      %p154 = scmp.eq.s32.totalorder %s27, 1
      %p155 = scmp.ne.s32.totalorder %s150, %s152
      %p156 = scmp.eq.s32.totalorder %s27, 0
      %p157 = por %p155, %p156
      %p158 = scmp.ne.s32.totalorder %s150, %s152
      %p159 = scmp.eq.s32.totalorder %s32, 1
      %p160 = por %p158, %p159
      %p161 = scmp.ne.s32.totalorder %s152, %s153
      %p162 = scmp.eq.s32.totalorder %s32, 0
      %p163 = por %p161, %p162
      %p164 = scmp.ne.s32.totalorder %s152, %s153
      %p165 = scmp.eq.s32.totalorder %s33, 1
      %p166 = por %p164, %p165
      %p168 = scmp.ne.s32.totalorder %s153, %s167
      %p169 = scmp.eq.s32.totalorder %s33, 0
      %p170 = por %p168, %p169
      %s172 = sadd.s32 %s171, 1
      %p175 = scmp.eq.s32.totalorder %s27, 1
      %p176 = scmp.ne.s32.totalorder %s171, %s173
      %p177 = scmp.eq.s32.totalorder %s27, 0
      %p178 = por %p176, %p177
      %p179 = scmp.ne.s32.totalorder %s171, %s173
      %p180 = scmp.eq.s32.totalorder %s32, 1
      %p181 = por %p179, %p180
      %p182 = scmp.ne.s32.totalorder %s173, %s174
      %p183 = scmp.eq.s32.totalorder %s32, 0
      %p184 = por %p182, %p183
      %p185 = scmp.ne.s32.totalorder %s173, %s174
      %p186 = scmp.eq.s32.totalorder %s33, 1
      %p187 = por %p185, %p186
      %p189 = scmp.ne.s32.totalorder %s174, %s188
      %p190 = scmp.eq.s32.totalorder %s33, 0
      %p191 = por %p189, %p190
      %s193 = sadd.s32 %s192, 1
      %p196 = scmp.eq.s32.totalorder %s27, 1
      %p197 = scmp.ne.s32.totalorder %s192, %s194
      %p198 = scmp.eq.s32.totalorder %s27, 0
      %p199 = por %p197, %p198
      %p200 = scmp.ne.s32.totalorder %s192, %s194
      %p201 = scmp.eq.s32.totalorder %s32, 1
      %p202 = por %p200, %p201
      %p203 = scmp.ne.s32.totalorder %s194, %s195
      %p204 = scmp.eq.s32.totalorder %s32, 0
      %p205 = por %p203, %p204
      %p206 = scmp.ne.s32.totalorder %s194, %s195
      %p207 = scmp.eq.s32.totalorder %s33, 1
      %p208 = por %p206, %p207
      %p210 = scmp.ne.s32.totalorder %s195, %s209
      %p211 = scmp.eq.s32.totalorder %s33, 0
      %p212 = por %p210, %p211
      %s214 = sadd.s32 %s213, 1
      %p217 = scmp.eq.s32.totalorder %s27, 1
      %p218 = scmp.ne.s32.totalorder %s213, %s215
      %p219 = scmp.eq.s32.totalorder %s27, 0
      %p220 = por %p218, %p219
      %p221 = scmp.ne.s32.totalorder %s213, %s215
      %p222 = scmp.eq.s32.totalorder %s32, 1
      %p223 = por %p221, %p222
      %p224 = scmp.ne.s32.totalorder %s215, %s216
      %p225 = scmp.eq.s32.totalorder %s32, 0
      %p226 = por %p224, %p225
      %p227 = scmp.ne.s32.totalorder %s215, %s216
      %p228 = scmp.eq.s32.totalorder %s33, 1
      %p229 = por %p227, %p228
      %p231 = scmp.ne.s32.totalorder %s216, %s230
      %p232 = scmp.eq.s32.totalorder %s33, 0
      %p233 = por %p231, %p232
      %s235 = sadd.s32 %s234, 1
      %p238 = scmp.eq.s32.totalorder %s27, 1
      %p239 = scmp.ne.s32.totalorder %s234, %s236
      %p240 = scmp.eq.s32.totalorder %s27, 0
      %p241 = por %p239, %p240
      %p242 = scmp.ne.s32.totalorder %s234, %s236
      %p243 = scmp.eq.s32.totalorder %s32, 1
      %p244 = por %p242, %p243
      %p245 = scmp.ne.s32.totalorder %s236, %s237
      %p246 = scmp.eq.s32.totalorder %s32, 0
      %p247 = por %p245, %p246
      %p248 = scmp.ne.s32.totalorder %s236, %s237
      %p249 = scmp.eq.s32.totalorder %s33, 1
      %p250 = por %p248, %p249
      %p252 = scmp.ne.s32.totalorder %s237, %s251
      %p253 = scmp.eq.s32.totalorder %s33, 0
      %p254 = por %p252, %p253
      %s255 = ssub.s32 %s27, %s34
      %p256 = scmp.eq.s32.totalorder %s255, 0
      %s258 = sadd.s32 %s257, 1
      %s259 = scalar_select %p256, %s257, %s258
      %p262 = pneg %p256
      %p263 = scmp.eq.s32.totalorder %s27, 1
      %p264 = por %p262, %p263
      %p265 = scmp.ne.s32.totalorder %s257, %s260
      %p266 = scmp.eq.s32.totalorder %s27, 0
      %p267 = por %p265, %p266
      %p268 = scmp.ne.s32.totalorder %s257, %s260
      %p269 = scmp.eq.s32.totalorder %s32, 1
      %p270 = por %p268, %p269
      %p271 = scmp.ne.s32.totalorder %s260, %s261
      %p272 = scmp.eq.s32.totalorder %s32, 0
      %p273 = por %p271, %p272
      %p274 = scmp.ne.s32.totalorder %s260, %s261
      %p275 = scmp.eq.s32.totalorder %s33, 1
      %p276 = por %p274, %p275
      %p278 = scmp.ne.s32.totalorder %s261, %s277
      %p279 = scmp.eq.s32.totalorder %s33, 0
      %p280 = por %p278, %p279
      %p281 = scmp.le.s32.totalorder 1, %s27
      %p282 = scmp.lt.s32.totalorder %s27, 3
      %p283 = pnand %p281, %p282
      %p284 = pneg %p283
      // Predicated region
      $region9: #{tpu_custom_call.1} parent=5 // pred_check
        _
      $region10: #{tpu_custom_call.1} parent=5 // pred_check_branch
        %286 = sbr.rel (%p283) target = $region12
      $region11: #{tpu_custom_call.1} parent=5 // pred_region
        %s287 = ssub.s32 %s27, 1
        // Predicated region
        $region13: #{tpu_custom_call.1} parent=11 // pred_check
          %p288 = pneg %p100
        $region14: #{tpu_custom_call.1} parent=11 // pred_check_branch
          %290 = sbr.rel (%p288) target = $region16
        $region15: #{tpu_custom_call.1} parent=11 // pred_region
          %s292 = ssub.s32 512, 512
          %293 = vsyncadd [#allocation6], %s292
          %s294 = sshll.u32 [#allocation7], 4
          %s295 = int_to_ptr.vmem [resolvable:$true] %s294
          %300 = dma.hbm_to_vmem [thread:$0]  %s2, 512, %s295, [#allocation6], 128, 128, 8
        $region16: #{tpu_custom_call.1} parent=11 // pred_fallthru
          _
        // Predicated region
        $region17: #{tpu_custom_call.1} parent=11 // pred_check
          %p301 = pneg %p121
        $region18: #{tpu_custom_call.1} parent=11 // pred_check_branch
          %303 = sbr.rel (%p301) target = $region20
        $region19: #{tpu_custom_call.1} parent=11 // pred_region
          %s305 = ssub.s32 16, 16
          %306 = vsyncadd [#allocation9], %s305
          %s308 = sshll.u32 [#allocation8], 4
          %s309 = int_to_ptr.vmem [resolvable:$true] %s308
          %311 = dma.hbm_to_vmem [thread:$0]  %s3, 16, %s309, [#allocation9]
        $region20: #{tpu_custom_call.1} parent=11 // pred_fallthru
          _
        // Predicated region
        $region21: #{tpu_custom_call.1} parent=11 // pred_check
          %p312 = pneg %p142
        $region22: #{tpu_custom_call.1} parent=11 // pred_check_branch
          %314 = sbr.rel (%p312) target = $region24
        $region23: #{tpu_custom_call.1} parent=11 // pred_region
          _
        $region24: #{tpu_custom_call.1} parent=11 // pred_fallthru
          _
        // Predicated region
        $region25: #{tpu_custom_call.1} parent=11 // pred_check
          %p315 = pneg %p163
        $region26: #{tpu_custom_call.1} parent=11 // pred_check_branch
          %317 = sbr.rel (%p315) target = $region28
        $region27: #{tpu_custom_call.1} parent=11 // pred_region
          %s319 = ssub.s32 96, 96
          %320 = vsyncadd [#allocation9], %s319
          %s321 = sshll.u32 [#allocation10], 4
          %s322 = int_to_ptr.vmem [resolvable:$true] %s321
          %327 = dma.hbm_to_vmem [thread:$0]  %s5, 96, %s322, [#allocation9], 16, 16, 1
        $region28: #{tpu_custom_call.1} parent=11 // pred_fallthru
          _
        // Predicated region
        $region29: #{tpu_custom_call.1} parent=11 // pred_check
          %p328 = pneg %p184
        $region30: #{tpu_custom_call.1} parent=11 // pred_check_branch
          %330 = sbr.rel (%p328) target = $region32
        $region31: #{tpu_custom_call.1} parent=11 // pred_region
          _
        $region32: #{tpu_custom_call.1} parent=11 // pred_fallthru
          _
        // Predicated region
        $region33: #{tpu_custom_call.1} parent=11 // pred_check
          %p331 = pneg %p205
        $region34: #{tpu_custom_call.1} parent=11 // pred_check_branch
          %333 = sbr.rel (%p331) target = $region36
        $region35: #{tpu_custom_call.1} parent=11 // pred_region
          %s335 = ssub.s32 96, 96
          %336 = vsyncadd [#allocation12], %s335
          %s337 = sshll.u32 [#allocation11], 4
          %s338 = int_to_ptr.vmem [resolvable:$true] %s337
          %343 = dma.hbm_to_vmem [thread:$0]  %s7, 96, %s338, [#allocation12], 16, 16, 1
        $region36: #{tpu_custom_call.1} parent=11 // pred_fallthru
          _
        // Predicated region
        $region37: #{tpu_custom_call.1} parent=11 // pred_check
          %p344 = pneg %p226
        $region38: #{tpu_custom_call.1} parent=11 // pred_check_branch
          %346 = sbr.rel (%p344) target = $region40
        $region39: #{tpu_custom_call.1} parent=11 // pred_region
          _
        $region40: #{tpu_custom_call.1} parent=11 // pred_fallthru
          _
        // Predicated region
        $region41: #{tpu_custom_call.1} parent=11 // pred_check
          %p347 = pneg %p247
        $region42: #{tpu_custom_call.1} parent=11 // pred_check_branch
          %349 = sbr.rel (%p347) target = $region44
        $region43: #{tpu_custom_call.1} parent=11 // pred_region
          _
        $region44: #{tpu_custom_call.1} parent=11 // pred_fallthru
          _
      $region12: #{tpu_custom_call.1} parent=5 // pred_fallthru
        _
      %p350 = scmp.lt.s32.totalorder %s27, 2
      // Predicated region
      $region45: #{tpu_custom_call.1} parent=5 // pred_check
        %p351 = pneg %p350
      $region46: #{tpu_custom_call.1} parent=5 // pred_check_branch
        %353 = sbr.rel (%p351) target = $region48
      $region47: #{tpu_custom_call.1} parent=5 // pred_region
        // Predicated region
        $region49: #{tpu_custom_call.1} parent=47 // pred_check
          %p354 = pneg %p47
        $region50: #{tpu_custom_call.1} parent=47 // pred_check_branch
          %356 = sbr.rel (%p354) target = $region52
        $region51: #{tpu_custom_call.1} parent=47 // pred_region
          %s357 = sand.u32 %s37, 1
          %s358 = scalar_lea.sflag [#allocation3], %s357
          %s359 = sand.u32 %s37, 1
          %s360 = smul.addr %s359, 16
          %s361 = scalar_lea.vmem [#allocation2], %s360
          %s363 = ssub.s32 256, 256
          %364 = vsyncadd %s358, %s363
          %s365 = smul.addr %s27, 2
          %s366 = smul.addr %s365, 128
          %s367 = scalar_lea.hbm %s0, %s366
          %s368 = sshll.u32 %s361, 4
          %s369 = int_to_ptr.vmem [resolvable:$true] %s368
          %374 = dma.hbm_to_vmem [thread:$0]  %s367, 256, %s369, %s358, 128, 128, 8
        $region52: #{tpu_custom_call.1} parent=47 // pred_fallthru
          _
        // Predicated region
        $region53: #{tpu_custom_call.1} parent=47 // pred_check
          %p375 = pneg %p73
        $region54: #{tpu_custom_call.1} parent=47 // pred_check_branch
          %377 = sbr.rel (%p375) target = $region56
        $region55: #{tpu_custom_call.1} parent=47 // pred_region
          %s378 = sand.u32 %s27, 1
          %s379 = scalar_lea.sflag [#allocation6], %s378
          %s380 = sand.u32 %s63, 1
          %s381 = smul.addr %s380, 16
          %s382 = scalar_lea.vmem [#allocation5], %s381
          %s384 = ssub.s32 256, 256
          %385 = vsyncadd %s379, %s384
          %s386 = smul.addr %s27, 2
          %s387 = smul.addr %s386, 128
          %s388 = scalar_lea.hbm %s1, %s387
          %s389 = sshll.u32 %s382, 4
          %s390 = int_to_ptr.vmem [resolvable:$true] %s389
          %395 = dma.hbm_to_vmem [thread:$0]  %s388, 256, %s390, %s379, 128, 128, 8
        $region56: #{tpu_custom_call.1} parent=47 // pred_fallthru
          _
      $region48: #{tpu_custom_call.1} parent=5 // pred_fallthru
        _
      %p396 = scmp.le.s32.totalorder 1, %s27
      %p397 = scmp.lt.s32.totalorder %s27, 3
      %p398 = pnand %p396, %p397
      %p399 = pneg %p398
      // Predicated region
      $region57: #{tpu_custom_call.1} parent=5 // pred_check
        _
      $region58: #{tpu_custom_call.1} parent=5 // pred_check_branch
        %401 = sbr.rel (%p398) target = $region60
      $region59: #{tpu_custom_call.1} parent=5 // pred_region
        %s402 = ssub.s32 %s27, 1
        %s403 = sand.u32 %s40, 1
        %s404 = scalar_lea.sflag [#allocation3], %s403
        %s405 = sand.u32 %s40, 1
        %s406 = smul.addr %s405, 16
        %s407 = scalar_lea.vmem [#allocation2], %s406
        // Predicated region
        $region61: #{tpu_custom_call.1} parent=59 // pred_check
          %p408 = pneg %p53
        $region62: #{tpu_custom_call.1} parent=59 // pred_check_branch
          %410 = sbr.rel (%p408) target = $region64
        $region63: #{tpu_custom_call.1} parent=59 // pred_region
          %411 = dma.done %s404, 256
        $region64: #{tpu_custom_call.1} parent=59 // pred_fallthru
          _
        %s412 = sand.u32 %s32, 1
        %s413 = scalar_lea.sflag [#allocation6], %s412
        %s414 = sand.u32 %s66, 1
        %s415 = smul.addr %s414, 16
        %s416 = scalar_lea.vmem [#allocation5], %s415
        // Predicated region
        $region65: #{tpu_custom_call.1} parent=59 // pred_check
          %p417 = pneg %p79
        $region66: #{tpu_custom_call.1} parent=59 // pred_check_branch
          %419 = sbr.rel (%p417) target = $region68
        $region67: #{tpu_custom_call.1} parent=59 // pred_region
          %420 = dma.done %s413, 256
        $region68: #{tpu_custom_call.1} parent=59 // pred_fallthru
          _
        // Predicated region
        $region69: #{tpu_custom_call.1} parent=59 // pred_check
          %p421 = pneg %p100
        $region70: #{tpu_custom_call.1} parent=59 // pred_check_branch
          %423 = sbr.rel (%p421) target = $region72
        $region71: #{tpu_custom_call.1} parent=59 // pred_region
          %424 = dma.done [#allocation6], 512
        $region72: #{tpu_custom_call.1} parent=59 // pred_fallthru
          _
        // Predicated region
        $region73: #{tpu_custom_call.1} parent=59 // pred_check
          %p425 = pneg %p121
        $region74: #{tpu_custom_call.1} parent=59 // pred_check_branch
          %427 = sbr.rel (%p425) target = $region76
        $region75: #{tpu_custom_call.1} parent=59 // pred_region
          %428 = dma.done [#allocation9], 16
        $region76: #{tpu_custom_call.1} parent=59 // pred_fallthru
          _
        // Predicated region
        $region77: #{tpu_custom_call.1} parent=59 // pred_check
          %p429 = pneg %p163
        $region78: #{tpu_custom_call.1} parent=59 // pred_check_branch
          %431 = sbr.rel (%p429) target = $region80
        $region79: #{tpu_custom_call.1} parent=59 // pred_region
          %432 = dma.done [#allocation9], 96
        $region80: #{tpu_custom_call.1} parent=59 // pred_fallthru
          _
        // Predicated region
        $region81: #{tpu_custom_call.1} parent=59 // pred_check
          %p433 = pneg %p205
        $region82: #{tpu_custom_call.1} parent=59 // pred_check_branch
          %435 = sbr.rel (%p433) target = $region84
        $region83: #{tpu_custom_call.1} parent=59 // pred_region
          %436 = dma.done [#allocation12], 96
        $region84: #{tpu_custom_call.1} parent=59 // pred_fallthru
          _
        %s437 = sand.u32 %s40, 1
        %s438 = scalar_lea.sflag [#allocation3], %s437
        %s439 = sand.u32 %s40, 1
        %s440 = smul.addr %s439, 16
        %s441 = scalar_lea.vmem [#allocation2], %s440
        %p442 = pneg %p53
        %p443 = pneg %p50
        %s444 = sand.u32 %s32, 1
        %s445 = scalar_lea.sflag [#allocation6], %s444
        %s446 = sand.u32 %s66, 1
        %s447 = smul.addr %s446, 16
        %s448 = scalar_lea.vmem [#allocation5], %s447
        %p449 = pneg %p79
        %p450 = pneg %p76
        %p451 = pneg %p100
        %p452 = pneg %p97
        %p453 = pneg %p121
        %p454 = pneg %p118
        %p455 = pneg %p142
        %p456 = pneg %p139
        %p457 = pneg %p163
        %p458 = pneg %p160
        %p459 = pneg %p184
        %p460 = pneg %p181
        %p461 = pneg %p205
        %p462 = pneg %p202
        %p463 = pneg %p226
        %p464 = pneg %p223
        %p465 = pneg %p247
        %p466 = pneg %p244
        %p467 = pneg %p273
        %p468 = pneg %p270
        %s469 = sand.u32 %s260, 1
        %s470 = scalar_lea.sflag [#allocation4], %s469
        %s471 = sand.u32 %s260, 1
        %s472 = smul.addr %s471, 16
        %s473 = scalar_lea.vmem [#allocation13], %s472
        %v474 = vld [vmem:[%s407] sm:$0xff]
        %v475 = vld [vmem:[%s407 + $0x8] sm:$0xff]
        %v476 = vld [vmem:[#allocation7] sm:$0xff]
        %v477 = vld [vmem:[#allocation7 + $0x8] sm:$0xff]
        %v478 = vld [vmem:[#allocation7 + $0x10] sm:$0xff]
        %v479 = vld [vmem:[#allocation7 + $0x18] sm:$0xff]
        %v480 = vld [vmem:[#allocation8] sm:$0x1]
        %v482 = vlaneseq
        %v483 = vshrl.u32 %v482, 7
        %v484 = vsub.s32 0, %v483
        %v485 = vrot.slane %v480, %v484
        %vm487 = vcmask 261120
        %v489 = vsel %vm487, %v474, 0
        %v492 = vsel %vm487, %v475, 0
        %494 = vmatprep.subr.mxu0 0.0
        %495 = vmatpush1.msra.mxu0 %v476
        %496 = vmatprep.subr.mxu0 0.0
        %497 = vmatpush1.msra.mxu0 %v477
        %498 = vmatprep.subr.mxu0 0.0
        %499 = vmatpush1.msra.mxu0 %v478
        %500 = vmatprep.subr.mxu0 0.0
        %501 = vmatpush1.msra.mxu0 %v479
        %502 = vmatprep.subr.mxu0 0.0
        %503 = vmatpush1.msra.mxu0 0.0
        %504 = vmatprep.subr.mxu0 0.0
        %505 = vmatpush1.msra.mxu0 0.0
        %506 = vmatprep.subr.mxu0 0.0
        %507 = vmatpush1.msra.mxu0 0.0
        %508 = vmatprep.subr.mxu0 0.0
        %509 = vmatpush1.msra.mxu0 0.0
        %510 = vmatprep.subr.mxu0 0.0
        %511 = vmatpush1.msra.mxu0 0.0
        %512 = vmatprep.subr.mxu0 0.0
        %513 = vmatpush1.msra.mxu0 0.0
        %514 = vmatprep.subr.mxu0 0.0
        %515 = vmatpush1.msra.mxu0 0.0
        %516 = vmatprep.subr.mxu0 0.0
        %517 = vmatpush1.msra.mxu0 0.0
        %518 = vmatprep.subr.mxu0 0.0
        %519 = vmatpush1.msra.mxu0 0.0
        %520 = vmatprep.subr.mxu0 0.0
        %521 = vmatpush1.msra.mxu0 0.0
        %522 = vmatprep.subr.mxu0 0.0
        %523 = vmatpush1.msra.mxu0 0.0
        %524 = vmatprep.subr.mxu0 0.0
        %525 = vmatpush1.msra.mxu0 0.0
        %526 = vmatprep.subr.mxu0 0.0
        %527 = vmatpush1.msra.mxu0 0.0
        %528 = vmatprep.subr.mxu0 0.0
        %529 = vmatpush1.msra.mxu0 0.0
        %530 = vmatprep.subr.mxu0 0.0
        %531 = vmatpush1.msra.mxu0 0.0
        %532 = vmatprep.subr.mxu0 0.0
        %533 = vmatpush1.msra.mxu0 0.0
        %534 = vmatprep.subr.mxu0 0.0
        %535 = vmatpush1.msra.mxu0 0.0
        %536 = vmatprep.subr.mxu0 0.0
        %537 = vmatpush1.msra.mxu0 0.0
        %538 = vmatprep.subr.mxu0 0.0
        %539 = vmatpush1.msra.mxu0 0.0
        %540 = vmatprep.subr.mxu0 0.0
        %541 = vmatpush1.msra.mxu0 0.0
        %542 = vmatprep.subr.mxu0 0.0
        %543 = vmatpush1.msra.mxu0 0.0
        %544 = vmatprep.subr.mxu0 0.0
        %545 = vmatpush1.msra.mxu0 0.0
        %546 = vmatprep.subr.mxu0 0.0
        %547 = vmatpush1.msra.mxu0 0.0
        %548 = vmatprep.subr.mxu0 0.0
        %549 = vmatpush1.msra.mxu0 0.0
        %550 = vmatprep.subr.mxu0 0.0
        %551 = vmatpush1.msra.mxu0 0.0
        %552 = vmatprep.subr.mxu0 0.0
        %553 = vmatpush1.msra.mxu0 0.0
        %554 = vmatprep.subr.mxu0 0.0
        %555 = vmatpush1.msra.mxu0 0.0
        %556 = vmatprep.subr.mxu0 0.0
        %557 = vmatpush1.msra.mxu0 0.0
        %558 = vmatprep.mubr.f32.mxu0 0.0
        %559 = vmatmul.mubr.f32.gmra.mrb[0].mxu0 %v489
        %v560 = vpop.f32.mrb[0].mxu0
        %v561 = vadd.f32 %v485, %v560
        %v562 = vpop.f32.mrb[0].mxu0
        %563 = vmatprep.mubr.f32.mxu0 0.0
        %564 = vmatmul.mubr.f32.gmra.mrb[0].mxu0 %v492
        %v565 = vpop.f32.mrb[0].mxu0
        %v566 = vadd.f32 %v485, %v565
        %v567 = vpop.f32.mrb[0].mxu0
        %568 = vdwg.mxu0
        %v569 = vld [vmem:[%s416] sm:$0xff]
        %v570 = vld [vmem:[%s416 + $0x8] sm:$0xff]
        %v571 = vld [vmem:[%s4] sm:$0xff]
        %v572 = vld [vmem:[%s4 + $0x8] sm:$0xff]
        %v573 = vld [vmem:[%s4 + $0x10] sm:$0xff]
        %v574 = vld [vmem:[%s4 + $0x18] sm:$0xff]
        %v576 = vsel %vm487, %v561, 0
        %v579 = vsel %vm487, %v566, 0
        %581 = vmatprep.subr.mxu0 0.0
        %582 = vmatpush1.msra.mxu0 %v571
        %583 = vmatprep.subr.mxu0 0.0
        %584 = vmatpush1.msra.mxu0 %v572
        %585 = vmatprep.subr.mxu0 0.0
        %586 = vmatpush1.msra.mxu0 %v573
        %587 = vmatprep.subr.mxu0 0.0
        %588 = vmatpush1.msra.mxu0 %v574
        %589 = vmatprep.subr.mxu0 0.0
        %590 = vmatpush1.msra.mxu0 0.0
        %591 = vmatprep.subr.mxu0 0.0
        %592 = vmatpush1.msra.mxu0 0.0
        %593 = vmatprep.subr.mxu0 0.0
        %594 = vmatpush1.msra.mxu0 0.0
        %595 = vmatprep.subr.mxu0 0.0
        %596 = vmatpush1.msra.mxu0 0.0
        %597 = vmatprep.subr.mxu0 0.0
        %598 = vmatpush1.msra.mxu0 0.0
        %599 = vmatprep.subr.mxu0 0.0
        %600 = vmatpush1.msra.mxu0 0.0
        %601 = vmatprep.subr.mxu0 0.0
        %602 = vmatpush1.msra.mxu0 0.0
        %603 = vmatprep.subr.mxu0 0.0
        %604 = vmatpush1.msra.mxu0 0.0
        %605 = vmatprep.subr.mxu0 0.0
        %606 = vmatpush1.msra.mxu0 0.0
        %607 = vmatprep.subr.mxu0 0.0
        %608 = vmatpush1.msra.mxu0 0.0
        %609 = vmatprep.subr.mxu0 0.0
        %610 = vmatpush1.msra.mxu0 0.0
        %611 = vmatprep.subr.mxu0 0.0
        %612 = vmatpush1.msra.mxu0 0.0
        %613 = vmatprep.subr.mxu0 0.0
        %614 = vmatpush1.msra.mxu0 0.0
        %615 = vmatprep.subr.mxu0 0.0
        %616 = vmatpush1.msra.mxu0 0.0
        %617 = vmatprep.subr.mxu0 0.0
        %618 = vmatpush1.msra.mxu0 0.0
        %619 = vmatprep.subr.mxu0 0.0
        %620 = vmatpush1.msra.mxu0 0.0
        %621 = vmatprep.subr.mxu0 0.0
        %622 = vmatpush1.msra.mxu0 0.0
        %623 = vmatprep.subr.mxu0 0.0
        %624 = vmatpush1.msra.mxu0 0.0
        %625 = vmatprep.subr.mxu0 0.0
        %626 = vmatpush1.msra.mxu0 0.0
        %627 = vmatprep.subr.mxu0 0.0
        %628 = vmatpush1.msra.mxu0 0.0
        %629 = vmatprep.subr.mxu0 0.0
        %630 = vmatpush1.msra.mxu0 0.0
        %631 = vmatprep.subr.mxu0 0.0
        %632 = vmatpush1.msra.mxu0 0.0
        %633 = vmatprep.subr.mxu0 0.0
        %634 = vmatpush1.msra.mxu0 0.0
        %635 = vmatprep.subr.mxu0 0.0
        %636 = vmatpush1.msra.mxu0 0.0
        %637 = vmatprep.subr.mxu0 0.0
        %638 = vmatpush1.msra.mxu0 0.0
        %639 = vmatprep.subr.mxu0 0.0
        %640 = vmatpush1.msra.mxu0 0.0
        %641 = vmatprep.subr.mxu0 0.0
        %642 = vmatpush1.msra.mxu0 0.0
        %643 = vmatprep.subr.mxu0 0.0
        %644 = vmatpush1.msra.mxu0 0.0
        %645 = vmatprep.mubr.f32.mxu0 0.0
        %646 = vmatmul.mubr.f32.gmra.mrb[0].mxu0 %v576
        %v647 = vpop.f32.mrb[0].mxu0
        %v648 = vadd.f32 0.0, %v647
        %v649 = vpop.f32.mrb[0].mxu0
        %650 = vmatprep.mubr.f32.mxu0 0.0
        %651 = vmatmul.mubr.f32.gmra.mrb[0].mxu0 %v579
        %v652 = vpop.f32.mrb[0].mxu0
        %v653 = vadd.f32 0.0, %v652
        %v654 = vpop.f32.mrb[0].mxu0
        %655 = vdwg.mxu0
        %v656 = vld [vmem:[#allocation10] sm:$0x1]
        %v658 = vsel %vm487, %v656, 0
        %660 = vmatprep.subr.mxu0 0.0
        %661 = vmatpush1.xpose.msra.mxu0 %v576
        %662 = vmatprep.subr.mxu0 0.0
        %663 = vmatpush1.xpose.msra.mxu0 %v579
        %664 = vmatprep.subr.mxu0 0.0
        %665 = vmatpush1.xpose.msra.mxu0 0.0
        %666 = vmatprep.subr.mxu0 0.0
        %667 = vmatpush1.xpose.msra.mxu0 0.0
        %668 = vmatprep.subr.mxu0 0.0
        %669 = vmatpush1.xpose.msra.mxu0 0.0
        %670 = vmatprep.subr.mxu0 0.0
        %671 = vmatpush1.xpose.msra.mxu0 0.0
        %672 = vmatprep.subr.mxu0 0.0
        %673 = vmatpush1.xpose.msra.mxu0 0.0
        %674 = vmatprep.subr.mxu0 0.0
        %675 = vmatpush1.xpose.msra.mxu0 0.0
        %676 = vmatprep.subr.mxu0 0.0
        %677 = vmatpush1.xpose.msra.mxu0 0.0
        %678 = vmatprep.subr.mxu0 0.0
        %679 = vmatpush1.xpose.msra.mxu0 0.0
        %680 = vmatprep.subr.mxu0 0.0
        %681 = vmatpush1.xpose.msra.mxu0 0.0
        %682 = vmatprep.subr.mxu0 0.0
        %683 = vmatpush1.xpose.msra.mxu0 0.0
        %684 = vmatprep.subr.mxu0 0.0
        %685 = vmatpush1.xpose.msra.mxu0 0.0
        %686 = vmatprep.subr.mxu0 0.0
        %687 = vmatpush1.xpose.msra.mxu0 0.0
        %688 = vmatprep.subr.mxu0 0.0
        %689 = vmatpush1.xpose.msra.mxu0 0.0
        %690 = vmatprep.subr.mxu0 0.0
        %691 = vmatpush1.xpose.msra.mxu0 0.0
        %692 = vmatprep.subr.mxu0 0.0
        %693 = vmatpush1.xpose.msra.mxu0 0.0
        %694 = vmatprep.subr.mxu0 0.0
        %695 = vmatpush1.xpose.msra.mxu0 0.0
        %696 = vmatprep.subr.mxu0 0.0
        %697 = vmatpush1.xpose.msra.mxu0 0.0
        %698 = vmatprep.subr.mxu0 0.0
        %699 = vmatpush1.xpose.msra.mxu0 0.0
        %700 = vmatprep.subr.mxu0 0.0
        %701 = vmatpush1.xpose.msra.mxu0 0.0
        %702 = vmatprep.subr.mxu0 0.0
        %703 = vmatpush1.xpose.msra.mxu0 0.0
        %704 = vmatprep.subr.mxu0 0.0
        %705 = vmatpush1.xpose.msra.mxu0 0.0
        %706 = vmatprep.subr.mxu0 0.0
        %707 = vmatpush1.xpose.msra.mxu0 0.0
        %708 = vmatprep.subr.mxu0 0.0
        %709 = vmatpush1.xpose.msra.mxu0 0.0
        %710 = vmatprep.subr.mxu0 0.0
        %711 = vmatpush1.xpose.msra.mxu0 0.0
        %712 = vmatprep.subr.mxu0 0.0
        %713 = vmatpush1.xpose.msra.mxu0 0.0
        %714 = vmatprep.subr.mxu0 0.0
        %715 = vmatpush1.xpose.msra.mxu0 0.0
        %716 = vmatprep.subr.mxu0 0.0
        %717 = vmatpush1.xpose.msra.mxu0 0.0
        %718 = vmatprep.subr.mxu0 0.0
        %719 = vmatpush1.xpose.msra.mxu0 0.0
        %720 = vmatprep.subr.mxu0 0.0
        %721 = vmatpush1.xpose.msra.mxu0 0.0
        %722 = vmatprep.subr.mxu0 0.0
        %723 = vmatpush1.xpose.msra.mxu0 0.0
        %724 = vmatprep.mubr.f32.mxu0 0.0
        %725 = vmatmul.mubr.f32.gmra.mrb[0].mxu0 %v658
        %v726 = vpop.f32.mrb[0].mxu0
        %v727 = vadd.f32 0.0, %v726
        %v728 = vpop.f32.mrb[0].mxu0
        %729 = vdwg.mxu0
        %v730 = vld [vmem:[%s6] sm:$0xff]
        %v731 = vld [vmem:[%s6 + $0x8] sm:$0xff]
        %v732 = vld [vmem:[%s6 + $0x10] sm:$0xff]
        %v733 = vld [vmem:[%s6 + $0x18] sm:$0xff]
        %734 = vmatprep.subr.mxu0 0.0
        %735 = vmatpush1.msra.mxu0 %v730
        %736 = vmatprep.subr.mxu0 0.0
        %737 = vmatpush1.msra.mxu0 %v731
        %738 = vmatprep.subr.mxu0 0.0
        %739 = vmatpush1.msra.mxu0 %v732
        %740 = vmatprep.subr.mxu0 0.0
        %741 = vmatpush1.msra.mxu0 %v733
        %742 = vmatprep.subr.mxu0 0.0
        %743 = vmatpush1.msra.mxu0 0.0
        %744 = vmatprep.subr.mxu0 0.0
        %745 = vmatpush1.msra.mxu0 0.0
        %746 = vmatprep.subr.mxu0 0.0
        %747 = vmatpush1.msra.mxu0 0.0
        %748 = vmatprep.subr.mxu0 0.0
        %749 = vmatpush1.msra.mxu0 0.0
        %750 = vmatprep.subr.mxu0 0.0
        %751 = vmatpush1.msra.mxu0 0.0
        %752 = vmatprep.subr.mxu0 0.0
        %753 = vmatpush1.msra.mxu0 0.0
        %754 = vmatprep.subr.mxu0 0.0
        %755 = vmatpush1.msra.mxu0 0.0
        %756 = vmatprep.subr.mxu0 0.0
        %757 = vmatpush1.msra.mxu0 0.0
        %758 = vmatprep.subr.mxu0 0.0
        %759 = vmatpush1.msra.mxu0 0.0
        %760 = vmatprep.subr.mxu0 0.0
        %761 = vmatpush1.msra.mxu0 0.0
        %762 = vmatprep.subr.mxu0 0.0
        %763 = vmatpush1.msra.mxu0 0.0
        %764 = vmatprep.subr.mxu0 0.0
        %765 = vmatpush1.msra.mxu0 0.0
        %766 = vmatprep.subr.mxu0 0.0
        %767 = vmatpush1.msra.mxu0 0.0
        %768 = vmatprep.subr.mxu0 0.0
        %769 = vmatpush1.msra.mxu0 0.0
        %770 = vmatprep.subr.mxu0 0.0
        %771 = vmatpush1.msra.mxu0 0.0
        %772 = vmatprep.subr.mxu0 0.0
        %773 = vmatpush1.msra.mxu0 0.0
        %774 = vmatprep.subr.mxu0 0.0
        %775 = vmatpush1.msra.mxu0 0.0
        %776 = vmatprep.subr.mxu0 0.0
        %777 = vmatpush1.msra.mxu0 0.0
        %778 = vmatprep.subr.mxu0 0.0
        %779 = vmatpush1.msra.mxu0 0.0
        %780 = vmatprep.subr.mxu0 0.0
        %781 = vmatpush1.msra.mxu0 0.0
        %782 = vmatprep.subr.mxu0 0.0
        %783 = vmatpush1.msra.mxu0 0.0
        %784 = vmatprep.subr.mxu0 0.0
        %785 = vmatpush1.msra.mxu0 0.0
        %786 = vmatprep.subr.mxu0 0.0
        %787 = vmatpush1.msra.mxu0 0.0
        %788 = vmatprep.subr.mxu0 0.0
        %789 = vmatpush1.msra.mxu0 0.0
        %790 = vmatprep.subr.mxu0 0.0
        %791 = vmatpush1.msra.mxu0 0.0
        %792 = vmatprep.subr.mxu0 0.0
        %793 = vmatpush1.msra.mxu0 0.0
        %794 = vmatprep.subr.mxu0 0.0
        %795 = vmatpush1.msra.mxu0 0.0
        %796 = vmatprep.subr.mxu0 0.0
        %797 = vmatpush1.msra.mxu0 0.0
        %798 = vmatprep.mubr.f32.mxu0 0.0
        %799 = vmatmul.mubr.f32.gmra.mrb[0].mxu0 %v576
        %v800 = vpop.f32.mrb[0].mxu0
        %v801 = vadd.f32 0.0, %v800
        %v802 = vpop.f32.mrb[0].mxu0
        %803 = vmatprep.mubr.f32.mxu0 0.0
        %804 = vmatmul.mubr.f32.gmra.mrb[0].mxu0 %v579
        %v805 = vpop.f32.mrb[0].mxu0
        %v806 = vadd.f32 0.0, %v805
        %v807 = vpop.f32.mrb[0].mxu0
        %808 = vdwg.mxu0
        %810 = vset.pattern.permute.xlu0 0
        %811 = vperm.xlu0 %810, %v801
        %v812 = vpop.permute.xlu0 %811
        %815 = vset.pattern.permute.xlu0 0
        %816 = vperm.xlu0 %815, %v806
        %v817 = vpop.permute.xlu0 %816
        %v819 = vlaneseq
        %v820 = vshrl.u32 %v819, 7
        %v821 = vsub.s32 0, %v820
        %v822 = vrot.slane %v727, %v821
        %v823 = vadd.f32 %v812, %v822
        %v824 = vadd.f32 %v817, %v822
        %vm825 = vcmp.gt.f32.partialorder %v823, 0.0
        %vm826 = vcmp.gt.f32.partialorder %v824, 0.0
        %v827 = vmul.f32 %v823, 0.2
        %v828 = vmul.f32 %v824, 0.2
        %v829 = vsel %vm825, %v823, %v827
        %v830 = vsel %vm826, %v824, %v828
        %vm831 = vcmp.gt.f32.partialorder %v569, 0.0
        %vm832 = vcmp.gt.f32.partialorder %v570, 0.0
        %v833 = vsel %vm831, %v829, -1e+30
        %v834 = vsel %vm832, %v830, -1e+30
        %vm835 = vcmask 130048
        %v836 = vsel %vm835, %v833, -inf
        %837 = vmax.xlane.f32.xlu0 %v836
        %v838 = vpop.xlane.xlu0 %837
        %v839 = vsel %vm835, %v834, -inf
        %840 = vmax.xlane.f32.xlu0 %v839
        %v841 = vpop.xlane.xlu0 %840
        %v842 = vsub.f32 %v833, %v838
        %v843 = vsub.f32 %v834, %v841
        %v844 = vmul.f32 %v842, 1.442695
        %v845 = vpow.pop %v844
        %v846 = vmul.f32 %v843, 1.442695
        %v847 = vpow.pop %v846
        %v848 = vmul.f32 %v845, %v569
        %v849 = vmul.f32 %v847, %v570
        %v850 = vsel %vm835, %v848, 0.0
        %851 = vadd.xlane.f32.xlu0 %v850
        %v852 = vpop.xlane.xlu0 %851
        %v853 = vsel %vm835, %v849, 0.0
        %854 = vadd.xlane.f32.xlu0 %v853
        %v855 = vpop.xlane.xlu0 %854
        %v856 = vadd.f32 %v852, 1e-16
        %v857 = vadd.f32 %v855, 1e-16
        %v858 = vrcp.pop %v856
        %v859 = vrcp.pop %v857
        %v861 = vsel %vm835, %v848, 0
        %v864 = vsel %vm835, %v849, 0
        %866 = vmatprep.subr.mxu0 0.0
        %867 = vmatpush1.msra.mxu0 %v648
        %868 = vmatprep.subr.mxu0 0.0
        %869 = vmatpush1.msra.mxu0 %v653
        %870 = vmatprep.subr.mxu0 0.0
        %871 = vmatpush1.msra.mxu0 0.0
        %872 = vmatprep.subr.mxu0 0.0
        %873 = vmatpush1.msra.mxu0 0.0
        %874 = vmatprep.subr.mxu0 0.0
        %875 = vmatpush1.msra.mxu0 0.0
        %876 = vmatprep.subr.mxu0 0.0
        %877 = vmatpush1.msra.mxu0 0.0
        %878 = vmatprep.subr.mxu0 0.0
        %879 = vmatpush1.msra.mxu0 0.0
        %880 = vmatprep.subr.mxu0 0.0
        %881 = vmatpush1.msra.mxu0 0.0
        %882 = vmatprep.subr.mxu0 0.0
        %883 = vmatpush1.msra.mxu0 0.0
        %884 = vmatprep.subr.mxu0 0.0
        %885 = vmatpush1.msra.mxu0 0.0
        %886 = vmatprep.subr.mxu0 0.0
        %887 = vmatpush1.msra.mxu0 0.0
        %888 = vmatprep.subr.mxu0 0.0
        %889 = vmatpush1.msra.mxu0 0.0
        %890 = vmatprep.subr.mxu0 0.0
        %891 = vmatpush1.msra.mxu0 0.0
        %892 = vmatprep.subr.mxu0 0.0
        %893 = vmatpush1.msra.mxu0 0.0
        %894 = vmatprep.subr.mxu0 0.0
        %895 = vmatpush1.msra.mxu0 0.0
        %896 = vmatprep.subr.mxu0 0.0
        %897 = vmatpush1.msra.mxu0 0.0
        %898 = vmatprep.subr.mxu0 0.0
        %899 = vmatpush1.msra.mxu0 0.0
        %900 = vmatprep.subr.mxu0 0.0
        %901 = vmatpush1.msra.mxu0 0.0
        %902 = vmatprep.subr.mxu0 0.0
        %903 = vmatpush1.msra.mxu0 0.0
        %904 = vmatprep.subr.mxu0 0.0
        %905 = vmatpush1.msra.mxu0 0.0
        %906 = vmatprep.subr.mxu0 0.0
        %907 = vmatpush1.msra.mxu0 0.0
        %908 = vmatprep.subr.mxu0 0.0
        %909 = vmatpush1.msra.mxu0 0.0
        %910 = vmatprep.subr.mxu0 0.0
        %911 = vmatpush1.msra.mxu0 0.0
        %912 = vmatprep.subr.mxu0 0.0
        %913 = vmatpush1.msra.mxu0 0.0
        %914 = vmatprep.subr.mxu0 0.0
        %915 = vmatpush1.msra.mxu0 0.0
        %916 = vmatprep.subr.mxu0 0.0
        %917 = vmatpush1.msra.mxu0 0.0
        %918 = vmatprep.subr.mxu0 0.0
        %919 = vmatpush1.msra.mxu0 0.0
        %920 = vmatprep.subr.mxu0 0.0
        %921 = vmatpush1.msra.mxu0 0.0
        %922 = vmatprep.subr.mxu0 0.0
        %923 = vmatpush1.msra.mxu0 0.0
        %924 = vmatprep.subr.mxu0 0.0
        %925 = vmatpush1.msra.mxu0 0.0
        %926 = vmatprep.subr.mxu0 0.0
        %927 = vmatpush1.msra.mxu0 0.0
        %928 = vmatprep.subr.mxu0 0.0
        %929 = vmatpush1.msra.mxu0 0.0
        %930 = vmatprep.mubr.f32.mxu0 0.0
        %931 = vmatmul.mubr.f32.gmra.mrb[0].mxu0 %v861
        %v932 = vpop.f32.mrb[0].mxu0
        %v933 = vadd.f32 0.0, %v932
        %v934 = vpop.f32.mrb[0].mxu0
        %935 = vmatprep.mubr.f32.mxu0 0.0
        %936 = vmatmul.mubr.f32.gmra.mrb[0].mxu0 %v864
        %v937 = vpop.f32.mrb[0].mxu0
        %v938 = vadd.f32 0.0, %v937
        %v939 = vpop.f32.mrb[0].mxu0
        %940 = vdwg.mxu0
        %v941 = vmul.f32 %v933, %v858
        %v942 = vmul.f32 %v938, %v859
        %v943 = vld [vmem:[#allocation11] sm:$0x1]
        %v945 = vlaneseq
        %v946 = vshrl.u32 %v945, 7
        %v947 = vsub.s32 0, %v946
        %v948 = vrot.slane %v943, %v947
        %v950 = vadd.f32 %v941, %v948
        %v951 = vadd.f32 %v942, %v948
        %s952 = scalar_lea.vmem %s4, 32
        %v953 = vld [vmem:[%s952] sm:$0xff]
        %v954 = vld [vmem:[%s952 + $0x8] sm:$0xff]
        %v955 = vld [vmem:[%s952 + $0x10] sm:$0xff]
        %v956 = vld [vmem:[%s952 + $0x18] sm:$0xff]
        %v958 = vsel %vm487, %v950, 0
        %v961 = vsel %vm487, %v951, 0
        %963 = vmatprep.subr.mxu0 0.0
        %964 = vmatpush1.msra.mxu0 %v953
        %965 = vmatprep.subr.mxu0 0.0
        %966 = vmatpush1.msra.mxu0 %v954
        %967 = vmatprep.subr.mxu0 0.0
        %968 = vmatpush1.msra.mxu0 %v955
        %969 = vmatprep.subr.mxu0 0.0
        %970 = vmatpush1.msra.mxu0 %v956
        %971 = vmatprep.subr.mxu0 0.0
        %972 = vmatpush1.msra.mxu0 0.0
        %973 = vmatprep.subr.mxu0 0.0
        %974 = vmatpush1.msra.mxu0 0.0
        %975 = vmatprep.subr.mxu0 0.0
        %976 = vmatpush1.msra.mxu0 0.0
        %977 = vmatprep.subr.mxu0 0.0
        %978 = vmatpush1.msra.mxu0 0.0
        %979 = vmatprep.subr.mxu0 0.0
        %980 = vmatpush1.msra.mxu0 0.0
        %981 = vmatprep.subr.mxu0 0.0
        %982 = vmatpush1.msra.mxu0 0.0
        %983 = vmatprep.subr.mxu0 0.0
        %984 = vmatpush1.msra.mxu0 0.0
        %985 = vmatprep.subr.mxu0 0.0
        %986 = vmatpush1.msra.mxu0 0.0
        %987 = vmatprep.subr.mxu0 0.0
        %988 = vmatpush1.msra.mxu0 0.0
        %989 = vmatprep.subr.mxu0 0.0
        %990 = vmatpush1.msra.mxu0 0.0
        %991 = vmatprep.subr.mxu0 0.0
        %992 = vmatpush1.msra.mxu0 0.0
        %993 = vmatprep.subr.mxu0 0.0
        %994 = vmatpush1.msra.mxu0 0.0
        %995 = vmatprep.subr.mxu0 0.0
        %996 = vmatpush1.msra.mxu0 0.0
        %997 = vmatprep.subr.mxu0 0.0
        %998 = vmatpush1.msra.mxu0 0.0
        %999 = vmatprep.subr.mxu0 0.0
        %1000 = vmatpush1.msra.mxu0 0.0
        %1001 = vmatprep.subr.mxu0 0.0
        %1002 = vmatpush1.msra.mxu0 0.0
        %1003 = vmatprep.subr.mxu0 0.0
        %1004 = vmatpush1.msra.mxu0 0.0
        %1005 = vmatprep.subr.mxu0 0.0
        %1006 = vmatpush1.msra.mxu0 0.0
        %1007 = vmatprep.subr.mxu0 0.0
        %1008 = vmatpush1.msra.mxu0 0.0
        %1009 = vmatprep.subr.mxu0 0.0
        %1010 = vmatpush1.msra.mxu0 0.0
        %1011 = vmatprep.subr.mxu0 0.0
        %1012 = vmatpush1.msra.mxu0 0.0
        %1013 = vmatprep.subr.mxu0 0.0
        %1014 = vmatpush1.msra.mxu0 0.0
        %1015 = vmatprep.subr.mxu0 0.0
        %1016 = vmatpush1.msra.mxu0 0.0
        %1017 = vmatprep.subr.mxu0 0.0
        %1018 = vmatpush1.msra.mxu0 0.0
        %1019 = vmatprep.subr.mxu0 0.0
        %1020 = vmatpush1.msra.mxu0 0.0
        %1021 = vmatprep.subr.mxu0 0.0
        %1022 = vmatpush1.msra.mxu0 0.0
        %1023 = vmatprep.subr.mxu0 0.0
        %1024 = vmatpush1.msra.mxu0 0.0
        %1025 = vmatprep.subr.mxu0 0.0
        %1026 = vmatpush1.msra.mxu0 0.0
        %1027 = vmatprep.mubr.f32.mxu0 0.0
        %1028 = vmatmul.mubr.f32.gmra.mrb[0].mxu0 %v958
        %v1029 = vpop.f32.mrb[0].mxu0
        %v1030 = vadd.f32 0.0, %v1029
        %v1031 = vpop.f32.mrb[0].mxu0
        %1032 = vmatprep.mubr.f32.mxu0 0.0
        %1033 = vmatmul.mubr.f32.gmra.mrb[0].mxu0 %v961
        %v1034 = vpop.f32.mrb[0].mxu0
        %v1035 = vadd.f32 0.0, %v1034
        %v1036 = vpop.f32.mrb[0].mxu0
        %1037 = vdwg.mxu0
        %s1038 = scalar_lea.vmem [#allocation10], 1
        %v1039 = vld [vmem:[%s1038] sm:$0x1]
        %v1041 = vsel %vm487, %v1039, 0
        %1043 = vmatprep.subr.mxu0 0.0
        %1044 = vmatpush1.xpose.msra.mxu0 %v958
        %1045 = vmatprep.subr.mxu0 0.0
        %1046 = vmatpush1.xpose.msra.mxu0 %v961
        %1047 = vmatprep.subr.mxu0 0.0
        %1048 = vmatpush1.xpose.msra.mxu0 0.0
        %1049 = vmatprep.subr.mxu0 0.0
        %1050 = vmatpush1.xpose.msra.mxu0 0.0
        %1051 = vmatprep.subr.mxu0 0.0
        %1052 = vmatpush1.xpose.msra.mxu0 0.0
        %1053 = vmatprep.subr.mxu0 0.0
        %1054 = vmatpush1.xpose.msra.mxu0 0.0
        %1055 = vmatprep.subr.mxu0 0.0
        %1056 = vmatpush1.xpose.msra.mxu0 0.0
        %1057 = vmatprep.subr.mxu0 0.0
        %1058 = vmatpush1.xpose.msra.mxu0 0.0
        %1059 = vmatprep.subr.mxu0 0.0
        %1060 = vmatpush1.xpose.msra.mxu0 0.0
        %1061 = vmatprep.subr.mxu0 0.0
        %1062 = vmatpush1.xpose.msra.mxu0 0.0
        %1063 = vmatprep.subr.mxu0 0.0
        %1064 = vmatpush1.xpose.msra.mxu0 0.0
        %1065 = vmatprep.subr.mxu0 0.0
        %1066 = vmatpush1.xpose.msra.mxu0 0.0
        %1067 = vmatprep.subr.mxu0 0.0
        %1068 = vmatpush1.xpose.msra.mxu0 0.0
        %1069 = vmatprep.subr.mxu0 0.0
        %1070 = vmatpush1.xpose.msra.mxu0 0.0
        %1071 = vmatprep.subr.mxu0 0.0
        %1072 = vmatpush1.xpose.msra.mxu0 0.0
        %1073 = vmatprep.subr.mxu0 0.0
        %1074 = vmatpush1.xpose.msra.mxu0 0.0
        %1075 = vmatprep.subr.mxu0 0.0
        %1076 = vmatpush1.xpose.msra.mxu0 0.0
        %1077 = vmatprep.subr.mxu0 0.0
        %1078 = vmatpush1.xpose.msra.mxu0 0.0
        %1079 = vmatprep.subr.mxu0 0.0
        %1080 = vmatpush1.xpose.msra.mxu0 0.0
        %1081 = vmatprep.subr.mxu0 0.0
        %1082 = vmatpush1.xpose.msra.mxu0 0.0
        %1083 = vmatprep.subr.mxu0 0.0
        %1084 = vmatpush1.xpose.msra.mxu0 0.0
        %1085 = vmatprep.subr.mxu0 0.0
        %1086 = vmatpush1.xpose.msra.mxu0 0.0
        %1087 = vmatprep.subr.mxu0 0.0
        %1088 = vmatpush1.xpose.msra.mxu0 0.0
        %1089 = vmatprep.subr.mxu0 0.0
        %1090 = vmatpush1.xpose.msra.mxu0 0.0
        %1091 = vmatprep.subr.mxu0 0.0
        %1092 = vmatpush1.xpose.msra.mxu0 0.0
        %1093 = vmatprep.subr.mxu0 0.0
        %1094 = vmatpush1.xpose.msra.mxu0 0.0
        %1095 = vmatprep.subr.mxu0 0.0
        %1096 = vmatpush1.xpose.msra.mxu0 0.0
        %1097 = vmatprep.subr.mxu0 0.0
        %1098 = vmatpush1.xpose.msra.mxu0 0.0
        %1099 = vmatprep.subr.mxu0 0.0
        %1100 = vmatpush1.xpose.msra.mxu0 0.0
        %1101 = vmatprep.subr.mxu0 0.0
        %1102 = vmatpush1.xpose.msra.mxu0 0.0
        %1103 = vmatprep.subr.mxu0 0.0
        %1104 = vmatpush1.xpose.msra.mxu0 0.0
        %1105 = vmatprep.subr.mxu0 0.0
        %1106 = vmatpush1.xpose.msra.mxu0 0.0
        %1107 = vmatprep.mubr.f32.mxu0 0.0
        %1108 = vmatmul.mubr.f32.gmra.mrb[0].mxu0 %v1041
        %v1109 = vpop.f32.mrb[0].mxu0
        %v1110 = vadd.f32 0.0, %v1109
        %v1111 = vpop.f32.mrb[0].mxu0
        %1112 = vdwg.mxu0
        %s1113 = scalar_lea.vmem %s6, 32
        %v1114 = vld [vmem:[%s1113] sm:$0xff]
        %v1115 = vld [vmem:[%s1113 + $0x8] sm:$0xff]
        %v1116 = vld [vmem:[%s1113 + $0x10] sm:$0xff]
        %v1117 = vld [vmem:[%s1113 + $0x18] sm:$0xff]
        %1118 = vmatprep.subr.mxu0 0.0
        %1119 = vmatpush1.msra.mxu0 %v1114
        %1120 = vmatprep.subr.mxu0 0.0
        %1121 = vmatpush1.msra.mxu0 %v1115
        %1122 = vmatprep.subr.mxu0 0.0
        %1123 = vmatpush1.msra.mxu0 %v1116
        %1124 = vmatprep.subr.mxu0 0.0
        %1125 = vmatpush1.msra.mxu0 %v1117
        %1126 = vmatprep.subr.mxu0 0.0
        %1127 = vmatpush1.msra.mxu0 0.0
        %1128 = vmatprep.subr.mxu0 0.0
        %1129 = vmatpush1.msra.mxu0 0.0
        %1130 = vmatprep.subr.mxu0 0.0
        %1131 = vmatpush1.msra.mxu0 0.0
        %1132 = vmatprep.subr.mxu0 0.0
        %1133 = vmatpush1.msra.mxu0 0.0
        %1134 = vmatprep.subr.mxu0 0.0
        %1135 = vmatpush1.msra.mxu0 0.0
        %1136 = vmatprep.subr.mxu0 0.0
        %1137 = vmatpush1.msra.mxu0 0.0
        %1138 = vmatprep.subr.mxu0 0.0
        %1139 = vmatpush1.msra.mxu0 0.0
        %1140 = vmatprep.subr.mxu0 0.0
        %1141 = vmatpush1.msra.mxu0 0.0
        %1142 = vmatprep.subr.mxu0 0.0
        %1143 = vmatpush1.msra.mxu0 0.0
        %1144 = vmatprep.subr.mxu0 0.0
        %1145 = vmatpush1.msra.mxu0 0.0
        %1146 = vmatprep.subr.mxu0 0.0
        %1147 = vmatpush1.msra.mxu0 0.0
        %1148 = vmatprep.subr.mxu0 0.0
        %1149 = vmatpush1.msra.mxu0 0.0
        %1150 = vmatprep.subr.mxu0 0.0
        %1151 = vmatpush1.msra.mxu0 0.0
        %1152 = vmatprep.subr.mxu0 0.0
        %1153 = vmatpush1.msra.mxu0 0.0
        %1154 = vmatprep.subr.mxu0 0.0
        %1155 = vmatpush1.msra.mxu0 0.0
        %1156 = vmatprep.subr.mxu0 0.0
        %1157 = vmatpush1.msra.mxu0 0.0
        %1158 = vmatprep.subr.mxu0 0.0
        %1159 = vmatpush1.msra.mxu0 0.0
        %1160 = vmatprep.subr.mxu0 0.0
        %1161 = vmatpush1.msra.mxu0 0.0
        %1162 = vmatprep.subr.mxu0 0.0
        %1163 = vmatpush1.msra.mxu0 0.0
        %1164 = vmatprep.subr.mxu0 0.0
        %1165 = vmatpush1.msra.mxu0 0.0
        %1166 = vmatprep.subr.mxu0 0.0
        %1167 = vmatpush1.msra.mxu0 0.0
        %1168 = vmatprep.subr.mxu0 0.0
        %1169 = vmatpush1.msra.mxu0 0.0
        %1170 = vmatprep.subr.mxu0 0.0
        %1171 = vmatpush1.msra.mxu0 0.0
        %1172 = vmatprep.subr.mxu0 0.0
        %1173 = vmatpush1.msra.mxu0 0.0
        %1174 = vmatprep.subr.mxu0 0.0
        %1175 = vmatpush1.msra.mxu0 0.0
        %1176 = vmatprep.subr.mxu0 0.0
        %1177 = vmatpush1.msra.mxu0 0.0
        %1178 = vmatprep.subr.mxu0 0.0
        %1179 = vmatpush1.msra.mxu0 0.0
        %1180 = vmatprep.subr.mxu0 0.0
        %1181 = vmatpush1.msra.mxu0 0.0
        %1182 = vmatprep.mubr.f32.mxu0 0.0
        %1183 = vmatmul.mubr.f32.gmra.mrb[0].mxu0 %v958
        %v1184 = vpop.f32.mrb[0].mxu0
        %v1185 = vadd.f32 0.0, %v1184
        %v1186 = vpop.f32.mrb[0].mxu0
        %1187 = vmatprep.mubr.f32.mxu0 0.0
        %1188 = vmatmul.mubr.f32.gmra.mrb[0].mxu0 %v961
        %v1189 = vpop.f32.mrb[0].mxu0
        %v1190 = vadd.f32 0.0, %v1189
        %v1191 = vpop.f32.mrb[0].mxu0
        %1192 = vdwg.mxu0
        %1194 = vset.pattern.permute.xlu0 0
        %1195 = vperm.xlu0 %1194, %v1185
        %v1196 = vpop.permute.xlu0 %1195
        %1199 = vset.pattern.permute.xlu0 0
        %1200 = vperm.xlu0 %1199, %v1190
        %v1201 = vpop.permute.xlu0 %1200
        %v1203 = vlaneseq
        %v1204 = vshrl.u32 %v1203, 7
        %v1205 = vsub.s32 0, %v1204
        %v1206 = vrot.slane %v1110, %v1205
        %v1207 = vadd.f32 %v1196, %v1206
        %v1208 = vadd.f32 %v1201, %v1206
        %vm1209 = vcmp.gt.f32.partialorder %v1207, 0.0
        %vm1210 = vcmp.gt.f32.partialorder %v1208, 0.0
        %v1211 = vmul.f32 %v1207, 0.2
        %v1212 = vmul.f32 %v1208, 0.2
        %v1213 = vsel %vm1209, %v1207, %v1211
        %v1214 = vsel %vm1210, %v1208, %v1212
        %v1215 = vsel %vm831, %v1213, -1e+30
        %v1216 = vsel %vm832, %v1214, -1e+30
        %v1217 = vsel %vm835, %v1215, -inf
        %1218 = vmax.xlane.f32.xlu0 %v1217
        %v1219 = vpop.xlane.xlu0 %1218
        %v1220 = vsel %vm835, %v1216, -inf
        %1221 = vmax.xlane.f32.xlu0 %v1220
        %v1222 = vpop.xlane.xlu0 %1221
        %v1223 = vsub.f32 %v1215, %v1219
        %v1224 = vsub.f32 %v1216, %v1222
        %v1225 = vmul.f32 %v1223, 1.442695
        %v1226 = vpow.pop %v1225
        %v1227 = vmul.f32 %v1224, 1.442695
        %v1228 = vpow.pop %v1227
        %v1229 = vmul.f32 %v1226, %v569
        %v1230 = vmul.f32 %v1228, %v570
        %v1231 = vsel %vm835, %v1229, 0.0
        %1232 = vadd.xlane.f32.xlu0 %v1231
        %v1233 = vpop.xlane.xlu0 %1232
        %v1234 = vsel %vm835, %v1230, 0.0
        %1235 = vadd.xlane.f32.xlu0 %v1234
        %v1236 = vpop.xlane.xlu0 %1235
        %v1237 = vadd.f32 %v1233, 1e-16
        %v1238 = vadd.f32 %v1236, 1e-16
        %v1239 = vrcp.pop %v1237
        %v1240 = vrcp.pop %v1238
        %v1242 = vsel %vm835, %v1229, 0
        %v1245 = vsel %vm835, %v1230, 0
        %1247 = vmatprep.subr.mxu0 0.0
        %1248 = vmatpush1.msra.mxu0 %v1030
        %1249 = vmatprep.subr.mxu0 0.0
        %1250 = vmatpush1.msra.mxu0 %v1035
        %1251 = vmatprep.subr.mxu0 0.0
        %1252 = vmatpush1.msra.mxu0 0.0
        %1253 = vmatprep.subr.mxu0 0.0
        %1254 = vmatpush1.msra.mxu0 0.0
        %1255 = vmatprep.subr.mxu0 0.0
        %1256 = vmatpush1.msra.mxu0 0.0
        %1257 = vmatprep.subr.mxu0 0.0
        %1258 = vmatpush1.msra.mxu0 0.0
        %1259 = vmatprep.subr.mxu0 0.0
        %1260 = vmatpush1.msra.mxu0 0.0
        %1261 = vmatprep.subr.mxu0 0.0
        %1262 = vmatpush1.msra.mxu0 0.0
        %1263 = vmatprep.subr.mxu0 0.0
        %1264 = vmatpush1.msra.mxu0 0.0
        %1265 = vmatprep.subr.mxu0 0.0
        %1266 = vmatpush1.msra.mxu0 0.0
        %1267 = vmatprep.subr.mxu0 0.0
        %1268 = vmatpush1.msra.mxu0 0.0
        %1269 = vmatprep.subr.mxu0 0.0
        %1270 = vmatpush1.msra.mxu0 0.0
        %1271 = vmatprep.subr.mxu0 0.0
        %1272 = vmatpush1.msra.mxu0 0.0
        %1273 = vmatprep.subr.mxu0 0.0
        %1274 = vmatpush1.msra.mxu0 0.0
        %1275 = vmatprep.subr.mxu0 0.0
        %1276 = vmatpush1.msra.mxu0 0.0
        %1277 = vmatprep.subr.mxu0 0.0
        %1278 = vmatpush1.msra.mxu0 0.0
        %1279 = vmatprep.subr.mxu0 0.0
        %1280 = vmatpush1.msra.mxu0 0.0
        %1281 = vmatprep.subr.mxu0 0.0
        %1282 = vmatpush1.msra.mxu0 0.0
        %1283 = vmatprep.subr.mxu0 0.0
        %1284 = vmatpush1.msra.mxu0 0.0
        %1285 = vmatprep.subr.mxu0 0.0
        %1286 = vmatpush1.msra.mxu0 0.0
        %1287 = vmatprep.subr.mxu0 0.0
        %1288 = vmatpush1.msra.mxu0 0.0
        %1289 = vmatprep.subr.mxu0 0.0
        %1290 = vmatpush1.msra.mxu0 0.0
        %1291 = vmatprep.subr.mxu0 0.0
        %1292 = vmatpush1.msra.mxu0 0.0
        %1293 = vmatprep.subr.mxu0 0.0
        %1294 = vmatpush1.msra.mxu0 0.0
        %1295 = vmatprep.subr.mxu0 0.0
        %1296 = vmatpush1.msra.mxu0 0.0
        %1297 = vmatprep.subr.mxu0 0.0
        %1298 = vmatpush1.msra.mxu0 0.0
        %1299 = vmatprep.subr.mxu0 0.0
        %1300 = vmatpush1.msra.mxu0 0.0
        %1301 = vmatprep.subr.mxu0 0.0
        %1302 = vmatpush1.msra.mxu0 0.0
        %1303 = vmatprep.subr.mxu0 0.0
        %1304 = vmatpush1.msra.mxu0 0.0
        %1305 = vmatprep.subr.mxu0 0.0
        %1306 = vmatpush1.msra.mxu0 0.0
        %1307 = vmatprep.subr.mxu0 0.0
        %1308 = vmatpush1.msra.mxu0 0.0
        %1309 = vmatprep.subr.mxu0 0.0
        %1310 = vmatpush1.msra.mxu0 0.0
        %1311 = vmatprep.mubr.f32.mxu0 0.0
        %1312 = vmatmul.mubr.f32.gmra.mrb[0].mxu0 %v1242
        %v1313 = vpop.f32.mrb[0].mxu0
        %v1314 = vadd.f32 0.0, %v1313
        %v1315 = vpop.f32.mrb[0].mxu0
        %1316 = vmatprep.mubr.f32.mxu0 0.0
        %1317 = vmatmul.mubr.f32.gmra.mrb[0].mxu0 %v1245
        %v1318 = vpop.f32.mrb[0].mxu0
        %v1319 = vadd.f32 0.0, %v1318
        %v1320 = vpop.f32.mrb[0].mxu0
        %1321 = vdwg.mxu0
        %v1322 = vmul.f32 %v1314, %v1239
        %v1323 = vmul.f32 %v1319, %v1240
        %s1324 = scalar_lea.vmem [#allocation11], 1
        %v1325 = vld [vmem:[%s1324] sm:$0x1]
        %v1327 = vlaneseq
        %v1328 = vshrl.u32 %v1327, 7
        %v1329 = vsub.s32 0, %v1328
        %v1330 = vrot.slane %v1325, %v1329
        %v1332 = vadd.f32 %v1322, %v1330
        %v1333 = vadd.f32 %v1323, %v1330
        %s1334 = scalar_lea.vmem %s4, 64
        %v1335 = vld [vmem:[%s1334] sm:$0xff]
        %v1336 = vld [vmem:[%s1334 + $0x8] sm:$0xff]
        %v1337 = vld [vmem:[%s1334 + $0x10] sm:$0xff]
        %v1338 = vld [vmem:[%s1334 + $0x18] sm:$0xff]
        %v1340 = vsel %vm487, %v1332, 0
        %v1343 = vsel %vm487, %v1333, 0
        %1345 = vmatprep.subr.mxu0 0.0
        %1346 = vmatpush1.msra.mxu0 %v1335
        %1347 = vmatprep.subr.mxu0 0.0
        %1348 = vmatpush1.msra.mxu0 %v1336
        %1349 = vmatprep.subr.mxu0 0.0
        %1350 = vmatpush1.msra.mxu0 %v1337
        %1351 = vmatprep.subr.mxu0 0.0
        %1352 = vmatpush1.msra.mxu0 %v1338
        %1353 = vmatprep.subr.mxu0 0.0
        %1354 = vmatpush1.msra.mxu0 0.0
        %1355 = vmatprep.subr.mxu0 0.0
        %1356 = vmatpush1.msra.mxu0 0.0
        %1357 = vmatprep.subr.mxu0 0.0
        %1358 = vmatpush1.msra.mxu0 0.0
        %1359 = vmatprep.subr.mxu0 0.0
        %1360 = vmatpush1.msra.mxu0 0.0
        %1361 = vmatprep.subr.mxu0 0.0
        %1362 = vmatpush1.msra.mxu0 0.0
        %1363 = vmatprep.subr.mxu0 0.0
        %1364 = vmatpush1.msra.mxu0 0.0
        %1365 = vmatprep.subr.mxu0 0.0
        %1366 = vmatpush1.msra.mxu0 0.0
        %1367 = vmatprep.subr.mxu0 0.0
        %1368 = vmatpush1.msra.mxu0 0.0
        %1369 = vmatprep.subr.mxu0 0.0
        %1370 = vmatpush1.msra.mxu0 0.0
        %1371 = vmatprep.subr.mxu0 0.0
        %1372 = vmatpush1.msra.mxu0 0.0
        %1373 = vmatprep.subr.mxu0 0.0
        %1374 = vmatpush1.msra.mxu0 0.0
        %1375 = vmatprep.subr.mxu0 0.0
        %1376 = vmatpush1.msra.mxu0 0.0
        %1377 = vmatprep.subr.mxu0 0.0
        %1378 = vmatpush1.msra.mxu0 0.0
        %1379 = vmatprep.subr.mxu0 0.0
        %1380 = vmatpush1.msra.mxu0 0.0
        %1381 = vmatprep.subr.mxu0 0.0
        %1382 = vmatpush1.msra.mxu0 0.0
        %1383 = vmatprep.subr.mxu0 0.0
        %1384 = vmatpush1.msra.mxu0 0.0
        %1385 = vmatprep.subr.mxu0 0.0
        %1386 = vmatpush1.msra.mxu0 0.0
        %1387 = vmatprep.subr.mxu0 0.0
        %1388 = vmatpush1.msra.mxu0 0.0
        %1389 = vmatprep.subr.mxu0 0.0
        %1390 = vmatpush1.msra.mxu0 0.0
        %1391 = vmatprep.subr.mxu0 0.0
        %1392 = vmatpush1.msra.mxu0 0.0
        %1393 = vmatprep.subr.mxu0 0.0
        %1394 = vmatpush1.msra.mxu0 0.0
        %1395 = vmatprep.subr.mxu0 0.0
        %1396 = vmatpush1.msra.mxu0 0.0
        %1397 = vmatprep.subr.mxu0 0.0
        %1398 = vmatpush1.msra.mxu0 0.0
        %1399 = vmatprep.subr.mxu0 0.0
        %1400 = vmatpush1.msra.mxu0 0.0
        %1401 = vmatprep.subr.mxu0 0.0
        %1402 = vmatpush1.msra.mxu0 0.0
        %1403 = vmatprep.subr.mxu0 0.0
        %1404 = vmatpush1.msra.mxu0 0.0
        %1405 = vmatprep.subr.mxu0 0.0
        %1406 = vmatpush1.msra.mxu0 0.0
        %1407 = vmatprep.subr.mxu0 0.0
        %1408 = vmatpush1.msra.mxu0 0.0
        %1409 = vmatprep.mubr.f32.mxu0 0.0
        %1410 = vmatmul.mubr.f32.gmra.mrb[0].mxu0 %v1340
        %v1411 = vpop.f32.mrb[0].mxu0
        %v1412 = vadd.f32 0.0, %v1411
        %v1413 = vpop.f32.mrb[0].mxu0
        %1414 = vmatprep.mubr.f32.mxu0 0.0
        %1415 = vmatmul.mubr.f32.gmra.mrb[0].mxu0 %v1343
        %v1416 = vpop.f32.mrb[0].mxu0
        %v1417 = vadd.f32 0.0, %v1416
        %v1418 = vpop.f32.mrb[0].mxu0
        %1419 = vdwg.mxu0
        %s1420 = scalar_lea.vmem [#allocation10], 2
        %v1421 = vld [vmem:[%s1420] sm:$0x1]
        %v1423 = vsel %vm487, %v1421, 0
        %1425 = vmatprep.subr.mxu0 0.0
        %1426 = vmatpush1.xpose.msra.mxu0 %v1340
        %1427 = vmatprep.subr.mxu0 0.0
        %1428 = vmatpush1.xpose.msra.mxu0 %v1343
        %1429 = vmatprep.subr.mxu0 0.0
        %1430 = vmatpush1.xpose.msra.mxu0 0.0
        %1431 = vmatprep.subr.mxu0 0.0
        %1432 = vmatpush1.xpose.msra.mxu0 0.0
        %1433 = vmatprep.subr.mxu0 0.0
        %1434 = vmatpush1.xpose.msra.mxu0 0.0
        %1435 = vmatprep.subr.mxu0 0.0
        %1436 = vmatpush1.xpose.msra.mxu0 0.0
        %1437 = vmatprep.subr.mxu0 0.0
        %1438 = vmatpush1.xpose.msra.mxu0 0.0
        %1439 = vmatprep.subr.mxu0 0.0
        %1440 = vmatpush1.xpose.msra.mxu0 0.0
        %1441 = vmatprep.subr.mxu0 0.0
        %1442 = vmatpush1.xpose.msra.mxu0 0.0
        %1443 = vmatprep.subr.mxu0 0.0
        %1444 = vmatpush1.xpose.msra.mxu0 0.0
        %1445 = vmatprep.subr.mxu0 0.0
        %1446 = vmatpush1.xpose.msra.mxu0 0.0
        %1447 = vmatprep.subr.mxu0 0.0
        %1448 = vmatpush1.xpose.msra.mxu0 0.0
        %1449 = vmatprep.subr.mxu0 0.0
        %1450 = vmatpush1.xpose.msra.mxu0 0.0
        %1451 = vmatprep.subr.mxu0 0.0
        %1452 = vmatpush1.xpose.msra.mxu0 0.0
        %1453 = vmatprep.subr.mxu0 0.0
        %1454 = vmatpush1.xpose.msra.mxu0 0.0
        %1455 = vmatprep.subr.mxu0 0.0
        %1456 = vmatpush1.xpose.msra.mxu0 0.0
        %1457 = vmatprep.subr.mxu0 0.0
        %1458 = vmatpush1.xpose.msra.mxu0 0.0
        %1459 = vmatprep.subr.mxu0 0.0
        %1460 = vmatpush1.xpose.msra.mxu0 0.0
        %1461 = vmatprep.subr.mxu0 0.0
        %1462 = vmatpush1.xpose.msra.mxu0 0.0
        %1463 = vmatprep.subr.mxu0 0.0
        %1464 = vmatpush1.xpose.msra.mxu0 0.0
        %1465 = vmatprep.subr.mxu0 0.0
        %1466 = vmatpush1.xpose.msra.mxu0 0.0
        %1467 = vmatprep.subr.mxu0 0.0
        %1468 = vmatpush1.xpose.msra.mxu0 0.0
        %1469 = vmatprep.subr.mxu0 0.0
        %1470 = vmatpush1.xpose.msra.mxu0 0.0
        %1471 = vmatprep.subr.mxu0 0.0
        %1472 = vmatpush1.xpose.msra.mxu0 0.0
        %1473 = vmatprep.subr.mxu0 0.0
        %1474 = vmatpush1.xpose.msra.mxu0 0.0
        %1475 = vmatprep.subr.mxu0 0.0
        %1476 = vmatpush1.xpose.msra.mxu0 0.0
        %1477 = vmatprep.subr.mxu0 0.0
        %1478 = vmatpush1.xpose.msra.mxu0 0.0
        %1479 = vmatprep.subr.mxu0 0.0
        %1480 = vmatpush1.xpose.msra.mxu0 0.0
        %1481 = vmatprep.subr.mxu0 0.0
        %1482 = vmatpush1.xpose.msra.mxu0 0.0
        %1483 = vmatprep.subr.mxu0 0.0
        %1484 = vmatpush1.xpose.msra.mxu0 0.0
        %1485 = vmatprep.subr.mxu0 0.0
        %1486 = vmatpush1.xpose.msra.mxu0 0.0
        %1487 = vmatprep.subr.mxu0 0.0
        %1488 = vmatpush1.xpose.msra.mxu0 0.0
        %1489 = vmatprep.mubr.f32.mxu0 0.0
        %1490 = vmatmul.mubr.f32.gmra.mrb[0].mxu0 %v1423
        %v1491 = vpop.f32.mrb[0].mxu0
        %v1492 = vadd.f32 0.0, %v1491
        %v1493 = vpop.f32.mrb[0].mxu0
        %1494 = vdwg.mxu0
        %s1495 = scalar_lea.vmem %s6, 64
        %v1496 = vld [vmem:[%s1495] sm:$0xff]
        %v1497 = vld [vmem:[%s1495 + $0x8] sm:$0xff]
        %v1498 = vld [vmem:[%s1495 + $0x10] sm:$0xff]
        %v1499 = vld [vmem:[%s1495 + $0x18] sm:$0xff]
        %1500 = vmatprep.subr.mxu0 0.0
        %1501 = vmatpush1.msra.mxu0 %v1496
        %1502 = vmatprep.subr.mxu0 0.0
        %1503 = vmatpush1.msra.mxu0 %v1497
        %1504 = vmatprep.subr.mxu0 0.0
        %1505 = vmatpush1.msra.mxu0 %v1498
        %1506 = vmatprep.subr.mxu0 0.0
        %1507 = vmatpush1.msra.mxu0 %v1499
        %1508 = vmatprep.subr.mxu0 0.0
        %1509 = vmatpush1.msra.mxu0 0.0
        %1510 = vmatprep.subr.mxu0 0.0
        %1511 = vmatpush1.msra.mxu0 0.0
        %1512 = vmatprep.subr.mxu0 0.0
        %1513 = vmatpush1.msra.mxu0 0.0
        %1514 = vmatprep.subr.mxu0 0.0
        %1515 = vmatpush1.msra.mxu0 0.0
        %1516 = vmatprep.subr.mxu0 0.0
        %1517 = vmatpush1.msra.mxu0 0.0
        %1518 = vmatprep.subr.mxu0 0.0
        %1519 = vmatpush1.msra.mxu0 0.0
        %1520 = vmatprep.subr.mxu0 0.0
        %1521 = vmatpush1.msra.mxu0 0.0
        %1522 = vmatprep.subr.mxu0 0.0
        %1523 = vmatpush1.msra.mxu0 0.0
        %1524 = vmatprep.subr.mxu0 0.0
        %1525 = vmatpush1.msra.mxu0 0.0
        %1526 = vmatprep.subr.mxu0 0.0
        %1527 = vmatpush1.msra.mxu0 0.0
        %1528 = vmatprep.subr.mxu0 0.0
        %1529 = vmatpush1.msra.mxu0 0.0
        %1530 = vmatprep.subr.mxu0 0.0
        %1531 = vmatpush1.msra.mxu0 0.0
        %1532 = vmatprep.subr.mxu0 0.0
        %1533 = vmatpush1.msra.mxu0 0.0
        %1534 = vmatprep.subr.mxu0 0.0
        %1535 = vmatpush1.msra.mxu0 0.0
        %1536 = vmatprep.subr.mxu0 0.0
        %1537 = vmatpush1.msra.mxu0 0.0
        %1538 = vmatprep.subr.mxu0 0.0
        %1539 = vmatpush1.msra.mxu0 0.0
        %1540 = vmatprep.subr.mxu0 0.0
        %1541 = vmatpush1.msra.mxu0 0.0
        %1542 = vmatprep.subr.mxu0 0.0
        %1543 = vmatpush1.msra.mxu0 0.0
        %1544 = vmatprep.subr.mxu0 0.0
        %1545 = vmatpush1.msra.mxu0 0.0
        %1546 = vmatprep.subr.mxu0 0.0
        %1547 = vmatpush1.msra.mxu0 0.0
        %1548 = vmatprep.subr.mxu0 0.0
        %1549 = vmatpush1.msra.mxu0 0.0
        %1550 = vmatprep.subr.mxu0 0.0
        %1551 = vmatpush1.msra.mxu0 0.0
        %1552 = vmatprep.subr.mxu0 0.0
        %1553 = vmatpush1.msra.mxu0 0.0
        %1554 = vmatprep.subr.mxu0 0.0
        %1555 = vmatpush1.msra.mxu0 0.0
        %1556 = vmatprep.subr.mxu0 0.0
        %1557 = vmatpush1.msra.mxu0 0.0
        %1558 = vmatprep.subr.mxu0 0.0
        %1559 = vmatpush1.msra.mxu0 0.0
        %1560 = vmatprep.subr.mxu0 0.0
        %1561 = vmatpush1.msra.mxu0 0.0
        %1562 = vmatprep.subr.mxu0 0.0
        %1563 = vmatpush1.msra.mxu0 0.0
        %1564 = vmatprep.mubr.f32.mxu0 0.0
        %1565 = vmatmul.mubr.f32.gmra.mrb[0].mxu0 %v1340
        %v1566 = vpop.f32.mrb[0].mxu0
        %v1567 = vadd.f32 0.0, %v1566
        %v1568 = vpop.f32.mrb[0].mxu0
        %1569 = vmatprep.mubr.f32.mxu0 0.0
        %1570 = vmatmul.mubr.f32.gmra.mrb[0].mxu0 %v1343
        %v1571 = vpop.f32.mrb[0].mxu0
        %v1572 = vadd.f32 0.0, %v1571
        %v1573 = vpop.f32.mrb[0].mxu0
        %1574 = vdwg.mxu0
        %1576 = vset.pattern.permute.xlu0 0
        %1577 = vperm.xlu0 %1576, %v1567
        %v1578 = vpop.permute.xlu0 %1577
        %1581 = vset.pattern.permute.xlu0 0
        %1582 = vperm.xlu0 %1581, %v1572
        %v1583 = vpop.permute.xlu0 %1582
        %v1585 = vlaneseq
        %v1586 = vshrl.u32 %v1585, 7
        %v1587 = vsub.s32 0, %v1586
        %v1588 = vrot.slane %v1492, %v1587
        %v1589 = vadd.f32 %v1578, %v1588
        %v1590 = vadd.f32 %v1583, %v1588
        %vm1591 = vcmp.gt.f32.partialorder %v1589, 0.0
        %vm1592 = vcmp.gt.f32.partialorder %v1590, 0.0
        %v1593 = vmul.f32 %v1589, 0.2
        %v1594 = vmul.f32 %v1590, 0.2
        %v1595 = vsel %vm1591, %v1589, %v1593
        %v1596 = vsel %vm1592, %v1590, %v1594
        %v1597 = vsel %vm831, %v1595, -1e+30
        %v1598 = vsel %vm832, %v1596, -1e+30
        %v1599 = vsel %vm835, %v1597, -inf
        %1600 = vmax.xlane.f32.xlu0 %v1599
        %v1601 = vpop.xlane.xlu0 %1600
        %v1602 = vsel %vm835, %v1598, -inf
        %1603 = vmax.xlane.f32.xlu0 %v1602
        %v1604 = vpop.xlane.xlu0 %1603
        %v1605 = vsub.f32 %v1597, %v1601
        %v1606 = vsub.f32 %v1598, %v1604
        %v1607 = vmul.f32 %v1605, 1.442695
        %v1608 = vpow.pop %v1607
        %v1609 = vmul.f32 %v1606, 1.442695
        %v1610 = vpow.pop %v1609
        %v1611 = vmul.f32 %v1608, %v569
        %v1612 = vmul.f32 %v1610, %v570
        %v1613 = vsel %vm835, %v1611, 0.0
        %1614 = vadd.xlane.f32.xlu0 %v1613
        %v1615 = vpop.xlane.xlu0 %1614
        %v1616 = vsel %vm835, %v1612, 0.0
        %1617 = vadd.xlane.f32.xlu0 %v1616
        %v1618 = vpop.xlane.xlu0 %1617
        %v1619 = vadd.f32 %v1615, 1e-16
        %v1620 = vadd.f32 %v1618, 1e-16
        %v1621 = vrcp.pop %v1619
        %v1622 = vrcp.pop %v1620
        %v1624 = vsel %vm835, %v1611, 0
        %v1627 = vsel %vm835, %v1612, 0
        %1629 = vmatprep.subr.mxu0 0.0
        %1630 = vmatpush1.msra.mxu0 %v1412
        %1631 = vmatprep.subr.mxu0 0.0
        %1632 = vmatpush1.msra.mxu0 %v1417
        %1633 = vmatprep.subr.mxu0 0.0
        %1634 = vmatpush1.msra.mxu0 0.0
        %1635 = vmatprep.subr.mxu0 0.0
        %1636 = vmatpush1.msra.mxu0 0.0
        %1637 = vmatprep.subr.mxu0 0.0
        %1638 = vmatpush1.msra.mxu0 0.0
        %1639 = vmatprep.subr.mxu0 0.0
        %1640 = vmatpush1.msra.mxu0 0.0
        %1641 = vmatprep.subr.mxu0 0.0
        %1642 = vmatpush1.msra.mxu0 0.0
        %1643 = vmatprep.subr.mxu0 0.0
        %1644 = vmatpush1.msra.mxu0 0.0
        %1645 = vmatprep.subr.mxu0 0.0
        %1646 = vmatpush1.msra.mxu0 0.0
        %1647 = vmatprep.subr.mxu0 0.0
        %1648 = vmatpush1.msra.mxu0 0.0
        %1649 = vmatprep.subr.mxu0 0.0
        %1650 = vmatpush1.msra.mxu0 0.0
        %1651 = vmatprep.subr.mxu0 0.0
        %1652 = vmatpush1.msra.mxu0 0.0
        %1653 = vmatprep.subr.mxu0 0.0
        %1654 = vmatpush1.msra.mxu0 0.0
        %1655 = vmatprep.subr.mxu0 0.0
        %1656 = vmatpush1.msra.mxu0 0.0
        %1657 = vmatprep.subr.mxu0 0.0
        %1658 = vmatpush1.msra.mxu0 0.0
        %1659 = vmatprep.subr.mxu0 0.0
        %1660 = vmatpush1.msra.mxu0 0.0
        %1661 = vmatprep.subr.mxu0 0.0
        %1662 = vmatpush1.msra.mxu0 0.0
        %1663 = vmatprep.subr.mxu0 0.0
        %1664 = vmatpush1.msra.mxu0 0.0
        %1665 = vmatprep.subr.mxu0 0.0
        %1666 = vmatpush1.msra.mxu0 0.0
        %1667 = vmatprep.subr.mxu0 0.0
        %1668 = vmatpush1.msra.mxu0 0.0
        %1669 = vmatprep.subr.mxu0 0.0
        %1670 = vmatpush1.msra.mxu0 0.0
        %1671 = vmatprep.subr.mxu0 0.0
        %1672 = vmatpush1.msra.mxu0 0.0
        %1673 = vmatprep.subr.mxu0 0.0
        %1674 = vmatpush1.msra.mxu0 0.0
        %1675 = vmatprep.subr.mxu0 0.0
        %1676 = vmatpush1.msra.mxu0 0.0
        %1677 = vmatprep.subr.mxu0 0.0
        %1678 = vmatpush1.msra.mxu0 0.0
        %1679 = vmatprep.subr.mxu0 0.0
        %1680 = vmatpush1.msra.mxu0 0.0
        %1681 = vmatprep.subr.mxu0 0.0
        %1682 = vmatpush1.msra.mxu0 0.0
        %1683 = vmatprep.subr.mxu0 0.0
        %1684 = vmatpush1.msra.mxu0 0.0
        %1685 = vmatprep.subr.mxu0 0.0
        %1686 = vmatpush1.msra.mxu0 0.0
        %1687 = vmatprep.subr.mxu0 0.0
        %1688 = vmatpush1.msra.mxu0 0.0
        %1689 = vmatprep.subr.mxu0 0.0
        %1690 = vmatpush1.msra.mxu0 0.0
        %1691 = vmatprep.subr.mxu0 0.0
        %1692 = vmatpush1.msra.mxu0 0.0
        %1693 = vmatprep.mubr.f32.mxu0 0.0
        %1694 = vmatmul.mubr.f32.gmra.mrb[0].mxu0 %v1624
        %v1695 = vpop.f32.mrb[0].mxu0
        %v1696 = vadd.f32 0.0, %v1695
        %v1697 = vpop.f32.mrb[0].mxu0
        %1698 = vmatprep.mubr.f32.mxu0 0.0
        %1699 = vmatmul.mubr.f32.gmra.mrb[0].mxu0 %v1627
        %v1700 = vpop.f32.mrb[0].mxu0
        %v1701 = vadd.f32 0.0, %v1700
        %v1702 = vpop.f32.mrb[0].mxu0
        %1703 = vdwg.mxu0
        %v1704 = vmul.f32 %v1696, %v1621
        %v1705 = vmul.f32 %v1701, %v1622
        %s1706 = scalar_lea.vmem [#allocation11], 2
        %v1707 = vld [vmem:[%s1706] sm:$0x1]
        %v1709 = vlaneseq
        %v1710 = vshrl.u32 %v1709, 7
        %v1711 = vsub.s32 0, %v1710
        %v1712 = vrot.slane %v1707, %v1711
        %v1714 = vadd.f32 %v1704, %v1712
        %v1715 = vadd.f32 %v1705, %v1712
        %s1716 = scalar_lea.vmem %s4, 96
        %v1717 = vld [vmem:[%s1716] sm:$0xff]
        %v1718 = vld [vmem:[%s1716 + $0x8] sm:$0xff]
        %v1719 = vld [vmem:[%s1716 + $0x10] sm:$0xff]
        %v1720 = vld [vmem:[%s1716 + $0x18] sm:$0xff]
        %v1722 = vsel %vm487, %v1714, 0
        %v1725 = vsel %vm487, %v1715, 0
        %1727 = vmatprep.subr.mxu0 0.0
        %1728 = vmatpush1.msra.mxu0 %v1717
        %1729 = vmatprep.subr.mxu0 0.0
        %1730 = vmatpush1.msra.mxu0 %v1718
        %1731 = vmatprep.subr.mxu0 0.0
        %1732 = vmatpush1.msra.mxu0 %v1719
        %1733 = vmatprep.subr.mxu0 0.0
        %1734 = vmatpush1.msra.mxu0 %v1720
        %1735 = vmatprep.subr.mxu0 0.0
        %1736 = vmatpush1.msra.mxu0 0.0
        %1737 = vmatprep.subr.mxu0 0.0
        %1738 = vmatpush1.msra.mxu0 0.0
        %1739 = vmatprep.subr.mxu0 0.0
        %1740 = vmatpush1.msra.mxu0 0.0
        %1741 = vmatprep.subr.mxu0 0.0
        %1742 = vmatpush1.msra.mxu0 0.0
        %1743 = vmatprep.subr.mxu0 0.0
        %1744 = vmatpush1.msra.mxu0 0.0
        %1745 = vmatprep.subr.mxu0 0.0
        %1746 = vmatpush1.msra.mxu0 0.0
        %1747 = vmatprep.subr.mxu0 0.0
        %1748 = vmatpush1.msra.mxu0 0.0
        %1749 = vmatprep.subr.mxu0 0.0
        %1750 = vmatpush1.msra.mxu0 0.0
        %1751 = vmatprep.subr.mxu0 0.0
        %1752 = vmatpush1.msra.mxu0 0.0
        %1753 = vmatprep.subr.mxu0 0.0
        %1754 = vmatpush1.msra.mxu0 0.0
        %1755 = vmatprep.subr.mxu0 0.0
        %1756 = vmatpush1.msra.mxu0 0.0
        %1757 = vmatprep.subr.mxu0 0.0
        %1758 = vmatpush1.msra.mxu0 0.0
        %1759 = vmatprep.subr.mxu0 0.0
        %1760 = vmatpush1.msra.mxu0 0.0
        %1761 = vmatprep.subr.mxu0 0.0
        %1762 = vmatpush1.msra.mxu0 0.0
        %1763 = vmatprep.subr.mxu0 0.0
        %1764 = vmatpush1.msra.mxu0 0.0
        %1765 = vmatprep.subr.mxu0 0.0
        %1766 = vmatpush1.msra.mxu0 0.0
        %1767 = vmatprep.subr.mxu0 0.0
        %1768 = vmatpush1.msra.mxu0 0.0
        %1769 = vmatprep.subr.mxu0 0.0
        %1770 = vmatpush1.msra.mxu0 0.0
        %1771 = vmatprep.subr.mxu0 0.0
        %1772 = vmatpush1.msra.mxu0 0.0
        %1773 = vmatprep.subr.mxu0 0.0
        %1774 = vmatpush1.msra.mxu0 0.0
        %1775 = vmatprep.subr.mxu0 0.0
        %1776 = vmatpush1.msra.mxu0 0.0
        %1777 = vmatprep.subr.mxu0 0.0
        %1778 = vmatpush1.msra.mxu0 0.0
        %1779 = vmatprep.subr.mxu0 0.0
        %1780 = vmatpush1.msra.mxu0 0.0
        %1781 = vmatprep.subr.mxu0 0.0
        %1782 = vmatpush1.msra.mxu0 0.0
        %1783 = vmatprep.subr.mxu0 0.0
        %1784 = vmatpush1.msra.mxu0 0.0
        %1785 = vmatprep.subr.mxu0 0.0
        %1786 = vmatpush1.msra.mxu0 0.0
        %1787 = vmatprep.subr.mxu0 0.0
        %1788 = vmatpush1.msra.mxu0 0.0
        %1789 = vmatprep.subr.mxu0 0.0
        %1790 = vmatpush1.msra.mxu0 0.0
        %1791 = vmatprep.mubr.f32.mxu0 0.0
        %1792 = vmatmul.mubr.f32.gmra.mrb[0].mxu0 %v1722
        %v1793 = vpop.f32.mrb[0].mxu0
        %v1794 = vadd.f32 0.0, %v1793
        %v1795 = vpop.f32.mrb[0].mxu0
        %1796 = vmatprep.mubr.f32.mxu0 0.0
        %1797 = vmatmul.mubr.f32.gmra.mrb[0].mxu0 %v1725
        %v1798 = vpop.f32.mrb[0].mxu0
        %v1799 = vadd.f32 0.0, %v1798
        %v1800 = vpop.f32.mrb[0].mxu0
        %1801 = vdwg.mxu0
        %s1802 = scalar_lea.vmem [#allocation10], 3
        %v1803 = vld [vmem:[%s1802] sm:$0x1]
        %v1805 = vsel %vm487, %v1803, 0
        %1807 = vmatprep.subr.mxu0 0.0
        %1808 = vmatpush1.xpose.msra.mxu0 %v1722
        %1809 = vmatprep.subr.mxu0 0.0
        %1810 = vmatpush1.xpose.msra.mxu0 %v1725
        %1811 = vmatprep.subr.mxu0 0.0
        %1812 = vmatpush1.xpose.msra.mxu0 0.0
        %1813 = vmatprep.subr.mxu0 0.0
        %1814 = vmatpush1.xpose.msra.mxu0 0.0
        %1815 = vmatprep.subr.mxu0 0.0
        %1816 = vmatpush1.xpose.msra.mxu0 0.0
        %1817 = vmatprep.subr.mxu0 0.0
        %1818 = vmatpush1.xpose.msra.mxu0 0.0
        %1819 = vmatprep.subr.mxu0 0.0
        %1820 = vmatpush1.xpose.msra.mxu0 0.0
        %1821 = vmatprep.subr.mxu0 0.0
        %1822 = vmatpush1.xpose.msra.mxu0 0.0
        %1823 = vmatprep.subr.mxu0 0.0
        %1824 = vmatpush1.xpose.msra.mxu0 0.0
        %1825 = vmatprep.subr.mxu0 0.0
        %1826 = vmatpush1.xpose.msra.mxu0 0.0
        %1827 = vmatprep.subr.mxu0 0.0
        %1828 = vmatpush1.xpose.msra.mxu0 0.0
        %1829 = vmatprep.subr.mxu0 0.0
        %1830 = vmatpush1.xpose.msra.mxu0 0.0
        %1831 = vmatprep.subr.mxu0 0.0
        %1832 = vmatpush1.xpose.msra.mxu0 0.0
        %1833 = vmatprep.subr.mxu0 0.0
        %1834 = vmatpush1.xpose.msra.mxu0 0.0
        %1835 = vmatprep.subr.mxu0 0.0
        %1836 = vmatpush1.xpose.msra.mxu0 0.0
        %1837 = vmatprep.subr.mxu0 0.0
        %1838 = vmatpush1.xpose.msra.mxu0 0.0
        %1839 = vmatprep.subr.mxu0 0.0
        %1840 = vmatpush1.xpose.msra.mxu0 0.0
        %1841 = vmatprep.subr.mxu0 0.0
        %1842 = vmatpush1.xpose.msra.mxu0 0.0
        %1843 = vmatprep.subr.mxu0 0.0
        %1844 = vmatpush1.xpose.msra.mxu0 0.0
        %1845 = vmatprep.subr.mxu0 0.0
        %1846 = vmatpush1.xpose.msra.mxu0 0.0
        %1847 = vmatprep.subr.mxu0 0.0
        %1848 = vmatpush1.xpose.msra.mxu0 0.0
        %1849 = vmatprep.subr.mxu0 0.0
        %1850 = vmatpush1.xpose.msra.mxu0 0.0
        %1851 = vmatprep.subr.mxu0 0.0
        %1852 = vmatpush1.xpose.msra.mxu0 0.0
        %1853 = vmatprep.subr.mxu0 0.0
        %1854 = vmatpush1.xpose.msra.mxu0 0.0
        %1855 = vmatprep.subr.mxu0 0.0
        %1856 = vmatpush1.xpose.msra.mxu0 0.0
        %1857 = vmatprep.subr.mxu0 0.0
        %1858 = vmatpush1.xpose.msra.mxu0 0.0
        %1859 = vmatprep.subr.mxu0 0.0
        %1860 = vmatpush1.xpose.msra.mxu0 0.0
        %1861 = vmatprep.subr.mxu0 0.0
        %1862 = vmatpush1.xpose.msra.mxu0 0.0
        %1863 = vmatprep.subr.mxu0 0.0
        %1864 = vmatpush1.xpose.msra.mxu0 0.0
        %1865 = vmatprep.subr.mxu0 0.0
        %1866 = vmatpush1.xpose.msra.mxu0 0.0
        %1867 = vmatprep.subr.mxu0 0.0
        %1868 = vmatpush1.xpose.msra.mxu0 0.0
        %1869 = vmatprep.subr.mxu0 0.0
        %1870 = vmatpush1.xpose.msra.mxu0 0.0
        %1871 = vmatprep.mubr.f32.mxu0 0.0
        %1872 = vmatmul.mubr.f32.gmra.mrb[0].mxu0 %v1805
        %v1873 = vpop.f32.mrb[0].mxu0
        %v1874 = vadd.f32 0.0, %v1873
        %v1875 = vpop.f32.mrb[0].mxu0
        %1876 = vdwg.mxu0
        %s1877 = scalar_lea.vmem %s6, 96
        %v1878 = vld [vmem:[%s1877] sm:$0xff]
        %v1879 = vld [vmem:[%s1877 + $0x8] sm:$0xff]
        %v1880 = vld [vmem:[%s1877 + $0x10] sm:$0xff]
        %v1881 = vld [vmem:[%s1877 + $0x18] sm:$0xff]
        %1882 = vmatprep.subr.mxu0 0.0
        %1883 = vmatpush1.msra.mxu0 %v1878
        %1884 = vmatprep.subr.mxu0 0.0
        %1885 = vmatpush1.msra.mxu0 %v1879
        %1886 = vmatprep.subr.mxu0 0.0
        %1887 = vmatpush1.msra.mxu0 %v1880
        %1888 = vmatprep.subr.mxu0 0.0
        %1889 = vmatpush1.msra.mxu0 %v1881
        %1890 = vmatprep.subr.mxu0 0.0
        %1891 = vmatpush1.msra.mxu0 0.0
        %1892 = vmatprep.subr.mxu0 0.0
        %1893 = vmatpush1.msra.mxu0 0.0
        %1894 = vmatprep.subr.mxu0 0.0
        %1895 = vmatpush1.msra.mxu0 0.0
        %1896 = vmatprep.subr.mxu0 0.0
        %1897 = vmatpush1.msra.mxu0 0.0
        %1898 = vmatprep.subr.mxu0 0.0
        %1899 = vmatpush1.msra.mxu0 0.0
        %1900 = vmatprep.subr.mxu0 0.0
        %1901 = vmatpush1.msra.mxu0 0.0
        %1902 = vmatprep.subr.mxu0 0.0
        %1903 = vmatpush1.msra.mxu0 0.0
        %1904 = vmatprep.subr.mxu0 0.0
        %1905 = vmatpush1.msra.mxu0 0.0
        %1906 = vmatprep.subr.mxu0 0.0
        %1907 = vmatpush1.msra.mxu0 0.0
        %1908 = vmatprep.subr.mxu0 0.0
        %1909 = vmatpush1.msra.mxu0 0.0
        %1910 = vmatprep.subr.mxu0 0.0
        %1911 = vmatpush1.msra.mxu0 0.0
        %1912 = vmatprep.subr.mxu0 0.0
        %1913 = vmatpush1.msra.mxu0 0.0
        %1914 = vmatprep.subr.mxu0 0.0
        %1915 = vmatpush1.msra.mxu0 0.0
        %1916 = vmatprep.subr.mxu0 0.0
        %1917 = vmatpush1.msra.mxu0 0.0
        %1918 = vmatprep.subr.mxu0 0.0
        %1919 = vmatpush1.msra.mxu0 0.0
        %1920 = vmatprep.subr.mxu0 0.0
        %1921 = vmatpush1.msra.mxu0 0.0
        %1922 = vmatprep.subr.mxu0 0.0
        %1923 = vmatpush1.msra.mxu0 0.0
        %1924 = vmatprep.subr.mxu0 0.0
        %1925 = vmatpush1.msra.mxu0 0.0
        %1926 = vmatprep.subr.mxu0 0.0
        %1927 = vmatpush1.msra.mxu0 0.0
        %1928 = vmatprep.subr.mxu0 0.0
        %1929 = vmatpush1.msra.mxu0 0.0
        %1930 = vmatprep.subr.mxu0 0.0
        %1931 = vmatpush1.msra.mxu0 0.0
        %1932 = vmatprep.subr.mxu0 0.0
        %1933 = vmatpush1.msra.mxu0 0.0
        %1934 = vmatprep.subr.mxu0 0.0
        %1935 = vmatpush1.msra.mxu0 0.0
        %1936 = vmatprep.subr.mxu0 0.0
        %1937 = vmatpush1.msra.mxu0 0.0
        %1938 = vmatprep.subr.mxu0 0.0
        %1939 = vmatpush1.msra.mxu0 0.0
        %1940 = vmatprep.subr.mxu0 0.0
        %1941 = vmatpush1.msra.mxu0 0.0
        %1942 = vmatprep.subr.mxu0 0.0
        %1943 = vmatpush1.msra.mxu0 0.0
        %1944 = vmatprep.subr.mxu0 0.0
        %1945 = vmatpush1.msra.mxu0 0.0
        %1946 = vmatprep.mubr.f32.mxu0 0.0
        %1947 = vmatmul.mubr.f32.gmra.mrb[0].mxu0 %v1722
        %v1948 = vpop.f32.mrb[0].mxu0
        %v1949 = vadd.f32 0.0, %v1948
        %v1950 = vpop.f32.mrb[0].mxu0
        %1951 = vmatprep.mubr.f32.mxu0 0.0
        %1952 = vmatmul.mubr.f32.gmra.mrb[0].mxu0 %v1725
        %v1953 = vpop.f32.mrb[0].mxu0
        %v1954 = vadd.f32 0.0, %v1953
        %v1955 = vpop.f32.mrb[0].mxu0
        %1956 = vdwg.mxu0
        %1958 = vset.pattern.permute.xlu0 0
        %1959 = vperm.xlu0 %1958, %v1949
        %v1960 = vpop.permute.xlu0 %1959
        %1963 = vset.pattern.permute.xlu0 0
        %1964 = vperm.xlu0 %1963, %v1954
        %v1965 = vpop.permute.xlu0 %1964
        %v1967 = vlaneseq
        %v1968 = vshrl.u32 %v1967, 7
        %v1969 = vsub.s32 0, %v1968
        %v1970 = vrot.slane %v1874, %v1969
        %v1971 = vadd.f32 %v1960, %v1970
        %v1972 = vadd.f32 %v1965, %v1970
        %vm1973 = vcmp.gt.f32.partialorder %v1971, 0.0
        %vm1974 = vcmp.gt.f32.partialorder %v1972, 0.0
        %v1975 = vmul.f32 %v1971, 0.2
        %v1976 = vmul.f32 %v1972, 0.2
        %v1977 = vsel %vm1973, %v1971, %v1975
        %v1978 = vsel %vm1974, %v1972, %v1976
        %v1979 = vsel %vm831, %v1977, -1e+30
        %v1980 = vsel %vm832, %v1978, -1e+30
        %v1981 = vsel %vm835, %v1979, -inf
        %1982 = vmax.xlane.f32.xlu0 %v1981
        %v1983 = vpop.xlane.xlu0 %1982
        %v1984 = vsel %vm835, %v1980, -inf
        %1985 = vmax.xlane.f32.xlu0 %v1984
        %v1986 = vpop.xlane.xlu0 %1985
        %v1987 = vsub.f32 %v1979, %v1983
        %v1988 = vsub.f32 %v1980, %v1986
        %v1989 = vmul.f32 %v1987, 1.442695
        %v1990 = vpow.pop %v1989
        %v1991 = vmul.f32 %v1988, 1.442695
        %v1992 = vpow.pop %v1991
        %v1993 = vmul.f32 %v1990, %v569
        %v1994 = vmul.f32 %v1992, %v570
        %v1995 = vsel %vm835, %v1993, 0.0
        %1996 = vadd.xlane.f32.xlu0 %v1995
        %v1997 = vpop.xlane.xlu0 %1996
        %v1998 = vsel %vm835, %v1994, 0.0
        %1999 = vadd.xlane.f32.xlu0 %v1998
        %v2000 = vpop.xlane.xlu0 %1999
        %v2001 = vadd.f32 %v1997, 1e-16
        %v2002 = vadd.f32 %v2000, 1e-16
        %v2003 = vrcp.pop %v2001
        %v2004 = vrcp.pop %v2002
        %v2006 = vsel %vm835, %v1993, 0
        %v2009 = vsel %vm835, %v1994, 0
        %2011 = vmatprep.subr.mxu0 0.0
        %2012 = vmatpush1.msra.mxu0 %v1794
        %2013 = vmatprep.subr.mxu0 0.0
        %2014 = vmatpush1.msra.mxu0 %v1799
        %2015 = vmatprep.subr.mxu0 0.0
        %2016 = vmatpush1.msra.mxu0 0.0
        %2017 = vmatprep.subr.mxu0 0.0
        %2018 = vmatpush1.msra.mxu0 0.0
        %2019 = vmatprep.subr.mxu0 0.0
        %2020 = vmatpush1.msra.mxu0 0.0
        %2021 = vmatprep.subr.mxu0 0.0
        %2022 = vmatpush1.msra.mxu0 0.0
        %2023 = vmatprep.subr.mxu0 0.0
        %2024 = vmatpush1.msra.mxu0 0.0
        %2025 = vmatprep.subr.mxu0 0.0
        %2026 = vmatpush1.msra.mxu0 0.0
        %2027 = vmatprep.subr.mxu0 0.0
        %2028 = vmatpush1.msra.mxu0 0.0
        %2029 = vmatprep.subr.mxu0 0.0
        %2030 = vmatpush1.msra.mxu0 0.0
        %2031 = vmatprep.subr.mxu0 0.0
        %2032 = vmatpush1.msra.mxu0 0.0
        %2033 = vmatprep.subr.mxu0 0.0
        %2034 = vmatpush1.msra.mxu0 0.0
        %2035 = vmatprep.subr.mxu0 0.0
        %2036 = vmatpush1.msra.mxu0 0.0
        %2037 = vmatprep.subr.mxu0 0.0
        %2038 = vmatpush1.msra.mxu0 0.0
        %2039 = vmatprep.subr.mxu0 0.0
        %2040 = vmatpush1.msra.mxu0 0.0
        %2041 = vmatprep.subr.mxu0 0.0
        %2042 = vmatpush1.msra.mxu0 0.0
        %2043 = vmatprep.subr.mxu0 0.0
        %2044 = vmatpush1.msra.mxu0 0.0
        %2045 = vmatprep.subr.mxu0 0.0
        %2046 = vmatpush1.msra.mxu0 0.0
        %2047 = vmatprep.subr.mxu0 0.0
        %2048 = vmatpush1.msra.mxu0 0.0
        %2049 = vmatprep.subr.mxu0 0.0
        %2050 = vmatpush1.msra.mxu0 0.0
        %2051 = vmatprep.subr.mxu0 0.0
        %2052 = vmatpush1.msra.mxu0 0.0
        %2053 = vmatprep.subr.mxu0 0.0
        %2054 = vmatpush1.msra.mxu0 0.0
        %2055 = vmatprep.subr.mxu0 0.0
        %2056 = vmatpush1.msra.mxu0 0.0
        %2057 = vmatprep.subr.mxu0 0.0
        %2058 = vmatpush1.msra.mxu0 0.0
        %2059 = vmatprep.subr.mxu0 0.0
        %2060 = vmatpush1.msra.mxu0 0.0
        %2061 = vmatprep.subr.mxu0 0.0
        %2062 = vmatpush1.msra.mxu0 0.0
        %2063 = vmatprep.subr.mxu0 0.0
        %2064 = vmatpush1.msra.mxu0 0.0
        %2065 = vmatprep.subr.mxu0 0.0
        %2066 = vmatpush1.msra.mxu0 0.0
        %2067 = vmatprep.subr.mxu0 0.0
        %2068 = vmatpush1.msra.mxu0 0.0
        %2069 = vmatprep.subr.mxu0 0.0
        %2070 = vmatpush1.msra.mxu0 0.0
        %2071 = vmatprep.subr.mxu0 0.0
        %2072 = vmatpush1.msra.mxu0 0.0
        %2073 = vmatprep.subr.mxu0 0.0
        %2074 = vmatpush1.msra.mxu0 0.0
        %2075 = vmatprep.mubr.f32.mxu0 0.0
        %2076 = vmatmul.mubr.f32.gmra.mrb[0].mxu0 %v2006
        %v2077 = vpop.f32.mrb[0].mxu0
        %v2078 = vadd.f32 0.0, %v2077
        %v2079 = vpop.f32.mrb[0].mxu0
        %2080 = vmatprep.mubr.f32.mxu0 0.0
        %2081 = vmatmul.mubr.f32.gmra.mrb[0].mxu0 %v2009
        %v2082 = vpop.f32.mrb[0].mxu0
        %v2083 = vadd.f32 0.0, %v2082
        %v2084 = vpop.f32.mrb[0].mxu0
        %2085 = vdwg.mxu0
        %v2086 = vmul.f32 %v2078, %v2003
        %v2087 = vmul.f32 %v2083, %v2004
        %s2088 = scalar_lea.vmem [#allocation11], 3
        %v2089 = vld [vmem:[%s2088] sm:$0x1]
        %v2091 = vlaneseq
        %v2092 = vshrl.u32 %v2091, 7
        %v2093 = vsub.s32 0, %v2092
        %v2094 = vrot.slane %v2089, %v2093
        %v2096 = vadd.f32 %v2086, %v2094
        %v2097 = vadd.f32 %v2087, %v2094
        %s2098 = scalar_lea.vmem %s4, 128
        %v2099 = vld [vmem:[%s2098] sm:$0xff]
        %v2100 = vld [vmem:[%s2098 + $0x8] sm:$0xff]
        %v2101 = vld [vmem:[%s2098 + $0x10] sm:$0xff]
        %v2102 = vld [vmem:[%s2098 + $0x18] sm:$0xff]
        %v2104 = vsel %vm487, %v2096, 0
        %v2107 = vsel %vm487, %v2097, 0
        %2109 = vmatprep.subr.mxu0 0.0
        %2110 = vmatpush1.msra.mxu0 %v2099
        %2111 = vmatprep.subr.mxu0 0.0
        %2112 = vmatpush1.msra.mxu0 %v2100
        %2113 = vmatprep.subr.mxu0 0.0
        %2114 = vmatpush1.msra.mxu0 %v2101
        %2115 = vmatprep.subr.mxu0 0.0
        %2116 = vmatpush1.msra.mxu0 %v2102
        %2117 = vmatprep.subr.mxu0 0.0
        %2118 = vmatpush1.msra.mxu0 0.0
        %2119 = vmatprep.subr.mxu0 0.0
        %2120 = vmatpush1.msra.mxu0 0.0
        %2121 = vmatprep.subr.mxu0 0.0
        %2122 = vmatpush1.msra.mxu0 0.0
        %2123 = vmatprep.subr.mxu0 0.0
        %2124 = vmatpush1.msra.mxu0 0.0
        %2125 = vmatprep.subr.mxu0 0.0
        %2126 = vmatpush1.msra.mxu0 0.0
        %2127 = vmatprep.subr.mxu0 0.0
        %2128 = vmatpush1.msra.mxu0 0.0
        %2129 = vmatprep.subr.mxu0 0.0
        %2130 = vmatpush1.msra.mxu0 0.0
        %2131 = vmatprep.subr.mxu0 0.0
        %2132 = vmatpush1.msra.mxu0 0.0
        %2133 = vmatprep.subr.mxu0 0.0
        %2134 = vmatpush1.msra.mxu0 0.0
        %2135 = vmatprep.subr.mxu0 0.0
        %2136 = vmatpush1.msra.mxu0 0.0
        %2137 = vmatprep.subr.mxu0 0.0
        %2138 = vmatpush1.msra.mxu0 0.0
        %2139 = vmatprep.subr.mxu0 0.0
        %2140 = vmatpush1.msra.mxu0 0.0
        %2141 = vmatprep.subr.mxu0 0.0
        %2142 = vmatpush1.msra.mxu0 0.0
        %2143 = vmatprep.subr.mxu0 0.0
        %2144 = vmatpush1.msra.mxu0 0.0
        %2145 = vmatprep.subr.mxu0 0.0
        %2146 = vmatpush1.msra.mxu0 0.0
        %2147 = vmatprep.subr.mxu0 0.0
        %2148 = vmatpush1.msra.mxu0 0.0
        %2149 = vmatprep.subr.mxu0 0.0
        %2150 = vmatpush1.msra.mxu0 0.0
        %2151 = vmatprep.subr.mxu0 0.0
        %2152 = vmatpush1.msra.mxu0 0.0
        %2153 = vmatprep.subr.mxu0 0.0
        %2154 = vmatpush1.msra.mxu0 0.0
        %2155 = vmatprep.subr.mxu0 0.0
        %2156 = vmatpush1.msra.mxu0 0.0
        %2157 = vmatprep.subr.mxu0 0.0
        %2158 = vmatpush1.msra.mxu0 0.0
        %2159 = vmatprep.subr.mxu0 0.0
        %2160 = vmatpush1.msra.mxu0 0.0
        %2161 = vmatprep.subr.mxu0 0.0
        %2162 = vmatpush1.msra.mxu0 0.0
        %2163 = vmatprep.subr.mxu0 0.0
        %2164 = vmatpush1.msra.mxu0 0.0
        %2165 = vmatprep.subr.mxu0 0.0
        %2166 = vmatpush1.msra.mxu0 0.0
        %2167 = vmatprep.subr.mxu0 0.0
        %2168 = vmatpush1.msra.mxu0 0.0
        %2169 = vmatprep.subr.mxu0 0.0
        %2170 = vmatpush1.msra.mxu0 0.0
        %2171 = vmatprep.subr.mxu0 0.0
        %2172 = vmatpush1.msra.mxu0 0.0
        %2173 = vmatprep.mubr.f32.mxu0 0.0
        %2174 = vmatmul.mubr.f32.gmra.mrb[0].mxu0 %v2104
        %v2175 = vpop.f32.mrb[0].mxu0
        %v2176 = vadd.f32 0.0, %v2175
        %v2177 = vpop.f32.mrb[0].mxu0
        %2178 = vmatprep.mubr.f32.mxu0 0.0
        %2179 = vmatmul.mubr.f32.gmra.mrb[0].mxu0 %v2107
        %v2180 = vpop.f32.mrb[0].mxu0
        %v2181 = vadd.f32 0.0, %v2180
        %v2182 = vpop.f32.mrb[0].mxu0
        %2183 = vdwg.mxu0
        %s2184 = scalar_lea.vmem [#allocation10], 4
        %v2185 = vld [vmem:[%s2184] sm:$0x1]
        %v2187 = vsel %vm487, %v2185, 0
        %2189 = vmatprep.subr.mxu0 0.0
        %2190 = vmatpush1.xpose.msra.mxu0 %v2104
        %2191 = vmatprep.subr.mxu0 0.0
        %2192 = vmatpush1.xpose.msra.mxu0 %v2107
        %2193 = vmatprep.subr.mxu0 0.0
        %2194 = vmatpush1.xpose.msra.mxu0 0.0
        %2195 = vmatprep.subr.mxu0 0.0
        %2196 = vmatpush1.xpose.msra.mxu0 0.0
        %2197 = vmatprep.subr.mxu0 0.0
        %2198 = vmatpush1.xpose.msra.mxu0 0.0
        %2199 = vmatprep.subr.mxu0 0.0
        %2200 = vmatpush1.xpose.msra.mxu0 0.0
        %2201 = vmatprep.subr.mxu0 0.0
        %2202 = vmatpush1.xpose.msra.mxu0 0.0
        %2203 = vmatprep.subr.mxu0 0.0
        %2204 = vmatpush1.xpose.msra.mxu0 0.0
        %2205 = vmatprep.subr.mxu0 0.0
        %2206 = vmatpush1.xpose.msra.mxu0 0.0
        %2207 = vmatprep.subr.mxu0 0.0
        %2208 = vmatpush1.xpose.msra.mxu0 0.0
        %2209 = vmatprep.subr.mxu0 0.0
        %2210 = vmatpush1.xpose.msra.mxu0 0.0
        %2211 = vmatprep.subr.mxu0 0.0
        %2212 = vmatpush1.xpose.msra.mxu0 0.0
        %2213 = vmatprep.subr.mxu0 0.0
        %2214 = vmatpush1.xpose.msra.mxu0 0.0
        %2215 = vmatprep.subr.mxu0 0.0
        %2216 = vmatpush1.xpose.msra.mxu0 0.0
        %2217 = vmatprep.subr.mxu0 0.0
        %2218 = vmatpush1.xpose.msra.mxu0 0.0
        %2219 = vmatprep.subr.mxu0 0.0
        %2220 = vmatpush1.xpose.msra.mxu0 0.0
        %2221 = vmatprep.subr.mxu0 0.0
        %2222 = vmatpush1.xpose.msra.mxu0 0.0
        %2223 = vmatprep.subr.mxu0 0.0
        %2224 = vmatpush1.xpose.msra.mxu0 0.0
        %2225 = vmatprep.subr.mxu0 0.0
        %2226 = vmatpush1.xpose.msra.mxu0 0.0
        %2227 = vmatprep.subr.mxu0 0.0
        %2228 = vmatpush1.xpose.msra.mxu0 0.0
        %2229 = vmatprep.subr.mxu0 0.0
        %2230 = vmatpush1.xpose.msra.mxu0 0.0
        %2231 = vmatprep.subr.mxu0 0.0
        %2232 = vmatpush1.xpose.msra.mxu0 0.0
        %2233 = vmatprep.subr.mxu0 0.0
        %2234 = vmatpush1.xpose.msra.mxu0 0.0
        %2235 = vmatprep.subr.mxu0 0.0
        %2236 = vmatpush1.xpose.msra.mxu0 0.0
        %2237 = vmatprep.subr.mxu0 0.0
        %2238 = vmatpush1.xpose.msra.mxu0 0.0
        %2239 = vmatprep.subr.mxu0 0.0
        %2240 = vmatpush1.xpose.msra.mxu0 0.0
        %2241 = vmatprep.subr.mxu0 0.0
        %2242 = vmatpush1.xpose.msra.mxu0 0.0
        %2243 = vmatprep.subr.mxu0 0.0
        %2244 = vmatpush1.xpose.msra.mxu0 0.0
        %2245 = vmatprep.subr.mxu0 0.0
        %2246 = vmatpush1.xpose.msra.mxu0 0.0
        %2247 = vmatprep.subr.mxu0 0.0
        %2248 = vmatpush1.xpose.msra.mxu0 0.0
        %2249 = vmatprep.subr.mxu0 0.0
        %2250 = vmatpush1.xpose.msra.mxu0 0.0
        %2251 = vmatprep.subr.mxu0 0.0
        %2252 = vmatpush1.xpose.msra.mxu0 0.0
        %2253 = vmatprep.mubr.f32.mxu0 0.0
        %2254 = vmatmul.mubr.f32.gmra.mrb[0].mxu0 %v2187
        %v2255 = vpop.f32.mrb[0].mxu0
        %v2256 = vadd.f32 0.0, %v2255
        %v2257 = vpop.f32.mrb[0].mxu0
        %2258 = vdwg.mxu0
        %s2259 = scalar_lea.vmem %s6, 128
        %v2260 = vld [vmem:[%s2259] sm:$0xff]
        %v2261 = vld [vmem:[%s2259 + $0x8] sm:$0xff]
        %v2262 = vld [vmem:[%s2259 + $0x10] sm:$0xff]
        %v2263 = vld [vmem:[%s2259 + $0x18] sm:$0xff]
        %2264 = vmatprep.subr.mxu0 0.0
        %2265 = vmatpush1.msra.mxu0 %v2260
        %2266 = vmatprep.subr.mxu0 0.0
        %2267 = vmatpush1.msra.mxu0 %v2261
        %2268 = vmatprep.subr.mxu0 0.0
        %2269 = vmatpush1.msra.mxu0 %v2262
        %2270 = vmatprep.subr.mxu0 0.0
        %2271 = vmatpush1.msra.mxu0 %v2263
        %2272 = vmatprep.subr.mxu0 0.0
        %2273 = vmatpush1.msra.mxu0 0.0
        %2274 = vmatprep.subr.mxu0 0.0
        %2275 = vmatpush1.msra.mxu0 0.0
        %2276 = vmatprep.subr.mxu0 0.0
        %2277 = vmatpush1.msra.mxu0 0.0
        %2278 = vmatprep.subr.mxu0 0.0
        %2279 = vmatpush1.msra.mxu0 0.0
        %2280 = vmatprep.subr.mxu0 0.0
        %2281 = vmatpush1.msra.mxu0 0.0
        %2282 = vmatprep.subr.mxu0 0.0
        %2283 = vmatpush1.msra.mxu0 0.0
        %2284 = vmatprep.subr.mxu0 0.0
        %2285 = vmatpush1.msra.mxu0 0.0
        %2286 = vmatprep.subr.mxu0 0.0
        %2287 = vmatpush1.msra.mxu0 0.0
        %2288 = vmatprep.subr.mxu0 0.0
        %2289 = vmatpush1.msra.mxu0 0.0
        %2290 = vmatprep.subr.mxu0 0.0
        %2291 = vmatpush1.msra.mxu0 0.0
        %2292 = vmatprep.subr.mxu0 0.0
        %2293 = vmatpush1.msra.mxu0 0.0
        %2294 = vmatprep.subr.mxu0 0.0
        %2295 = vmatpush1.msra.mxu0 0.0
        %2296 = vmatprep.subr.mxu0 0.0
        %2297 = vmatpush1.msra.mxu0 0.0
        %2298 = vmatprep.subr.mxu0 0.0
        %2299 = vmatpush1.msra.mxu0 0.0
        %2300 = vmatprep.subr.mxu0 0.0
        %2301 = vmatpush1.msra.mxu0 0.0
        %2302 = vmatprep.subr.mxu0 0.0
        %2303 = vmatpush1.msra.mxu0 0.0
        %2304 = vmatprep.subr.mxu0 0.0
        %2305 = vmatpush1.msra.mxu0 0.0
        %2306 = vmatprep.subr.mxu0 0.0
        %2307 = vmatpush1.msra.mxu0 0.0
        %2308 = vmatprep.subr.mxu0 0.0
        %2309 = vmatpush1.msra.mxu0 0.0
        %2310 = vmatprep.subr.mxu0 0.0
        %2311 = vmatpush1.msra.mxu0 0.0
        %2312 = vmatprep.subr.mxu0 0.0
        %2313 = vmatpush1.msra.mxu0 0.0
        %2314 = vmatprep.subr.mxu0 0.0
        %2315 = vmatpush1.msra.mxu0 0.0
        %2316 = vmatprep.subr.mxu0 0.0
        %2317 = vmatpush1.msra.mxu0 0.0
        %2318 = vmatprep.subr.mxu0 0.0
        %2319 = vmatpush1.msra.mxu0 0.0
        %2320 = vmatprep.subr.mxu0 0.0
        %2321 = vmatpush1.msra.mxu0 0.0
        %2322 = vmatprep.subr.mxu0 0.0
        %2323 = vmatpush1.msra.mxu0 0.0
        %2324 = vmatprep.subr.mxu0 0.0
        %2325 = vmatpush1.msra.mxu0 0.0
        %2326 = vmatprep.subr.mxu0 0.0
        %2327 = vmatpush1.msra.mxu0 0.0
        %2328 = vmatprep.mubr.f32.mxu0 0.0
        %2329 = vmatmul.mubr.f32.gmra.mrb[0].mxu0 %v2104
        %v2330 = vpop.f32.mrb[0].mxu0
        %v2331 = vadd.f32 0.0, %v2330
        %v2332 = vpop.f32.mrb[0].mxu0
        %2333 = vmatprep.mubr.f32.mxu0 0.0
        %2334 = vmatmul.mubr.f32.gmra.mrb[0].mxu0 %v2107
        %v2335 = vpop.f32.mrb[0].mxu0
        %v2336 = vadd.f32 0.0, %v2335
        %v2337 = vpop.f32.mrb[0].mxu0
        %2338 = vdwg.mxu0
        %2340 = vset.pattern.permute.xlu0 0
        %2341 = vperm.xlu0 %2340, %v2331
        %v2342 = vpop.permute.xlu0 %2341
        %2345 = vset.pattern.permute.xlu0 0
        %2346 = vperm.xlu0 %2345, %v2336
        %v2347 = vpop.permute.xlu0 %2346
        %v2349 = vlaneseq
        %v2350 = vshrl.u32 %v2349, 7
        %v2351 = vsub.s32 0, %v2350
        %v2352 = vrot.slane %v2256, %v2351
        %v2353 = vadd.f32 %v2342, %v2352
        %v2354 = vadd.f32 %v2347, %v2352
        %vm2355 = vcmp.gt.f32.partialorder %v2353, 0.0
        %vm2356 = vcmp.gt.f32.partialorder %v2354, 0.0
        %v2357 = vmul.f32 %v2353, 0.2
        %v2358 = vmul.f32 %v2354, 0.2
        %v2359 = vsel %vm2355, %v2353, %v2357
        %v2360 = vsel %vm2356, %v2354, %v2358
        %v2361 = vsel %vm831, %v2359, -1e+30
        %v2362 = vsel %vm832, %v2360, -1e+30
        %v2363 = vsel %vm835, %v2361, -inf
        %2364 = vmax.xlane.f32.xlu0 %v2363
        %v2365 = vpop.xlane.xlu0 %2364
        %v2366 = vsel %vm835, %v2362, -inf
        %2367 = vmax.xlane.f32.xlu0 %v2366
        %v2368 = vpop.xlane.xlu0 %2367
        %v2369 = vsub.f32 %v2361, %v2365
        %v2370 = vsub.f32 %v2362, %v2368
        %v2371 = vmul.f32 %v2369, 1.442695
        %v2372 = vpow.pop %v2371
        %v2373 = vmul.f32 %v2370, 1.442695
        %v2374 = vpow.pop %v2373
        %v2375 = vmul.f32 %v2372, %v569
        %v2376 = vmul.f32 %v2374, %v570
        %v2377 = vsel %vm835, %v2375, 0.0
        %2378 = vadd.xlane.f32.xlu0 %v2377
        %v2379 = vpop.xlane.xlu0 %2378
        %v2380 = vsel %vm835, %v2376, 0.0
        %2381 = vadd.xlane.f32.xlu0 %v2380
        %v2382 = vpop.xlane.xlu0 %2381
        %v2383 = vadd.f32 %v2379, 1e-16
        %v2384 = vadd.f32 %v2382, 1e-16
        %v2385 = vrcp.pop %v2383
        %v2386 = vrcp.pop %v2384
        %v2388 = vsel %vm835, %v2375, 0
        %v2391 = vsel %vm835, %v2376, 0
        %2393 = vmatprep.subr.mxu0 0.0
        %2394 = vmatpush1.msra.mxu0 %v2176
        %2395 = vmatprep.subr.mxu0 0.0
        %2396 = vmatpush1.msra.mxu0 %v2181
        %2397 = vmatprep.subr.mxu0 0.0
        %2398 = vmatpush1.msra.mxu0 0.0
        %2399 = vmatprep.subr.mxu0 0.0
        %2400 = vmatpush1.msra.mxu0 0.0
        %2401 = vmatprep.subr.mxu0 0.0
        %2402 = vmatpush1.msra.mxu0 0.0
        %2403 = vmatprep.subr.mxu0 0.0
        %2404 = vmatpush1.msra.mxu0 0.0
        %2405 = vmatprep.subr.mxu0 0.0
        %2406 = vmatpush1.msra.mxu0 0.0
        %2407 = vmatprep.subr.mxu0 0.0
        %2408 = vmatpush1.msra.mxu0 0.0
        %2409 = vmatprep.subr.mxu0 0.0
        %2410 = vmatpush1.msra.mxu0 0.0
        %2411 = vmatprep.subr.mxu0 0.0
        %2412 = vmatpush1.msra.mxu0 0.0
        %2413 = vmatprep.subr.mxu0 0.0
        %2414 = vmatpush1.msra.mxu0 0.0
        %2415 = vmatprep.subr.mxu0 0.0
        %2416 = vmatpush1.msra.mxu0 0.0
        %2417 = vmatprep.subr.mxu0 0.0
        %2418 = vmatpush1.msra.mxu0 0.0
        %2419 = vmatprep.subr.mxu0 0.0
        %2420 = vmatpush1.msra.mxu0 0.0
        %2421 = vmatprep.subr.mxu0 0.0
        %2422 = vmatpush1.msra.mxu0 0.0
        %2423 = vmatprep.subr.mxu0 0.0
        %2424 = vmatpush1.msra.mxu0 0.0
        %2425 = vmatprep.subr.mxu0 0.0
        %2426 = vmatpush1.msra.mxu0 0.0
        %2427 = vmatprep.subr.mxu0 0.0
        %2428 = vmatpush1.msra.mxu0 0.0
        %2429 = vmatprep.subr.mxu0 0.0
        %2430 = vmatpush1.msra.mxu0 0.0
        %2431 = vmatprep.subr.mxu0 0.0
        %2432 = vmatpush1.msra.mxu0 0.0
        %2433 = vmatprep.subr.mxu0 0.0
        %2434 = vmatpush1.msra.mxu0 0.0
        %2435 = vmatprep.subr.mxu0 0.0
        %2436 = vmatpush1.msra.mxu0 0.0
        %2437 = vmatprep.subr.mxu0 0.0
        %2438 = vmatpush1.msra.mxu0 0.0
        %2439 = vmatprep.subr.mxu0 0.0
        %2440 = vmatpush1.msra.mxu0 0.0
        %2441 = vmatprep.subr.mxu0 0.0
        %2442 = vmatpush1.msra.mxu0 0.0
        %2443 = vmatprep.subr.mxu0 0.0
        %2444 = vmatpush1.msra.mxu0 0.0
        %2445 = vmatprep.subr.mxu0 0.0
        %2446 = vmatpush1.msra.mxu0 0.0
        %2447 = vmatprep.subr.mxu0 0.0
        %2448 = vmatpush1.msra.mxu0 0.0
        %2449 = vmatprep.subr.mxu0 0.0
        %2450 = vmatpush1.msra.mxu0 0.0
        %2451 = vmatprep.subr.mxu0 0.0
        %2452 = vmatpush1.msra.mxu0 0.0
        %2453 = vmatprep.subr.mxu0 0.0
        %2454 = vmatpush1.msra.mxu0 0.0
        %2455 = vmatprep.subr.mxu0 0.0
        %2456 = vmatpush1.msra.mxu0 0.0
        %2457 = vmatprep.mubr.f32.mxu0 0.0
        %2458 = vmatmul.mubr.f32.gmra.mrb[0].mxu0 %v2388
        %v2459 = vpop.f32.mrb[0].mxu0
        %v2460 = vadd.f32 0.0, %v2459
        %v2461 = vpop.f32.mrb[0].mxu0
        %2462 = vmatprep.mubr.f32.mxu0 0.0
        %2463 = vmatmul.mubr.f32.gmra.mrb[0].mxu0 %v2391
        %v2464 = vpop.f32.mrb[0].mxu0
        %v2465 = vadd.f32 0.0, %v2464
        %v2466 = vpop.f32.mrb[0].mxu0
        %2467 = vdwg.mxu0
        %v2468 = vmul.f32 %v2460, %v2385
        %v2469 = vmul.f32 %v2465, %v2386
        %s2470 = scalar_lea.vmem [#allocation11], 4
        %v2471 = vld [vmem:[%s2470] sm:$0x1]
        %v2473 = vlaneseq
        %v2474 = vshrl.u32 %v2473, 7
        %v2475 = vsub.s32 0, %v2474
        %v2476 = vrot.slane %v2471, %v2475
        %v2478 = vadd.f32 %v2468, %v2476
        %v2479 = vadd.f32 %v2469, %v2476
        %s2480 = scalar_lea.vmem %s4, 160
        %v2481 = vld [vmem:[%s2480] sm:$0xff]
        %v2482 = vld [vmem:[%s2480 + $0x8] sm:$0xff]
        %v2483 = vld [vmem:[%s2480 + $0x10] sm:$0xff]
        %v2484 = vld [vmem:[%s2480 + $0x18] sm:$0xff]
        %v2486 = vsel %vm487, %v2478, 0
        %v2489 = vsel %vm487, %v2479, 0
        %2491 = vmatprep.subr.mxu0 0.0
        %2492 = vmatpush1.msra.mxu0 %v2481
        %2493 = vmatprep.subr.mxu0 0.0
        %2494 = vmatpush1.msra.mxu0 %v2482
        %2495 = vmatprep.subr.mxu0 0.0
        %2496 = vmatpush1.msra.mxu0 %v2483
        %2497 = vmatprep.subr.mxu0 0.0
        %2498 = vmatpush1.msra.mxu0 %v2484
        %2499 = vmatprep.subr.mxu0 0.0
        %2500 = vmatpush1.msra.mxu0 0.0
        %2501 = vmatprep.subr.mxu0 0.0
        %2502 = vmatpush1.msra.mxu0 0.0
        %2503 = vmatprep.subr.mxu0 0.0
        %2504 = vmatpush1.msra.mxu0 0.0
        %2505 = vmatprep.subr.mxu0 0.0
        %2506 = vmatpush1.msra.mxu0 0.0
        %2507 = vmatprep.subr.mxu0 0.0
        %2508 = vmatpush1.msra.mxu0 0.0
        %2509 = vmatprep.subr.mxu0 0.0
        %2510 = vmatpush1.msra.mxu0 0.0
        %2511 = vmatprep.subr.mxu0 0.0
        %2512 = vmatpush1.msra.mxu0 0.0
        %2513 = vmatprep.subr.mxu0 0.0
        %2514 = vmatpush1.msra.mxu0 0.0
        %2515 = vmatprep.subr.mxu0 0.0
        %2516 = vmatpush1.msra.mxu0 0.0
        %2517 = vmatprep.subr.mxu0 0.0
        %2518 = vmatpush1.msra.mxu0 0.0
        %2519 = vmatprep.subr.mxu0 0.0
        %2520 = vmatpush1.msra.mxu0 0.0
        %2521 = vmatprep.subr.mxu0 0.0
        %2522 = vmatpush1.msra.mxu0 0.0
        %2523 = vmatprep.subr.mxu0 0.0
        %2524 = vmatpush1.msra.mxu0 0.0
        %2525 = vmatprep.subr.mxu0 0.0
        %2526 = vmatpush1.msra.mxu0 0.0
        %2527 = vmatprep.subr.mxu0 0.0
        %2528 = vmatpush1.msra.mxu0 0.0
        %2529 = vmatprep.subr.mxu0 0.0
        %2530 = vmatpush1.msra.mxu0 0.0
        %2531 = vmatprep.subr.mxu0 0.0
        %2532 = vmatpush1.msra.mxu0 0.0
        %2533 = vmatprep.subr.mxu0 0.0
        %2534 = vmatpush1.msra.mxu0 0.0
        %2535 = vmatprep.subr.mxu0 0.0
        %2536 = vmatpush1.msra.mxu0 0.0
        %2537 = vmatprep.subr.mxu0 0.0
        %2538 = vmatpush1.msra.mxu0 0.0
        %2539 = vmatprep.subr.mxu0 0.0
        %2540 = vmatpush1.msra.mxu0 0.0
        %2541 = vmatprep.subr.mxu0 0.0
        %2542 = vmatpush1.msra.mxu0 0.0
        %2543 = vmatprep.subr.mxu0 0.0
        %2544 = vmatpush1.msra.mxu0 0.0
        %2545 = vmatprep.subr.mxu0 0.0
        %2546 = vmatpush1.msra.mxu0 0.0
        %2547 = vmatprep.subr.mxu0 0.0
        %2548 = vmatpush1.msra.mxu0 0.0
        %2549 = vmatprep.subr.mxu0 0.0
        %2550 = vmatpush1.msra.mxu0 0.0
        %2551 = vmatprep.subr.mxu0 0.0
        %2552 = vmatpush1.msra.mxu0 0.0
        %2553 = vmatprep.subr.mxu0 0.0
        %2554 = vmatpush1.msra.mxu0 0.0
        %2555 = vmatprep.mubr.f32.mxu0 0.0
        %2556 = vmatmul.mubr.f32.gmra.mrb[0].mxu0 %v2486
        %v2557 = vpop.f32.mrb[0].mxu0
        %v2558 = vadd.f32 0.0, %v2557
        %v2559 = vpop.f32.mrb[0].mxu0
        %2560 = vmatprep.mubr.f32.mxu0 0.0
        %2561 = vmatmul.mubr.f32.gmra.mrb[0].mxu0 %v2489
        %v2562 = vpop.f32.mrb[0].mxu0
        %v2563 = vadd.f32 0.0, %v2562
        %v2564 = vpop.f32.mrb[0].mxu0
        %2565 = vdwg.mxu0
        %s2566 = scalar_lea.vmem [#allocation10], 5
        %v2567 = vld [vmem:[%s2566] sm:$0x1]
        %v2569 = vsel %vm487, %v2567, 0
        %2571 = vmatprep.subr.mxu0 0.0
        %2572 = vmatpush1.xpose.msra.mxu0 %v2486
        %2573 = vmatprep.subr.mxu0 0.0
        %2574 = vmatpush1.xpose.msra.mxu0 %v2489
        %2575 = vmatprep.subr.mxu0 0.0
        %2576 = vmatpush1.xpose.msra.mxu0 0.0
        %2577 = vmatprep.subr.mxu0 0.0
        %2578 = vmatpush1.xpose.msra.mxu0 0.0
        %2579 = vmatprep.subr.mxu0 0.0
        %2580 = vmatpush1.xpose.msra.mxu0 0.0
        %2581 = vmatprep.subr.mxu0 0.0
        %2582 = vmatpush1.xpose.msra.mxu0 0.0
        %2583 = vmatprep.subr.mxu0 0.0
        %2584 = vmatpush1.xpose.msra.mxu0 0.0
        %2585 = vmatprep.subr.mxu0 0.0
        %2586 = vmatpush1.xpose.msra.mxu0 0.0
        %2587 = vmatprep.subr.mxu0 0.0
        %2588 = vmatpush1.xpose.msra.mxu0 0.0
        %2589 = vmatprep.subr.mxu0 0.0
        %2590 = vmatpush1.xpose.msra.mxu0 0.0
        %2591 = vmatprep.subr.mxu0 0.0
        %2592 = vmatpush1.xpose.msra.mxu0 0.0
        %2593 = vmatprep.subr.mxu0 0.0
        %2594 = vmatpush1.xpose.msra.mxu0 0.0
        %2595 = vmatprep.subr.mxu0 0.0
        %2596 = vmatpush1.xpose.msra.mxu0 0.0
        %2597 = vmatprep.subr.mxu0 0.0
        %2598 = vmatpush1.xpose.msra.mxu0 0.0
        %2599 = vmatprep.subr.mxu0 0.0
        %2600 = vmatpush1.xpose.msra.mxu0 0.0
        %2601 = vmatprep.subr.mxu0 0.0
        %2602 = vmatpush1.xpose.msra.mxu0 0.0
        %2603 = vmatprep.subr.mxu0 0.0
        %2604 = vmatpush1.xpose.msra.mxu0 0.0
        %2605 = vmatprep.subr.mxu0 0.0
        %2606 = vmatpush1.xpose.msra.mxu0 0.0
        %2607 = vmatprep.subr.mxu0 0.0
        %2608 = vmatpush1.xpose.msra.mxu0 0.0
        %2609 = vmatprep.subr.mxu0 0.0
        %2610 = vmatpush1.xpose.msra.mxu0 0.0
        %2611 = vmatprep.subr.mxu0 0.0
        %2612 = vmatpush1.xpose.msra.mxu0 0.0
        %2613 = vmatprep.subr.mxu0 0.0
        %2614 = vmatpush1.xpose.msra.mxu0 0.0
        %2615 = vmatprep.subr.mxu0 0.0
        %2616 = vmatpush1.xpose.msra.mxu0 0.0
        %2617 = vmatprep.subr.mxu0 0.0
        %2618 = vmatpush1.xpose.msra.mxu0 0.0
        %2619 = vmatprep.subr.mxu0 0.0
        %2620 = vmatpush1.xpose.msra.mxu0 0.0
        %2621 = vmatprep.subr.mxu0 0.0
        %2622 = vmatpush1.xpose.msra.mxu0 0.0
        %2623 = vmatprep.subr.mxu0 0.0
        %2624 = vmatpush1.xpose.msra.mxu0 0.0
        %2625 = vmatprep.subr.mxu0 0.0
        %2626 = vmatpush1.xpose.msra.mxu0 0.0
        %2627 = vmatprep.subr.mxu0 0.0
        %2628 = vmatpush1.xpose.msra.mxu0 0.0
        %2629 = vmatprep.subr.mxu0 0.0
        %2630 = vmatpush1.xpose.msra.mxu0 0.0
        %2631 = vmatprep.subr.mxu0 0.0
        %2632 = vmatpush1.xpose.msra.mxu0 0.0
        %2633 = vmatprep.subr.mxu0 0.0
        %2634 = vmatpush1.xpose.msra.mxu0 0.0
        %2635 = vmatprep.mubr.f32.mxu0 0.0
        %2636 = vmatmul.mubr.f32.gmra.mrb[0].mxu0 %v2569
        %v2637 = vpop.f32.mrb[0].mxu0
        %v2638 = vadd.f32 0.0, %v2637
        %v2639 = vpop.f32.mrb[0].mxu0
        %2640 = vdwg.mxu0
        %s2641 = scalar_lea.vmem %s6, 160
        %v2642 = vld [vmem:[%s2641] sm:$0xff]
        %v2643 = vld [vmem:[%s2641 + $0x8] sm:$0xff]
        %v2644 = vld [vmem:[%s2641 + $0x10] sm:$0xff]
        %v2645 = vld [vmem:[%s2641 + $0x18] sm:$0xff]
        %2646 = vmatprep.subr.mxu0 0.0
        %2647 = vmatpush1.msra.mxu0 %v2642
        %2648 = vmatprep.subr.mxu0 0.0
        %2649 = vmatpush1.msra.mxu0 %v2643
        %2650 = vmatprep.subr.mxu0 0.0
        %2651 = vmatpush1.msra.mxu0 %v2644
        %2652 = vmatprep.subr.mxu0 0.0
        %2653 = vmatpush1.msra.mxu0 %v2645
        %2654 = vmatprep.subr.mxu0 0.0
        %2655 = vmatpush1.msra.mxu0 0.0
        %2656 = vmatprep.subr.mxu0 0.0
        %2657 = vmatpush1.msra.mxu0 0.0
        %2658 = vmatprep.subr.mxu0 0.0
        %2659 = vmatpush1.msra.mxu0 0.0
        %2660 = vmatprep.subr.mxu0 0.0
        %2661 = vmatpush1.msra.mxu0 0.0
        %2662 = vmatprep.subr.mxu0 0.0
        %2663 = vmatpush1.msra.mxu0 0.0
        %2664 = vmatprep.subr.mxu0 0.0
        %2665 = vmatpush1.msra.mxu0 0.0
        %2666 = vmatprep.subr.mxu0 0.0
        %2667 = vmatpush1.msra.mxu0 0.0
        %2668 = vmatprep.subr.mxu0 0.0
        %2669 = vmatpush1.msra.mxu0 0.0
        %2670 = vmatprep.subr.mxu0 0.0
        %2671 = vmatpush1.msra.mxu0 0.0
        %2672 = vmatprep.subr.mxu0 0.0
        %2673 = vmatpush1.msra.mxu0 0.0
        %2674 = vmatprep.subr.mxu0 0.0
        %2675 = vmatpush1.msra.mxu0 0.0
        %2676 = vmatprep.subr.mxu0 0.0
        %2677 = vmatpush1.msra.mxu0 0.0
        %2678 = vmatprep.subr.mxu0 0.0
        %2679 = vmatpush1.msra.mxu0 0.0
        %2680 = vmatprep.subr.mxu0 0.0
        %2681 = vmatpush1.msra.mxu0 0.0
        %2682 = vmatprep.subr.mxu0 0.0
        %2683 = vmatpush1.msra.mxu0 0.0
        %2684 = vmatprep.subr.mxu0 0.0
        %2685 = vmatpush1.msra.mxu0 0.0
        %2686 = vmatprep.subr.mxu0 0.0
        %2687 = vmatpush1.msra.mxu0 0.0
        %2688 = vmatprep.subr.mxu0 0.0
        %2689 = vmatpush1.msra.mxu0 0.0
        %2690 = vmatprep.subr.mxu0 0.0
        %2691 = vmatpush1.msra.mxu0 0.0
        %2692 = vmatprep.subr.mxu0 0.0
        %2693 = vmatpush1.msra.mxu0 0.0
        %2694 = vmatprep.subr.mxu0 0.0
        %2695 = vmatpush1.msra.mxu0 0.0
        %2696 = vmatprep.subr.mxu0 0.0
        %2697 = vmatpush1.msra.mxu0 0.0
        %2698 = vmatprep.subr.mxu0 0.0
        %2699 = vmatpush1.msra.mxu0 0.0
        %2700 = vmatprep.subr.mxu0 0.0
        %2701 = vmatpush1.msra.mxu0 0.0
        %2702 = vmatprep.subr.mxu0 0.0
        %2703 = vmatpush1.msra.mxu0 0.0
        %2704 = vmatprep.subr.mxu0 0.0
        %2705 = vmatpush1.msra.mxu0 0.0
        %2706 = vmatprep.subr.mxu0 0.0
        %2707 = vmatpush1.msra.mxu0 0.0
        %2708 = vmatprep.subr.mxu0 0.0
        %2709 = vmatpush1.msra.mxu0 0.0
        %2710 = vmatprep.mubr.f32.mxu0 0.0
        %2711 = vmatmul.mubr.f32.gmra.mrb[0].mxu0 %v2486
        %v2712 = vpop.f32.mrb[0].mxu0
        %v2713 = vadd.f32 0.0, %v2712
        %v2714 = vpop.f32.mrb[0].mxu0
        %2715 = vmatprep.mubr.f32.mxu0 0.0
        %2716 = vmatmul.mubr.f32.gmra.mrb[0].mxu0 %v2489
        %v2717 = vpop.f32.mrb[0].mxu0
        %v2718 = vadd.f32 0.0, %v2717
        %v2719 = vpop.f32.mrb[0].mxu0
        %2720 = vdwg.mxu0
        %2722 = vset.pattern.permute.xlu0 0
        %2723 = vperm.xlu0 %2722, %v2713
        %v2724 = vpop.permute.xlu0 %2723
        %2727 = vset.pattern.permute.xlu0 0
        %2728 = vperm.xlu0 %2727, %v2718
        %v2729 = vpop.permute.xlu0 %2728
        %v2731 = vlaneseq
        %v2732 = vshrl.u32 %v2731, 7
        %v2733 = vsub.s32 0, %v2732
        %v2734 = vrot.slane %v2638, %v2733
        %v2735 = vadd.f32 %v2724, %v2734
        %v2736 = vadd.f32 %v2729, %v2734
        %vm2737 = vcmp.gt.f32.partialorder %v2735, 0.0
        %vm2738 = vcmp.gt.f32.partialorder %v2736, 0.0
        %v2739 = vmul.f32 %v2735, 0.2
        %v2740 = vmul.f32 %v2736, 0.2
        %v2741 = vsel %vm2737, %v2735, %v2739
        %v2742 = vsel %vm2738, %v2736, %v2740
        %v2743 = vsel %vm831, %v2741, -1e+30
        %v2744 = vsel %vm832, %v2742, -1e+30
        %v2745 = vsel %vm835, %v2743, -inf
        %2746 = vmax.xlane.f32.xlu0 %v2745
        %v2747 = vpop.xlane.xlu0 %2746
        %v2748 = vsel %vm835, %v2744, -inf
        %2749 = vmax.xlane.f32.xlu0 %v2748
        %v2750 = vpop.xlane.xlu0 %2749
        %v2751 = vsub.f32 %v2743, %v2747
        %v2752 = vsub.f32 %v2744, %v2750
        %v2753 = vmul.f32 %v2751, 1.442695
        %v2754 = vpow.pop %v2753
        %v2755 = vmul.f32 %v2752, 1.442695
        %v2756 = vpow.pop %v2755
        %v2757 = vmul.f32 %v2754, %v569
        %v2758 = vmul.f32 %v2756, %v570
        %v2759 = vsel %vm835, %v2757, 0.0
        %2760 = vadd.xlane.f32.xlu0 %v2759
        %v2761 = vpop.xlane.xlu0 %2760
        %v2762 = vsel %vm835, %v2758, 0.0
        %2763 = vadd.xlane.f32.xlu0 %v2762
        %v2764 = vpop.xlane.xlu0 %2763
        %v2765 = vadd.f32 %v2761, 1e-16
        %v2766 = vadd.f32 %v2764, 1e-16
        %v2767 = vrcp.pop %v2765
        %v2768 = vrcp.pop %v2766
        %v2770 = vsel %vm835, %v2757, 0
        %v2773 = vsel %vm835, %v2758, 0
        %2775 = vmatprep.subr.mxu0 0.0
        %2776 = vmatpush1.msra.mxu0 %v2558
        %2777 = vmatprep.subr.mxu0 0.0
        %2778 = vmatpush1.msra.mxu0 %v2563
        %2779 = vmatprep.subr.mxu0 0.0
        %2780 = vmatpush1.msra.mxu0 0.0
        %2781 = vmatprep.subr.mxu0 0.0
        %2782 = vmatpush1.msra.mxu0 0.0
        %2783 = vmatprep.subr.mxu0 0.0
        %2784 = vmatpush1.msra.mxu0 0.0
        %2785 = vmatprep.subr.mxu0 0.0
        %2786 = vmatpush1.msra.mxu0 0.0
        %2787 = vmatprep.subr.mxu0 0.0
        %2788 = vmatpush1.msra.mxu0 0.0
        %2789 = vmatprep.subr.mxu0 0.0
        %2790 = vmatpush1.msra.mxu0 0.0
        %2791 = vmatprep.subr.mxu0 0.0
        %2792 = vmatpush1.msra.mxu0 0.0
        %2793 = vmatprep.subr.mxu0 0.0
        %2794 = vmatpush1.msra.mxu0 0.0
        %2795 = vmatprep.subr.mxu0 0.0
        %2796 = vmatpush1.msra.mxu0 0.0
        %2797 = vmatprep.subr.mxu0 0.0
        %2798 = vmatpush1.msra.mxu0 0.0
        %2799 = vmatprep.subr.mxu0 0.0
        %2800 = vmatpush1.msra.mxu0 0.0
        %2801 = vmatprep.subr.mxu0 0.0
        %2802 = vmatpush1.msra.mxu0 0.0
        %2803 = vmatprep.subr.mxu0 0.0
        %2804 = vmatpush1.msra.mxu0 0.0
        %2805 = vmatprep.subr.mxu0 0.0
        %2806 = vmatpush1.msra.mxu0 0.0
        %2807 = vmatprep.subr.mxu0 0.0
        %2808 = vmatpush1.msra.mxu0 0.0
        %2809 = vmatprep.subr.mxu0 0.0
        %2810 = vmatpush1.msra.mxu0 0.0
        %2811 = vmatprep.subr.mxu0 0.0
        %2812 = vmatpush1.msra.mxu0 0.0
        %2813 = vmatprep.subr.mxu0 0.0
        %2814 = vmatpush1.msra.mxu0 0.0
        %2815 = vmatprep.subr.mxu0 0.0
        %2816 = vmatpush1.msra.mxu0 0.0
        %2817 = vmatprep.subr.mxu0 0.0
        %2818 = vmatpush1.msra.mxu0 0.0
        %2819 = vmatprep.subr.mxu0 0.0
        %2820 = vmatpush1.msra.mxu0 0.0
        %2821 = vmatprep.subr.mxu0 0.0
        %2822 = vmatpush1.msra.mxu0 0.0
        %2823 = vmatprep.subr.mxu0 0.0
        %2824 = vmatpush1.msra.mxu0 0.0
        %2825 = vmatprep.subr.mxu0 0.0
        %2826 = vmatpush1.msra.mxu0 0.0
        %2827 = vmatprep.subr.mxu0 0.0
        %2828 = vmatpush1.msra.mxu0 0.0
        %2829 = vmatprep.subr.mxu0 0.0
        %2830 = vmatpush1.msra.mxu0 0.0
        %2831 = vmatprep.subr.mxu0 0.0
        %2832 = vmatpush1.msra.mxu0 0.0
        %2833 = vmatprep.subr.mxu0 0.0
        %2834 = vmatpush1.msra.mxu0 0.0
        %2835 = vmatprep.subr.mxu0 0.0
        %2836 = vmatpush1.msra.mxu0 0.0
        %2837 = vmatprep.subr.mxu0 0.0
        %2838 = vmatpush1.msra.mxu0 0.0
        %2839 = vmatprep.mubr.f32.mxu0 0.0
        %2840 = vmatmul.mubr.f32.gmra.mrb[0].mxu0 %v2770
        %v2841 = vpop.f32.mrb[0].mxu0
        %v2842 = vadd.f32 0.0, %v2841
        %v2843 = vpop.f32.mrb[0].mxu0
        %2844 = vmatprep.mubr.f32.mxu0 0.0
        %2845 = vmatmul.mubr.f32.gmra.mrb[0].mxu0 %v2773
        %v2846 = vpop.f32.mrb[0].mxu0
        %v2847 = vadd.f32 0.0, %v2846
        %v2848 = vpop.f32.mrb[0].mxu0
        %2849 = vdwg.mxu0
        %v2850 = vmul.f32 %v2842, %v2767
        %v2851 = vmul.f32 %v2847, %v2768
        %s2852 = scalar_lea.vmem [#allocation11], 5
        %v2853 = vld [vmem:[%s2852] sm:$0x1]
        %v2855 = vlaneseq
        %v2856 = vshrl.u32 %v2855, 7
        %v2857 = vsub.s32 0, %v2856
        %v2858 = vrot.slane %v2853, %v2857
        %v2860 = vadd.f32 %v2850, %v2858
        %v2861 = vadd.f32 %v2851, %v2858
        %v2862 = vmax.f32 %v2860, 0.0
        %v2863 = vmax.f32 %v2861, 0.0
        %v2864 = vld [vmem:[%s8] sm:$0xff]
        %v2865 = vld [vmem:[%s8 + $0x8] sm:$0xff]
        %v2866 = vld [vmem:[%s8 + $0x10] sm:$0xff]
        %v2867 = vld [vmem:[%s8 + $0x18] sm:$0xff]
        %v2868 = vld [vmem:[%s9] sm:$0x1]
        %v2870 = vlaneseq
        %v2871 = vshrl.u32 %v2870, 7
        %v2872 = vsub.s32 0, %v2871
        %v2873 = vrot.slane %v2868, %v2872
        %v2876 = vsel %vm487, %v2862, 0
        %v2879 = vsel %vm487, %v2863, 0
        %2881 = vmatprep.subr.mxu0 0.0
        %2882 = vmatpush1.msra.mxu0 %v2864
        %2883 = vmatprep.subr.mxu0 0.0
        %2884 = vmatpush1.msra.mxu0 %v2865
        %2885 = vmatprep.subr.mxu0 0.0
        %2886 = vmatpush1.msra.mxu0 %v2866
        %2887 = vmatprep.subr.mxu0 0.0
        %2888 = vmatpush1.msra.mxu0 %v2867
        %2889 = vmatprep.subr.mxu0 0.0
        %2890 = vmatpush1.msra.mxu0 0.0
        %2891 = vmatprep.subr.mxu0 0.0
        %2892 = vmatpush1.msra.mxu0 0.0
        %2893 = vmatprep.subr.mxu0 0.0
        %2894 = vmatpush1.msra.mxu0 0.0
        %2895 = vmatprep.subr.mxu0 0.0
        %2896 = vmatpush1.msra.mxu0 0.0
        %2897 = vmatprep.subr.mxu0 0.0
        %2898 = vmatpush1.msra.mxu0 0.0
        %2899 = vmatprep.subr.mxu0 0.0
        %2900 = vmatpush1.msra.mxu0 0.0
        %2901 = vmatprep.subr.mxu0 0.0
        %2902 = vmatpush1.msra.mxu0 0.0
        %2903 = vmatprep.subr.mxu0 0.0
        %2904 = vmatpush1.msra.mxu0 0.0
        %2905 = vmatprep.subr.mxu0 0.0
        %2906 = vmatpush1.msra.mxu0 0.0
        %2907 = vmatprep.subr.mxu0 0.0
        %2908 = vmatpush1.msra.mxu0 0.0
        %2909 = vmatprep.subr.mxu0 0.0
        %2910 = vmatpush1.msra.mxu0 0.0
        %2911 = vmatprep.subr.mxu0 0.0
        %2912 = vmatpush1.msra.mxu0 0.0
        %2913 = vmatprep.subr.mxu0 0.0
        %2914 = vmatpush1.msra.mxu0 0.0
        %2915 = vmatprep.subr.mxu0 0.0
        %2916 = vmatpush1.msra.mxu0 0.0
        %2917 = vmatprep.subr.mxu0 0.0
        %2918 = vmatpush1.msra.mxu0 0.0
        %2919 = vmatprep.subr.mxu0 0.0
        %2920 = vmatpush1.msra.mxu0 0.0
        %2921 = vmatprep.subr.mxu0 0.0
        %2922 = vmatpush1.msra.mxu0 0.0
        %2923 = vmatprep.subr.mxu0 0.0
        %2924 = vmatpush1.msra.mxu0 0.0
        %2925 = vmatprep.subr.mxu0 0.0
        %2926 = vmatpush1.msra.mxu0 0.0
        %2927 = vmatprep.subr.mxu0 0.0
        %2928 = vmatpush1.msra.mxu0 0.0
        %2929 = vmatprep.subr.mxu0 0.0
        %2930 = vmatpush1.msra.mxu0 0.0
        %2931 = vmatprep.subr.mxu0 0.0
        %2932 = vmatpush1.msra.mxu0 0.0
        %2933 = vmatprep.subr.mxu0 0.0
        %2934 = vmatpush1.msra.mxu0 0.0
        %2935 = vmatprep.subr.mxu0 0.0
        %2936 = vmatpush1.msra.mxu0 0.0
        %2937 = vmatprep.subr.mxu0 0.0
        %2938 = vmatpush1.msra.mxu0 0.0
        %2939 = vmatprep.subr.mxu0 0.0
        %2940 = vmatpush1.msra.mxu0 0.0
        %2941 = vmatprep.subr.mxu0 0.0
        %2942 = vmatpush1.msra.mxu0 0.0
        %2943 = vmatprep.subr.mxu0 0.0
        %2944 = vmatpush1.msra.mxu0 0.0
        %2945 = vmatprep.mubr.f32.mxu0 0.0
        %2946 = vmatmul.mubr.f32.gmra.mrb[0].mxu0 %v2876
        %v2947 = vpop.f32.mrb[0].mxu0
        %v2948 = vadd.f32 %v2873, %v2947
        %v2949 = vpop.f32.mrb[0].mxu0
        %2950 = vmatprep.mubr.f32.mxu0 0.0
        %2951 = vmatmul.mubr.f32.gmra.mrb[0].mxu0 %v2879
        %v2952 = vpop.f32.mrb[0].mxu0
        %v2953 = vadd.f32 %v2873, %v2952
        %v2954 = vpop.f32.mrb[0].mxu0
        %2955 = vdwg.mxu0
        %2956 = vst [vmem:[%s473] sm:$0xff] %v2948
        %2957 = vst [vmem:[%s473 + $0x8] sm:$0xff] %v2953
        %s2958 = sand.u32 %s260, 1
        %s2959 = scalar_lea.sflag [#allocation4], %s2958
        %s2960 = sand.u32 %s260, 1
        %s2961 = smul.addr %s2960, 16
        %s2962 = scalar_lea.vmem [#allocation13], %s2961
        // Predicated region
        $region85: #{tpu_custom_call.1} parent=59 // pred_check
          %p2963 = pneg %p270
        $region86: #{tpu_custom_call.1} parent=59 // pred_check_branch
          %2965 = sbr.rel (%p2963) target = $region88
        $region87: #{tpu_custom_call.1} parent=59 // pred_region
          %s2967 = ssub.s32 256, 256
          %2968 = vsyncadd %s2959, %s2967
          %s2969 = smul.addr %s32, 2
          %s2970 = smul.addr %s2969, 128
          %s2971 = scalar_lea.hbm %s10, %s2970
          %s2972 = sshll.u32 %s2962, 4
          %s2973 = int_to_ptr.vmem [resolvable:$true] %s2972
          %2978 = dma.vmem_to_hbm [thread:$0]  %s2973, 256, %s2971, %s2959, 128, 128, 8
        $region88: #{tpu_custom_call.1} parent=59 // pred_fallthru
          _
      $region60: #{tpu_custom_call.1} parent=5 // pred_fallthru
        _
      %p2979 = scmp.le.s32.totalorder 2, %s27
      // Predicated region
      $region89: #{tpu_custom_call.1} parent=5 // pred_check
        %p2980 = pneg %p2979
      $region90: #{tpu_custom_call.1} parent=5 // pred_check_branch
        %2982 = sbr.rel (%p2980) target = $region92
      $region91: #{tpu_custom_call.1} parent=5 // pred_region
        %s2983 = ssub.s32 %s27, 2
        // Predicated region
        $region93: #{tpu_custom_call.1} parent=91 // pred_check
          %p2984 = pneg %p276
        $region94: #{tpu_custom_call.1} parent=91 // pred_check_branch
          %2986 = sbr.rel (%p2984) target = $region96
        $region95: #{tpu_custom_call.1} parent=91 // pred_region
          %s2987 = sand.u32 %s261, 1
          %s2988 = scalar_lea.sflag [#allocation4], %s2987
          %s2989 = sand.u32 %s261, 1
          %s2990 = smul.addr %s2989, 16
          %s2991 = scalar_lea.vmem [#allocation13], %s2990
          %2992 = dma.done %s2988, 256
        $region96: #{tpu_custom_call.1} parent=91 // pred_fallthru
          _
      $region92: #{tpu_custom_call.1} parent=5 // pred_fallthru
        _
    $region6: #{tpu_custom_call.1} parent=1 // loop_footer
      %s31 = sadd.s32 1, %s27
    $region7: #{tpu_custom_call.1} parent=1 // loop_footer_branch
      %26 = sbr.rel target = $region3
    $region8: #{tpu_custom_call.1} parent=1 // loop_exit
      _
    %2993 = vsyncpa [#allocation3], 1
    %s2994 = scalar_lea.sflag [#allocation3], 1
    %2995 = vsyncpa %s2994, 1
    %2996 = vsyncpa [#allocation6], 1
    %s2997 = scalar_lea.sflag [#allocation6], 1
    %2998 = vsyncpa %s2997, 1
    %2999 = vsyncpa [#allocation9], 1
    %3000 = vsyncpa [#allocation12], 1
    %3001 = vsyncpa [#allocation4], 1
    %s3002 = scalar_lea.sflag [#allocation4], 1
    %3003 = vsyncpa %s3002, 1

</llo_original>
